<compile_context>
chip_gen: v6e
topology: v6e:2x2x1
jax: 0.10.0
libtpu: 0.0.40
codegen_flags: <defaults>
</compile_context>

<pallas_src>
import math
import functools

import jax
import jax.numpy as jnp
from jax.experimental import pallas as pl
from jax.experimental.pallas import tpu as pltpu


def _mha_kernel(x_ref, wqkv_ref, bqkv_ref, wout_ref, bout_ref, o_ref, heads_ref,
                *, batch_block, num_tokens, dim, num_heads, d_k):
    BB, N, D, H = batch_block, num_tokens, dim, num_heads

    # bf16 casts happen in-kernel (VPU converts; no extra XLA launches or HBM
    # passes in the wrapper).  No-ops if the caller stores bf16 params.
    x = x_ref[...].reshape(BB * N, D).astype(jnp.bfloat16)      # merge leading dims: free
    w_qkv = wqkv_ref[...].astype(jnp.bfloat16)
    w_out = wout_ref[...].astype(jnp.bfloat16)

    # Fused QKV projection over all BB*N rows (fills the MXU M dim), f32 accumulate.
    qkv = jnp.dot(x, w_qkv, preferred_element_type=jnp.float32) + bqkv_ref[...]  # (BB*N, 3D) f32

    # Fold 1/sqrt(d_k) into q (O(BB*N*D)) instead of scaling (N, N) scores.
    inv_sqrt_dk = 1.0 / math.sqrt(d_k)
    q_all = (qkv[:, 0 * D:1 * D] * inv_sqrt_dk).astype(jnp.bfloat16)
    k_all = qkv[:, 1 * D:2 * D].astype(jnp.bfloat16)
    v_all = qkv[:, 2 * D:3 * D].astype(jnp.bfloat16)

    # Attention: the batch dim is batched inside each einsum; heads use a short
    # static loop over lane slices, writing each head's output straight into
    # its h*d_k lane slice of a lane-dense VMEM scratch (no concatenate).
    for h in range(H):
        sl = slice(h * d_k, (h + 1) * d_k)
        q_h = q_all[:, sl].reshape(BB, N, d_k)   # leading-dim split: no relayout
        k_h = k_all[:, sl].reshape(BB, N, d_k)
        v_h = v_all[:, sl].reshape(BB, N, d_k)

        s = jnp.einsum('bqd,bkd->bqk', q_h, k_h,
                       preferred_element_type=jnp.float32)       # (BB, N, N) f32

        # Max-stabilized softmax in f32; divide goes to the EUP (approx recip).
        # Reduce axis is the key axis (= N lanes): lane-dense for N >= 128.
        m = jnp.max(s, axis=-1, keepdims=True)
        p = jnp.exp(s - m)
        inv_l = pl.reciprocal(jnp.sum(p, axis=-1, keepdims=True), approx=True)
        attn = (p * inv_l).astype(jnp.bfloat16)
        # TODO(synk): attn_drop (Dropout 0.1) treated as identity (eval mode).

        w_h = jnp.einsum('bqk,bkd->bqd', attn, v_h,
                         preferred_element_type=jnp.float32)     # (BB, N, d_k) f32
        heads_ref[:, sl] = w_h.reshape(BB * N, d_k).astype(jnp.bfloat16)

    # Output projection over the assembled lane-dense heads: one dense K=D matmul.
    out = jnp.dot(heads_ref[...], w_out,
                  preferred_element_type=jnp.float32) + bout_ref[...]   # (BB*N, D) f32
    o_ref[...] = out.reshape(BB, N, D).astype(o_ref.dtype)


def _tensorcores_per_chip():
    """Best-effort TensorCores/chip (2 on v7x, 1 on v5e/v6e); falls back to 1."""
    try:
        info = pltpu.get_tpu_info()
    except Exception:
        return 1
    for attr in ("num_cores", "core_count", "num_tensorcores", "tensor_core_count"):
        v = getattr(info, attr, None)
        if isinstance(v, int) and 1 <= v <= 8:
            return v
    return 1


def multi_head_attention(x, w_qkv, b_qkv, w_out, b_out, *, num_heads,
                         batch_block=None, out_dtype=None):
    """MaskGIT MultiHeadAttention forward (eval mode).

    x: (B, N, D).  w_qkv: (D, 3D) (pre-transposed vs. torch), b_qkv: (3D,),
    w_out: (D, D), b_out: (D,).  Params may be f32 or bf16 (storing bf16
    weights persistently skips the in-kernel convert and halves weight DMA).
    Pass out_dtype=jnp.bfloat16 if the next layer consumes bf16.
    """
    B, N, D = x.shape
    assert D % num_heads == 0
    d_k = D // num_heads

    if batch_block is None:
        # Split the batch across TensorCores on multi-core chips (v7x) as long
        # as each core keeps >= 128 MXU rows; otherwise fuse the whole batch
        # into one grid step so the kernel is not pipeline/launch-overhead
        # bound at small shapes on v5e/v6e (1 TC/chip).
        nc = _tensorcores_per_chip()
        if nc > 1 and B % nc == 0 and (B // nc) * N >= 128:
            batch_block = B // nc
        else:
            batch_block = B
    assert B % batch_block == 0
    if out_dtype is None:
        out_dtype = x.dtype

    kernel = functools.partial(
        _mha_kernel, batch_block=batch_block, num_tokens=N, dim=D,
        num_heads=num_heads, d_k=d_k)

    # NOTE: no wrapper-side .astype calls -- inputs/params go in as stored and
    # the kernel converts after the DMA.  Biases only get a metadata reshape.
    b_qkv2 = b_qkv.reshape(1, 3 * D)
    b_out2 = b_out.reshape(1, D)

    return pl.pallas_call(
        kernel,
        out_shape=jax.ShapeDtypeStruct((B, N, D), out_dtype),
        grid_spec=pltpu.PrefetchScalarGridSpec(
            num_scalar_prefetch=0,
            grid=(B // batch_block,),
            in_specs=[
                pl.BlockSpec((batch_block, N, D), lambda i: (i, 0, 0)),   # x
                # Grid-invariant params.  TODO(synk): at MaskGIT-scale D
                # (768-1024) on v7x add pipeline_mode=pl.Buffered(1) to the
                # weight specs to single-buffer them and save VMEM.
                pl.BlockSpec((D, 3 * D), lambda i: (0, 0)),               # w_qkv
                pl.BlockSpec((1, 3 * D), lambda i: (0, 0)),               # b_qkv
                pl.BlockSpec((D, D), lambda i: (0, 0)),                   # w_out
                pl.BlockSpec((1, D), lambda i: (0, 0)),                   # b_out
            ],
            out_specs=pl.BlockSpec((batch_block, N, D), lambda i: (i, 0, 0)),
            scratch_shapes=[
                pltpu.VMEM((batch_block * N, D), jnp.bfloat16),           # assembled heads
            ],
        ),
        compiler_params=pltpu.CompilerParams(
            dimension_semantics=("parallel",)),
    )(x, w_qkv, b_qkv2, w_out, b_out2)


def _reference_mha(x, w_qkv, b_qkv, w_out, b_out, *, num_heads):
    """Pure-JAX f32 reference replicating the PyTorch forward (eval mode)."""
    B, N, D = x.shape
    d_k = D // num_heads
    qkv = x @ w_qkv + b_qkv                                   # (B, N, 3D)
    qkv = qkv.reshape(B, N, 3, num_heads, d_k)
    qkv = jnp.transpose(qkv, (2, 0, 3, 1, 4))                 # (3, B, H, N, dk)
    q, k, v = qkv[0], qkv[1], qkv[2]
    scores = jnp.matmul(q, jnp.swapaxes(k, -2, -1)) / math.sqrt(d_k)
    attn = jax.nn.softmax(scores, axis=-1)
    wavg = jnp.matmul(attn, v)                                # (B, H, N, dk)
    wavg = jnp.transpose(wavg, (0, 2, 1, 3)).reshape(B, N, D)
    return wavg @ w_out + b_out


if __name__ == "__main__":
    # Small shapes consistent with the module (token-sequence transformer):
    # batch=2, num_tokens=128, dim=128, num_heads=4  (d_k = d_v = 32).
    # N=128 keeps the softmax key axis lane-dense and B*N=256 fills MXU rows.
    B, N, D, H = 2, 128, 128, 4

    key = jax.random.PRNGKey(0)
    kx, k1, k2, k3, k4 = jax.random.split(key, 5)

    x = jax.random.normal(kx, (B, N, D), dtype=jnp.float32)

    # Deterministic parameter init (PyTorch-Linear-style uniform bounds).
    bound = 1.0 / math.sqrt(D)
    w_qkv = jax.random.uniform(k1, (D, 3 * D), jnp.float32, -bound, bound)
    b_qkv = jax.random.uniform(k2, (3 * D,), jnp.float32, -bound, bound)
    w_out = jax.random.uniform(k3, (D, D), jnp.float32, -bound, bound)
    b_out = jax.random.uniform(k4, (D,), jnp.float32, -bound, bound)

    out = multi_head_attention(x, w_qkv, b_qkv, w_out, b_out, num_heads=H)
    out = jax.block_until_ready(out)

    ref = _reference_mha(x, w_qkv, b_qkv, w_out, b_out, num_heads=H)
    assert out.shape == (B, N, D)
    # bf16 MXU inputs with f32 accumulation (+ approx softmax reciprocal):
    # compare at a bf16-appropriate tolerance.
    max_err = float(jnp.max(jnp.abs(out - ref)))
    assert jnp.allclose(out, ref, atol=5e-2, rtol=5e-2), \
        f"mismatch vs reference (max abs err {max_err})"

    print("KERNEL_OK")
</pallas_src>

<mosaic_0001>
module attributes {stable_mosaic.version = 11 : i64} {
  func.func @_mha_kernel(%arg0: i32, %arg1: memref<2x128x128xf32, #tpu.memory_space<vmem>>, %arg2: memref<128x384xf32, #tpu.memory_space<vmem>>, %arg3: memref<1x384xf32, #tpu.memory_space<vmem>>, %arg4: memref<128x128xf32, #tpu.memory_space<vmem>>, %arg5: memref<1x128xf32, #tpu.memory_space<vmem>>, %arg6: memref<2x128x128xf32, #tpu.memory_space<vmem>>, %arg7: memref<256x128xbf16, #tpu.memory_space<vmem>>) attributes {dimension_semantics = [#tpu.dimension_semantics<parallel>], iteration_bounds = array<i64: 1>, scalar_prefetch = 0 : i64, scratch_operands = 1 : i64, tpu.core_type = #tpu.core_type<tc>, window_params = [{transform_indices = @transform_0, window_bounds = array<i64: 2, 128, 128>}, {pipeline_mode = #tpu.pipeline_mode<synchronous>, transform_indices = @transform_1, window_bounds = array<i64: 128, 384>}, {pipeline_mode = #tpu.pipeline_mode<synchronous>, transform_indices = @transform_2, window_bounds = array<i64: 1, 384>}, {pipeline_mode = #tpu.pipeline_mode<synchronous>, transform_indices = @transform_3, window_bounds = array<i64: 128, 128>}, {pipeline_mode = #tpu.pipeline_mode<synchronous>, transform_indices = @transform_4, window_bounds = array<i64: 1, 128>}, {transform_indices = @transform_5, window_bounds = array<i64: 2, 128, 128>}]} {
    %c0 = arith.constant 0 : index
    %c0_0 = arith.constant 0 : index
    %c0_1 = arith.constant 0 : index
    %0 = vector.load %arg1[%c0, %c0_0, %c0_1] : memref<2x128x128xf32, #tpu.memory_space<vmem>>, vector<2x128x128xf32>
    %1 = vector.shape_cast %0 : vector<2x128x128xf32> to vector<256x128xf32>
    %2 = arith.truncf %1 : vector<256x128xf32> to vector<256x128xbf16>
    %c0_2 = arith.constant 0 : index
    %c0_3 = arith.constant 0 : index
    %3 = vector.load %arg2[%c0_2, %c0_3] : memref<128x384xf32, #tpu.memory_space<vmem>>, vector<128x384xf32>
    %4 = arith.truncf %3 : vector<128x384xf32> to vector<128x384xbf16>
    %c0_4 = arith.constant 0 : index
    %c0_5 = arith.constant 0 : index
    %5 = vector.load %arg4[%c0_4, %c0_5] : memref<128x128xf32, #tpu.memory_space<vmem>>, vector<128x128xf32>
    %6 = arith.truncf %5 : vector<128x128xf32> to vector<128x128xbf16>
    %cst = arith.constant dense<0.000000e+00> : vector<256x384xf32>
    %7 = tpu.matmul %2, %4, %cst {dimension_numbers = #tpu.dot_dimension_numbers<[1], [0], [0], [1], [0, 0, 1, 1], [], []>} : vector<256x128xbf16>, vector<128x384xbf16>, vector<256x384xf32> -> vector<256x384xf32>
    %c0_6 = arith.constant 0 : index
    %c0_7 = arith.constant 0 : index
    %8 = vector.load %arg3[%c0_6, %c0_7] : memref<1x384xf32, #tpu.memory_space<vmem>>, vector<1x384xf32>
    %9 = vector.broadcast %8 : vector<1x384xf32> to vector<256x384xf32>
    %10 = arith.addf %7, %9 : vector<256x384xf32>
    %11 = vector.extract_strided_slice %10 {offsets = [0, 0], sizes = [256, 128], strides = [1, 1]} : vector<256x384xf32> to vector<256x128xf32>
    %cst_8 = arith.constant 0.176776692 : f32
    %12 = vector.broadcast %cst_8 : f32 to vector<256x128xf32>
    %13 = arith.mulf %11, %12 : vector<256x128xf32>
    %14 = arith.truncf %13 : vector<256x128xf32> to vector<256x128xbf16>
    %15 = vector.extract_strided_slice %10 {offsets = [0, 128], sizes = [256, 128], strides = [1, 1]} : vector<256x384xf32> to vector<256x128xf32>
    %16 = arith.truncf %15 : vector<256x128xf32> to vector<256x128xbf16>
    %17 = vector.extract_strided_slice %10 {offsets = [0, 256], sizes = [256, 128], strides = [1, 1]} : vector<256x384xf32> to vector<256x128xf32>
    %18 = arith.truncf %17 : vector<256x128xf32> to vector<256x128xbf16>
    %19 = vector.extract_strided_slice %14 {offsets = [0, 0], sizes = [256, 32], strides = [1, 1]} : vector<256x128xbf16> to vector<256x32xbf16>
    %20 = vector.shape_cast %19 : vector<256x32xbf16> to vector<2x128x32xbf16>
    %21 = vector.extract_strided_slice %16 {offsets = [0, 0], sizes = [256, 32], strides = [1, 1]} : vector<256x128xbf16> to vector<256x32xbf16>
    %22 = vector.shape_cast %21 : vector<256x32xbf16> to vector<2x128x32xbf16>
    %23 = vector.extract_strided_slice %18 {offsets = [0, 0], sizes = [256, 32], strides = [1, 1]} : vector<256x128xbf16> to vector<256x32xbf16>
    %24 = vector.shape_cast %23 : vector<256x32xbf16> to vector<2x128x32xbf16>
    "tpu.trace_start"() <{level = 10 : i32, message = "bqd,bkd->bqk"}> : () -> ()
    %cst_9 = arith.constant dense<0.000000e+00> : vector<2x128x128xf32>
    %25 = tpu.matmul %20, %22, %cst_9 {dimension_numbers = #tpu.dot_dimension_numbers<[2], [2], [1], [1], [0, 0, 0, 1, 1, 1], [0], [0]>} : vector<2x128x32xbf16>, vector<2x128x32xbf16>, vector<2x128x128xf32> -> vector<2x128x128xf32>
    "tpu.trace_stop"() : () -> ()
    %cst_10 = arith.constant dense<0xFF800000> : vector<2x128xf32>
    %26 = vector.multi_reduction <maximumf>, %25, %cst_10 [2] : vector<2x128x128xf32> to vector<2x128xf32>
    %27 = vector.shape_cast %26 : vector<2x128xf32> to vector<2x128x1xf32>
    %28 = vector.broadcast %27 : vector<2x128x1xf32> to vector<2x128x128xf32>
    %29 = arith.subf %25, %28 : vector<2x128x128xf32>
    %30 = math.exp %29 : vector<2x128x128xf32>
    %cst_11 = arith.constant dense<0.000000e+00> : vector<2x128xf32>
    %31 = vector.multi_reduction <add>, %30, %cst_11 [2] : vector<2x128x128xf32> to vector<2x128xf32>
    %32 = vector.shape_cast %31 : vector<2x128xf32> to vector<2x128x1xf32>
    %33 = tpu.reciprocal %32 {approx = true} : vector<2x128x1xf32> -> vector<2x128x1xf32>
    %34 = vector.broadcast %33 : vector<2x128x1xf32> to vector<2x128x128xf32>
    %35 = arith.mulf %30, %34 : vector<2x128x128xf32>
    %36 = arith.truncf %35 : vector<2x128x128xf32> to vector<2x128x128xbf16>
    "tpu.trace_start"() <{level = 10 : i32, message = "bqk,bkd->bqd"}> : () -> ()
    %cst_12 = arith.constant dense<0.000000e+00> : vector<2x128x32xf32>
    %37 = tpu.matmul %36, %24, %cst_12 {dimension_numbers = #tpu.dot_dimension_numbers<[2], [1], [1], [2], [0, 0, 0, 1, 1, 2], [0], [0]>} : vector<2x128x128xbf16>, vector<2x128x32xbf16>, vector<2x128x32xf32> -> vector<2x128x32xf32>
    "tpu.trace_stop"() : () -> ()
    %38 = vector.shape_cast %37 : vector<2x128x32xf32> to vector<256x32xf32>
    %39 = arith.truncf %38 : vector<256x32xf32> to vector<256x32xbf16>
    %c0_13 = arith.constant 0 : index
    %c0_14 = arith.constant 0 : index
    %40 = vector.load %arg7[%c0_13, %c0_14] : memref<256x128xbf16, #tpu.memory_space<vmem>>, vector<256x32xbf16>
    tpu.vector_store %arg7[%c0_13, %c0_14], %39 {strides = array<i32>} : memref<256x128xbf16, #tpu.memory_space<vmem>>, vector<256x32xbf16>,
    %41 = vector.extract_strided_slice %14 {offsets = [0, 32], sizes = [256, 32], strides = [1, 1]} : vector<256x128xbf16> to vector<256x32xbf16>
    %42 = vector.shape_cast %41 : vector<256x32xbf16> to vector<2x128x32xbf16>
    %43 = vector.extract_strided_slice %16 {offsets = [0, 32], sizes = [256, 32], strides = [1, 1]} : vector<256x128xbf16> to vector<256x32xbf16>
    %44 = vector.shape_cast %43 : vector<256x32xbf16> to vector<2x128x32xbf16>
    %45 = vector.extract_strided_slice %18 {offsets = [0, 32], sizes = [256, 32], strides = [1, 1]} : vector<256x128xbf16> to vector<256x32xbf16>
    %46 = vector.shape_cast %45 : vector<256x32xbf16> to vector<2x128x32xbf16>
    "tpu.trace_start"() <{level = 10 : i32, message = "bqd,bkd->bqk"}> : () -> ()
    %cst_15 = arith.constant dense<0.000000e+00> : vector<2x128x128xf32>
    %47 = tpu.matmul %42, %44, %cst_15 {dimension_numbers = #tpu.dot_dimension_numbers<[2], [2], [1], [1], [0, 0, 0, 1, 1, 1], [0], [0]>} : vector<2x128x32xbf16>, vector<2x128x32xbf16>, vector<2x128x128xf32> -> vector<2x128x128xf32>
    "tpu.trace_stop"() : () -> ()
    %cst_16 = arith.constant dense<0xFF800000> : vector<2x128xf32>
    %48 = vector.multi_reduction <maximumf>, %47, %cst_16 [2] : vector<2x128x128xf32> to vector<2x128xf32>
    %49 = vector.shape_cast %48 : vector<2x128xf32> to vector<2x128x1xf32>
    %50 = vector.broadcast %49 : vector<2x128x1xf32> to vector<2x128x128xf32>
    %51 = arith.subf %47, %50 : vector<2x128x128xf32>
    %52 = math.exp %51 : vector<2x128x128xf32>
    %cst_17 = arith.constant dense<0.000000e+00> : vector<2x128xf32>
    %53 = vector.multi_reduction <add>, %52, %cst_17 [2] : vector<2x128x128xf32> to vector<2x128xf32>
    %54 = vector.shape_cast %53 : vector<2x128xf32> to vector<2x128x1xf32>
    %55 = tpu.reciprocal %54 {approx = true} : vector<2x128x1xf32> -> vector<2x128x1xf32>
    %56 = vector.broadcast %55 : vector<2x128x1xf32> to vector<2x128x128xf32>
    %57 = arith.mulf %52, %56 : vector<2x128x128xf32>
    %58 = arith.truncf %57 : vector<2x128x128xf32> to vector<2x128x128xbf16>
    "tpu.trace_start"() <{level = 10 : i32, message = "bqk,bkd->bqd"}> : () -> ()
    %cst_18 = arith.constant dense<0.000000e+00> : vector<2x128x32xf32>
    %59 = tpu.matmul %58, %46, %cst_18 {dimension_numbers = #tpu.dot_dimension_numbers<[2], [1], [1], [2], [0, 0, 0, 1, 1, 2], [0], [0]>} : vector<2x128x128xbf16>, vector<2x128x32xbf16>, vector<2x128x32xf32> -> vector<2x128x32xf32>
    "tpu.trace_stop"() : () -> ()
    %60 = vector.shape_cast %59 : vector<2x128x32xf32> to vector<256x32xf32>
    %61 = arith.truncf %60 : vector<256x32xf32> to vector<256x32xbf16>
    %c0_19 = arith.constant 0 : index
    %c32 = arith.constant 32 : index
    %62 = vector.load %arg7[%c0_19, %c32] : memref<256x128xbf16, #tpu.memory_space<vmem>>, vector<256x32xbf16>
    tpu.vector_store %arg7[%c0_19, %c32], %61 {strides = array<i32>} : memref<256x128xbf16, #tpu.memory_space<vmem>>, vector<256x32xbf16>,
    %63 = vector.extract_strided_slice %14 {offsets = [0, 64], sizes = [256, 32], strides = [1, 1]} : vector<256x128xbf16> to vector<256x32xbf16>
    %64 = vector.shape_cast %63 : vector<256x32xbf16> to vector<2x128x32xbf16>
    %65 = vector.extract_strided_slice %16 {offsets = [0, 64], sizes = [256, 32], strides = [1, 1]} : vector<256x128xbf16> to vector<256x32xbf16>
    %66 = vector.shape_cast %65 : vector<256x32xbf16> to vector<2x128x32xbf16>
    %67 = vector.extract_strided_slice %18 {offsets = [0, 64], sizes = [256, 32], strides = [1, 1]} : vector<256x128xbf16> to vector<256x32xbf16>
    %68 = vector.shape_cast %67 : vector<256x32xbf16> to vector<2x128x32xbf16>
    "tpu.trace_start"() <{level = 10 : i32, message = "bqd,bkd->bqk"}> : () -> ()
    %cst_20 = arith.constant dense<0.000000e+00> : vector<2x128x128xf32>
    %69 = tpu.matmul %64, %66, %cst_20 {dimension_numbers = #tpu.dot_dimension_numbers<[2], [2], [1], [1], [0, 0, 0, 1, 1, 1], [0], [0]>} : vector<2x128x32xbf16>, vector<2x128x32xbf16>, vector<2x128x128xf32> -> vector<2x128x128xf32>
    "tpu.trace_stop"() : () -> ()
    %cst_21 = arith.constant dense<0xFF800000> : vector<2x128xf32>
    %70 = vector.multi_reduction <maximumf>, %69, %cst_21 [2] : vector<2x128x128xf32> to vector<2x128xf32>
    %71 = vector.shape_cast %70 : vector<2x128xf32> to vector<2x128x1xf32>
    %72 = vector.broadcast %71 : vector<2x128x1xf32> to vector<2x128x128xf32>
    %73 = arith.subf %69, %72 : vector<2x128x128xf32>
    %74 = math.exp %73 : vector<2x128x128xf32>
    %cst_22 = arith.constant dense<0.000000e+00> : vector<2x128xf32>
    %75 = vector.multi_reduction <add>, %74, %cst_22 [2] : vector<2x128x128xf32> to vector<2x128xf32>
    %76 = vector.shape_cast %75 : vector<2x128xf32> to vector<2x128x1xf32>
    %77 = tpu.reciprocal %76 {approx = true} : vector<2x128x1xf32> -> vector<2x128x1xf32>
    %78 = vector.broadcast %77 : vector<2x128x1xf32> to vector<2x128x128xf32>
    %79 = arith.mulf %74, %78 : vector<2x128x128xf32>
    %80 = arith.truncf %79 : vector<2x128x128xf32> to vector<2x128x128xbf16>
    "tpu.trace_start"() <{level = 10 : i32, message = "bqk,bkd->bqd"}> : () -> ()
    %cst_23 = arith.constant dense<0.000000e+00> : vector<2x128x32xf32>
    %81 = tpu.matmul %80, %68, %cst_23 {dimension_numbers = #tpu.dot_dimension_numbers<[2], [1], [1], [2], [0, 0, 0, 1, 1, 2], [0], [0]>} : vector<2x128x128xbf16>, vector<2x128x32xbf16>, vector<2x128x32xf32> -> vector<2x128x32xf32>
    "tpu.trace_stop"() : () -> ()
    %82 = vector.shape_cast %81 : vector<2x128x32xf32> to vector<256x32xf32>
    %83 = arith.truncf %82 : vector<256x32xf32> to vector<256x32xbf16>
    %c0_24 = arith.constant 0 : index
    %c64 = arith.constant 64 : index
    %84 = vector.load %arg7[%c0_24, %c64] : memref<256x128xbf16, #tpu.memory_space<vmem>>, vector<256x32xbf16>
    tpu.vector_store %arg7[%c0_24, %c64], %83 {strides = array<i32>} : memref<256x128xbf16, #tpu.memory_space<vmem>>, vector<256x32xbf16>,
    %85 = vector.extract_strided_slice %14 {offsets = [0, 96], sizes = [256, 32], strides = [1, 1]} : vector<256x128xbf16> to vector<256x32xbf16>
    %86 = vector.shape_cast %85 : vector<256x32xbf16> to vector<2x128x32xbf16>
    %87 = vector.extract_strided_slice %16 {offsets = [0, 96], sizes = [256, 32], strides = [1, 1]} : vector<256x128xbf16> to vector<256x32xbf16>
    %88 = vector.shape_cast %87 : vector<256x32xbf16> to vector<2x128x32xbf16>
    %89 = vector.extract_strided_slice %18 {offsets = [0, 96], sizes = [256, 32], strides = [1, 1]} : vector<256x128xbf16> to vector<256x32xbf16>
    %90 = vector.shape_cast %89 : vector<256x32xbf16> to vector<2x128x32xbf16>
    "tpu.trace_start"() <{level = 10 : i32, message = "bqd,bkd->bqk"}> : () -> ()
    %cst_25 = arith.constant dense<0.000000e+00> : vector<2x128x128xf32>
    %91 = tpu.matmul %86, %88, %cst_25 {dimension_numbers = #tpu.dot_dimension_numbers<[2], [2], [1], [1], [0, 0, 0, 1, 1, 1], [0], [0]>} : vector<2x128x32xbf16>, vector<2x128x32xbf16>, vector<2x128x128xf32> -> vector<2x128x128xf32>
    "tpu.trace_stop"() : () -> ()
    %cst_26 = arith.constant dense<0xFF800000> : vector<2x128xf32>
    %92 = vector.multi_reduction <maximumf>, %91, %cst_26 [2] : vector<2x128x128xf32> to vector<2x128xf32>
    %93 = vector.shape_cast %92 : vector<2x128xf32> to vector<2x128x1xf32>
    %94 = vector.broadcast %93 : vector<2x128x1xf32> to vector<2x128x128xf32>
    %95 = arith.subf %91, %94 : vector<2x128x128xf32>
    %96 = math.exp %95 : vector<2x128x128xf32>
    %cst_27 = arith.constant dense<0.000000e+00> : vector<2x128xf32>
    %97 = vector.multi_reduction <add>, %96, %cst_27 [2] : vector<2x128x128xf32> to vector<2x128xf32>
    %98 = vector.shape_cast %97 : vector<2x128xf32> to vector<2x128x1xf32>
    %99 = tpu.reciprocal %98 {approx = true} : vector<2x128x1xf32> -> vector<2x128x1xf32>
    %100 = vector.broadcast %99 : vector<2x128x1xf32> to vector<2x128x128xf32>
    %101 = arith.mulf %96, %100 : vector<2x128x128xf32>
    %102 = arith.truncf %101 : vector<2x128x128xf32> to vector<2x128x128xbf16>
    "tpu.trace_start"() <{level = 10 : i32, message = "bqk,bkd->bqd"}> : () -> ()
    %cst_28 = arith.constant dense<0.000000e+00> : vector<2x128x32xf32>
    %103 = tpu.matmul %102, %90, %cst_28 {dimension_numbers = #tpu.dot_dimension_numbers<[2], [1], [1], [2], [0, 0, 0, 1, 1, 2], [0], [0]>} : vector<2x128x128xbf16>, vector<2x128x32xbf16>, vector<2x128x32xf32> -> vector<2x128x32xf32>
    "tpu.trace_stop"() : () -> ()
    %104 = vector.shape_cast %103 : vector<2x128x32xf32> to vector<256x32xf32>
    %105 = arith.truncf %104 : vector<256x32xf32> to vector<256x32xbf16>
    %c0_29 = arith.constant 0 : index
    %c96 = arith.constant 96 : index
    %106 = vector.load %arg7[%c0_29, %c96] : memref<256x128xbf16, #tpu.memory_space<vmem>>, vector<256x32xbf16>
    tpu.vector_store %arg7[%c0_29, %c96], %105 {strides = array<i32>} : memref<256x128xbf16, #tpu.memory_space<vmem>>, vector<256x32xbf16>,
    %c0_30 = arith.constant 0 : index
    %c0_31 = arith.constant 0 : index
    %107 = vector.load %arg7[%c0_30, %c0_31] : memref<256x128xbf16, #tpu.memory_space<vmem>>, vector<256x128xbf16>
    %cst_32 = arith.constant dense<0.000000e+00> : vector<256x128xf32>
    %108 = tpu.matmul %107, %6, %cst_32 {dimension_numbers = #tpu.dot_dimension_numbers<[1], [0], [0], [1], [0, 0, 1, 1], [], []>} : vector<256x128xbf16>, vector<128x128xbf16>, vector<256x128xf32> -> vector<256x128xf32>
    %c0_33 = arith.constant 0 : index
    %c0_34 = arith.constant 0 : index
    %109 = vector.load %arg5[%c0_33, %c0_34] : memref<1x128xf32, #tpu.memory_space<vmem>>, vector<1x128xf32>
    %110 = vector.broadcast %109 : vector<1x128xf32> to vector<256x128xf32>
    %111 = arith.addf %108, %110 : vector<256x128xf32>
    %112 = vector.shape_cast %111 : vector<256x128xf32> to vector<2x128x128xf32>
    %c0_35 = arith.constant 0 : index
    %c0_36 = arith.constant 0 : index
    %c0_37 = arith.constant 0 : index
    %113 = vector.load %arg6[%c0_35, %c0_36, %c0_37] : memref<2x128x128xf32, #tpu.memory_space<vmem>>, vector<2x128x128xf32>
    tpu.vector_store %arg6[%c0_35, %c0_36, %c0_37], %112 {strides = array<i32>} : memref<2x128x128xf32, #tpu.memory_space<vmem>>, vector<2x128x128xf32>,
    return
  }
  func.func @transform_0(%arg0: i32) -> (i32, i32, i32) {
    %c0_i32 = arith.constant 0 : i32
    %c0_i32_0 = arith.constant 0 : i32
    %c0_i32_1 = arith.constant 0 : i32
    return %arg0, %c0_i32, %c0_i32_0 : i32, i32, i32
  }
  func.func @transform_1(%arg0: i32) -> (i32, i32) {
    %c0_i32 = arith.constant 0 : i32
    %c0_i32_0 = arith.constant 0 : i32
    %c0_i32_1 = arith.constant 0 : i32
    return %c0_i32, %c0_i32_0 : i32, i32
  }
  func.func @transform_2(%arg0: i32) -> (i32, i32) {
    %c0_i32 = arith.constant 0 : i32
    %c0_i32_0 = arith.constant 0 : i32
    %c0_i32_1 = arith.constant 0 : i32
    return %c0_i32, %c0_i32_0 : i32, i32
  }
  func.func @transform_3(%arg0: i32) -> (i32, i32) {
    %c0_i32 = arith.constant 0 : i32
    %c0_i32_0 = arith.constant 0 : i32
    %c0_i32_1 = arith.constant 0 : i32
    return %c0_i32, %c0_i32_0 : i32, i32
  }
  func.func @transform_4(%arg0: i32) -> (i32, i32) {
    %c0_i32 = arith.constant 0 : i32
    %c0_i32_0 = arith.constant 0 : i32
    %c0_i32_1 = arith.constant 0 : i32
    return %c0_i32, %c0_i32_0 : i32, i32
  }
  func.func @transform_5(%arg0: i32) -> (i32, i32, i32) {
    %c0_i32 = arith.constant 0 : i32
    %c0_i32_0 = arith.constant 0 : i32
    %c0_i32_1 = arith.constant 0 : i32
    return %arg0, %c0_i32, %c0_i32_0 : i32, i32, i32
  }
}

</mosaic_0001>

<llo_original>
// kernel: tpu_custom_call.1
$region0: #{tpu_custom_call.1}
  #allocation0 [shape = 'u32[]', space=smem, size = 0x4, offset = 0x4, fixed_abs, tag = 'smem constant byte address 0x4 - core index']
  #allocation1 [shape = 'u32[144,128]{1,0:T(1,128)}', space=vmem, size = 0x12000, scoped, tag = 'internal scratch']
  #allocation2 [shape = 'bf16[256,128]{1,0:T(8,128)(2,1)}', space=vmem, size = 0x10000, scoped, tag = 'scratch operand']
  %s0 = inlined_call_operand.hbm [shape: f32[2,128,128], index: 0, kind: input, shape index: {}]
  %s1 = inlined_call_operand.hbm [shape: f32[128,384], index: 1, kind: input, shape index: {}]
  %s2 = inlined_call_operand.vmem [shape: f32[1,384], index: 2, kind: input, shape index: {}]
  %s3 = inlined_call_operand.hbm [shape: f32[128,128], index: 3, kind: input, shape index: {}]
  %s4 = inlined_call_operand.vmem [shape: f32[1,128], index: 4, kind: input, shape index: {}]
  %s5 = inlined_call_operand.hbm [shape: f32[2,128,128], index: 5, kind: output, shape index: {}]
  %s6 = sld [smem:[#allocation0]]
  $region42: #{tpu_custom_call.1} parent=0
    _
  %s8 = ssub.s32 1, %s6
  %s9 = scalar_select 0, %s8, %s6
  $region1: #{tpu_custom_call.1} parent=0
    #allocation3 [shape = 'u8[131072]{0}', space=vmem, size = 0x20000, scoped, tag = 'input window, operand 0, single buffered']
    #allocation4 [shape = 's32[1]{0}', space=sflag, size = 0x4, scoped, tag = 'scoped memory for tpu_custom_call.1']
    #allocation5 [shape = 's32[1]{0}', space=sflag, size = 0x4, scoped, tag = 'scoped memory for tpu_custom_call.1']
    #allocation6 [shape = 'u8[196608]{0}', space=vmem, size = 0x30000, scoped, tag = 'input window, operand 1, single buffered']
    #allocation7 [shape = 's32[1]{0}', space=sflag, size = 0x4, scoped, tag = 'scoped memory for tpu_custom_call.1']
    #allocation8 [shape = 'u8[65536]{0}', space=vmem, size = 0x10000, scoped, tag = 'input window, operand 3, single buffered']
    #allocation9 [shape = 'u8[131072]{0}', space=vmem, size = 0x20000, scoped, tag = 'output window, operand 0, single buffered']
    %10 = vsyncpa [#allocation4], 0
    %11 = vsyncpa [#allocation7], 0
    %12 = vsyncpa [#allocation5], 0
    // Predicated region
    $region2: #{tpu_custom_call.1} parent=1 // pred_check
      _
    $region3: #{tpu_custom_call.1} parent=1 // pred_check_branch
      %14 = sbr.rel (0) target = $region5
    $region4: #{tpu_custom_call.1} parent=1 // pred_region
      %s16 = ssub.s32 4096, 4096
      %17 = vsyncadd [#allocation4], %s16
      %s18 = sshll.u32 [#allocation3], 4
      %s19 = int_to_ptr.vmem [resolvable:$true] %s18
      %24 = dma.hbm_to_vmem [thread:$0]  %s0, 4096, %s19, [#allocation4], 128, 128, 8
    $region5: #{tpu_custom_call.1} parent=1 // pred_fallthru
      _
    // Predicated region
    $region6: #{tpu_custom_call.1} parent=1 // pred_check
      _
    $region7: #{tpu_custom_call.1} parent=1 // pred_check_branch
      %26 = sbr.rel (0) target = $region9
    $region8: #{tpu_custom_call.1} parent=1 // pred_region
      %s28 = ssub.s32 6144, 6144
      %29 = vsyncadd [#allocation7], %s28
      %s30 = sshll.u32 [#allocation6], 4
      %s31 = int_to_ptr.vmem [resolvable:$true] %s30
      %36 = dma.hbm_to_vmem [thread:$0]  %s1, 6144, %s31, [#allocation7], 384, 384, 24
    $region9: #{tpu_custom_call.1} parent=1 // pred_fallthru
      _
    // Predicated region
    $region10: #{tpu_custom_call.1} parent=1 // pred_check
      _
    $region11: #{tpu_custom_call.1} parent=1 // pred_check_branch
      %38 = sbr.rel (0) target = $region13
    $region12: #{tpu_custom_call.1} parent=1 // pred_region
      _
    $region13: #{tpu_custom_call.1} parent=1 // pred_fallthru
      _
    // Predicated region
    $region14: #{tpu_custom_call.1} parent=1 // pred_check
      _
    $region15: #{tpu_custom_call.1} parent=1 // pred_check_branch
      %40 = sbr.rel (0) target = $region17
    $region16: #{tpu_custom_call.1} parent=1 // pred_region
      %s42 = ssub.s32 2048, 2048
      %43 = vsyncadd [#allocation7], %s42
      %s44 = sshll.u32 [#allocation8], 4
      %s45 = int_to_ptr.vmem [resolvable:$true] %s44
      %50 = dma.hbm_to_vmem [thread:$0]  %s3, 2048, %s45, [#allocation7], 128, 128, 8
    $region17: #{tpu_custom_call.1} parent=1 // pred_fallthru
      _
    // Predicated region
    $region18: #{tpu_custom_call.1} parent=1 // pred_check
      _
    $region19: #{tpu_custom_call.1} parent=1 // pred_check_branch
      %52 = sbr.rel (0) target = $region21
    $region20: #{tpu_custom_call.1} parent=1 // pred_region
      _
    $region21: #{tpu_custom_call.1} parent=1 // pred_fallthru
      _
    // Predicated region
    $region22: #{tpu_custom_call.1} parent=1 // pred_check
      _
    $region23: #{tpu_custom_call.1} parent=1 // pred_check_branch
      %54 = sbr.rel (0) target = $region25
    $region24: #{tpu_custom_call.1} parent=1 // pred_region
      %55 = dma.done [#allocation4], 4096
    $region25: #{tpu_custom_call.1} parent=1 // pred_fallthru
      _
    // Predicated region
    $region26: #{tpu_custom_call.1} parent=1 // pred_check
      _
    $region27: #{tpu_custom_call.1} parent=1 // pred_check_branch
      %57 = sbr.rel (0) target = $region29
    $region28: #{tpu_custom_call.1} parent=1 // pred_region
      %58 = dma.done [#allocation7], 6144
    $region29: #{tpu_custom_call.1} parent=1 // pred_fallthru
      _
    // Predicated region
    $region30: #{tpu_custom_call.1} parent=1 // pred_check
      _
    $region31: #{tpu_custom_call.1} parent=1 // pred_check_branch
      %60 = sbr.rel (0) target = $region33
    $region32: #{tpu_custom_call.1} parent=1 // pred_region
      %61 = dma.done [#allocation7], 2048
    $region33: #{tpu_custom_call.1} parent=1 // pred_fallthru
      _
    %v63 = vld [vmem:[#allocation3] sm:$0xff]
    %v64 = vld [vmem:[#allocation3 + $0x8] sm:$0xff]
    %v65 = vld [vmem:[#allocation3 + $0x10] sm:$0xff]
    %v66 = vld [vmem:[#allocation3 + $0x18] sm:$0xff]
    %v67 = vld [vmem:[#allocation3 + $0x20] sm:$0xff]
    %v68 = vld [vmem:[#allocation3 + $0x28] sm:$0xff]
    %v69 = vld [vmem:[#allocation3 + $0x30] sm:$0xff]
    %v70 = vld [vmem:[#allocation3 + $0x38] sm:$0xff]
    %v71 = vld [vmem:[#allocation3 + $0x40] sm:$0xff]
    %v72 = vld [vmem:[#allocation3 + $0x48] sm:$0xff]
    %v73 = vld [vmem:[#allocation3 + $0x50] sm:$0xff]
    %v74 = vld [vmem:[#allocation3 + $0x58] sm:$0xff]
    %v75 = vld [vmem:[#allocation3 + $0x60] sm:$0xff]
    %v76 = vld [vmem:[#allocation3 + $0x68] sm:$0xff]
    %v77 = vld [vmem:[#allocation3 + $0x70] sm:$0xff]
    %v78 = vld [vmem:[#allocation3 + $0x78] sm:$0xff]
    %v79 = vld [vmem:[#allocation3 + $0x80] sm:$0xff]
    %v80 = vld [vmem:[#allocation3 + $0x88] sm:$0xff]
    %v81 = vld [vmem:[#allocation3 + $0x90] sm:$0xff]
    %v82 = vld [vmem:[#allocation3 + $0x98] sm:$0xff]
    %v83 = vld [vmem:[#allocation3 + $0xa0] sm:$0xff]
    %v84 = vld [vmem:[#allocation3 + $0xa8] sm:$0xff]
    %v85 = vld [vmem:[#allocation3 + $0xb0] sm:$0xff]
    %v86 = vld [vmem:[#allocation3 + $0xb8] sm:$0xff]
    %v87 = vld [vmem:[#allocation3 + $0xc0] sm:$0xff]
    %v88 = vld [vmem:[#allocation3 + $0xc8] sm:$0xff]
    %v89 = vld [vmem:[#allocation3 + $0xd0] sm:$0xff]
    %v90 = vld [vmem:[#allocation3 + $0xd8] sm:$0xff]
    %v91 = vld [vmem:[#allocation3 + $0xe0] sm:$0xff]
    %v92 = vld [vmem:[#allocation3 + $0xe8] sm:$0xff]
    %v93 = vld [vmem:[#allocation3 + $0xf0] sm:$0xff]
    %v94 = vld [vmem:[#allocation3 + $0xf8] sm:$0xff]
    %v95 = vpack.c.bf16 %v64, %v63
    %v96 = vpack.c.bf16 %v66, %v65
    %v97 = vpack.c.bf16 %v68, %v67
    %v98 = vpack.c.bf16 %v70, %v69
    %v99 = vpack.c.bf16 %v72, %v71
    %v100 = vpack.c.bf16 %v74, %v73
    %v101 = vpack.c.bf16 %v76, %v75
    %v102 = vpack.c.bf16 %v78, %v77
    %v103 = vpack.c.bf16 %v80, %v79
    %v104 = vpack.c.bf16 %v82, %v81
    %v105 = vpack.c.bf16 %v84, %v83
    %v106 = vpack.c.bf16 %v86, %v85
    %v107 = vpack.c.bf16 %v88, %v87
    %v108 = vpack.c.bf16 %v90, %v89
    %v109 = vpack.c.bf16 %v92, %v91
    %v110 = vpack.c.bf16 %v94, %v93
    %v111 = vld [vmem:[#allocation6] sm:$0xff]
    %v112 = vld [vmem:[#allocation6 + $0x8] sm:$0xff]
    %v113 = vld [vmem:[#allocation6 + $0x10] sm:$0xff]
    %v114 = vld [vmem:[#allocation6 + $0x18] sm:$0xff]
    %v115 = vld [vmem:[#allocation6 + $0x20] sm:$0xff]
    %v116 = vld [vmem:[#allocation6 + $0x28] sm:$0xff]
    %v117 = vld [vmem:[#allocation6 + $0x30] sm:$0xff]
    %v118 = vld [vmem:[#allocation6 + $0x38] sm:$0xff]
    %v119 = vld [vmem:[#allocation6 + $0x40] sm:$0xff]
    %v120 = vld [vmem:[#allocation6 + $0x48] sm:$0xff]
    %v121 = vld [vmem:[#allocation6 + $0x50] sm:$0xff]
    %v122 = vld [vmem:[#allocation6 + $0x58] sm:$0xff]
    %v123 = vld [vmem:[#allocation6 + $0x60] sm:$0xff]
    %v124 = vld [vmem:[#allocation6 + $0x68] sm:$0xff]
    %v125 = vld [vmem:[#allocation6 + $0x70] sm:$0xff]
    %v126 = vld [vmem:[#allocation6 + $0x78] sm:$0xff]
    %v127 = vld [vmem:[#allocation6 + $0x80] sm:$0xff]
    %v128 = vld [vmem:[#allocation6 + $0x88] sm:$0xff]
    %v129 = vld [vmem:[#allocation6 + $0x90] sm:$0xff]
    %v130 = vld [vmem:[#allocation6 + $0x98] sm:$0xff]
    %v131 = vld [vmem:[#allocation6 + $0xa0] sm:$0xff]
    %v132 = vld [vmem:[#allocation6 + $0xa8] sm:$0xff]
    %v133 = vld [vmem:[#allocation6 + $0xb0] sm:$0xff]
    %v134 = vld [vmem:[#allocation6 + $0xb8] sm:$0xff]
    %v135 = vld [vmem:[#allocation6 + $0xc0] sm:$0xff]
    %v136 = vld [vmem:[#allocation6 + $0xc8] sm:$0xff]
    %v137 = vld [vmem:[#allocation6 + $0xd0] sm:$0xff]
    %v138 = vld [vmem:[#allocation6 + $0xd8] sm:$0xff]
    %v139 = vld [vmem:[#allocation6 + $0xe0] sm:$0xff]
    %v140 = vld [vmem:[#allocation6 + $0xe8] sm:$0xff]
    %v141 = vld [vmem:[#allocation6 + $0xf0] sm:$0xff]
    %v142 = vld [vmem:[#allocation6 + $0xf8] sm:$0xff]
    %v143 = vld [vmem:[#allocation6 + $0x100] sm:$0xff]
    %v144 = vld [vmem:[#allocation6 + $0x108] sm:$0xff]
    %v145 = vld [vmem:[#allocation6 + $0x110] sm:$0xff]
    %v146 = vld [vmem:[#allocation6 + $0x118] sm:$0xff]
    %v147 = vld [vmem:[#allocation6 + $0x120] sm:$0xff]
    %v148 = vld [vmem:[#allocation6 + $0x128] sm:$0xff]
    %v149 = vld [vmem:[#allocation6 + $0x130] sm:$0xff]
    %v150 = vld [vmem:[#allocation6 + $0x138] sm:$0xff]
    %v151 = vld [vmem:[#allocation6 + $0x140] sm:$0xff]
    %v152 = vld [vmem:[#allocation6 + $0x148] sm:$0xff]
    %v153 = vld [vmem:[#allocation6 + $0x150] sm:$0xff]
    %v154 = vld [vmem:[#allocation6 + $0x158] sm:$0xff]
    %v155 = vld [vmem:[#allocation6 + $0x160] sm:$0xff]
    %v156 = vld [vmem:[#allocation6 + $0x168] sm:$0xff]
    %v157 = vld [vmem:[#allocation6 + $0x170] sm:$0xff]
    %v158 = vld [vmem:[#allocation6 + $0x178] sm:$0xff]
    %v159 = vpack.c.bf16 %v114, %v111
    %v160 = vpack.c.bf16 %v115, %v112
    %v161 = vpack.c.bf16 %v116, %v113
    %v162 = vpack.c.bf16 %v120, %v117
    %v163 = vpack.c.bf16 %v121, %v118
    %v164 = vpack.c.bf16 %v122, %v119
    %v165 = vpack.c.bf16 %v126, %v123
    %v166 = vpack.c.bf16 %v127, %v124
    %v167 = vpack.c.bf16 %v128, %v125
    %v168 = vpack.c.bf16 %v132, %v129
    %v169 = vpack.c.bf16 %v133, %v130
    %v170 = vpack.c.bf16 %v134, %v131
    %v171 = vpack.c.bf16 %v138, %v135
    %v172 = vpack.c.bf16 %v139, %v136
    %v173 = vpack.c.bf16 %v140, %v137
    %v174 = vpack.c.bf16 %v144, %v141
    %v175 = vpack.c.bf16 %v145, %v142
    %v176 = vpack.c.bf16 %v146, %v143
    %v177 = vpack.c.bf16 %v150, %v147
    %v178 = vpack.c.bf16 %v151, %v148
    %v179 = vpack.c.bf16 %v152, %v149
    %v180 = vpack.c.bf16 %v156, %v153
    %v181 = vpack.c.bf16 %v157, %v154
    %v182 = vpack.c.bf16 %v158, %v155
    %v183 = vld [vmem:[#allocation8] sm:$0xff]
    %v184 = vld [vmem:[#allocation8 + $0x8] sm:$0xff]
    %v185 = vld [vmem:[#allocation8 + $0x10] sm:$0xff]
    %v186 = vld [vmem:[#allocation8 + $0x18] sm:$0xff]
    %v187 = vld [vmem:[#allocation8 + $0x20] sm:$0xff]
    %v188 = vld [vmem:[#allocation8 + $0x28] sm:$0xff]
    %v189 = vld [vmem:[#allocation8 + $0x30] sm:$0xff]
    %v190 = vld [vmem:[#allocation8 + $0x38] sm:$0xff]
    %v191 = vld [vmem:[#allocation8 + $0x40] sm:$0xff]
    %v192 = vld [vmem:[#allocation8 + $0x48] sm:$0xff]
    %v193 = vld [vmem:[#allocation8 + $0x50] sm:$0xff]
    %v194 = vld [vmem:[#allocation8 + $0x58] sm:$0xff]
    %v195 = vld [vmem:[#allocation8 + $0x60] sm:$0xff]
    %v196 = vld [vmem:[#allocation8 + $0x68] sm:$0xff]
    %v197 = vld [vmem:[#allocation8 + $0x70] sm:$0xff]
    %v198 = vld [vmem:[#allocation8 + $0x78] sm:$0xff]
    %v199 = vpack.c.bf16 %v184, %v183
    %v200 = vpack.c.bf16 %v186, %v185
    %v201 = vpack.c.bf16 %v188, %v187
    %v202 = vpack.c.bf16 %v190, %v189
    %v203 = vpack.c.bf16 %v192, %v191
    %v204 = vpack.c.bf16 %v194, %v193
    %v205 = vpack.c.bf16 %v196, %v195
    %v206 = vpack.c.bf16 %v198, %v197
    %v207 = vld [vmem:[%s2] sm:$0x7]
    %v209 = vlaneseq
    %v210 = vshrl.u32 %v209, 7
    %v211 = vsub.s32 0, %v210
    %v212 = vrot.slane %v207, %v211
    %v213 = vlaneseq
    %v214 = vshrl.u32 %v213, 7
    %v215 = vsub.s32 1, %v214
    %v216 = vrot.slane %v207, %v215
    %v217 = vlaneseq
    %v218 = vshrl.u32 %v217, 7
    %v219 = vsub.s32 2, %v218
    %v220 = vrot.slane %v207, %v219
    %224 = vmatprep.subr.bf16.mxu0 %v181
    %225 = vmatpush1.bf16.msra.mxu0 %v180
    %226 = vmatprep.subr.bf16.mxu0 %v178
    %227 = vmatpush1.bf16.msra.mxu0 %v177
    %228 = vmatprep.subr.bf16.mxu0 %v175
    %229 = vmatpush1.bf16.msra.mxu0 %v174
    %230 = vmatprep.subr.bf16.mxu0 %v172
    %231 = vmatpush1.bf16.msra.mxu0 %v171
    %232 = vmatprep.subr.bf16.mxu0 %v169
    %233 = vmatpush1.bf16.msra.mxu0 %v168
    %234 = vmatprep.subr.bf16.mxu0 %v166
    %235 = vmatpush1.bf16.msra.mxu0 %v165
    %236 = vmatprep.subr.bf16.mxu0 %v163
    %237 = vmatpush1.bf16.msra.mxu0 %v162
    %238 = vmatprep.subr.bf16.mxu0 %v160
    %239 = vmatpush1.bf16.msra.mxu0 %v159
    %240 = vmatprep.subr.bf16.mxu0 0
    %241 = vmatpush2.bf16.msra.mxu0 0
    %242 = vmatprep.subr.bf16.mxu0 0
    %243 = vmatpush2.bf16.msra.mxu0 0
    %244 = vmatprep.subr.bf16.mxu0 0
    %245 = vmatpush2.bf16.msra.mxu0 0
    %246 = vmatprep.subr.bf16.mxu0 0
    %247 = vmatpush2.bf16.msra.mxu0 0
    %248 = vmatprep.subr.bf16.mxu0 0
    %249 = vmatpush2.bf16.msra.mxu0 0
    %250 = vmatprep.subr.bf16.mxu0 0
    %251 = vmatpush2.bf16.msra.mxu0 0
    %252 = vmatprep.subr.bf16.mxu0 0
    %253 = vmatpush2.bf16.msra.mxu0 0
    %254 = vmatprep.subr.bf16.mxu0 0
    %255 = vmatpush2.bf16.msra.mxu0 0
    %256 = vmatprep.mubr.bf16.mxu0 0
    %257 = vmatmul.mubr.bf16.gmra.mxu0 %v95
    %v258 = vpop.f32.mrf.mxu0
    %v259 = vadd.f32 %v212, %v258
    %v260 = vpop.f32.mrf.mxu0
    %v261 = vadd.f32 %v216, %v260
    %v262 = vpop.f32.mrf.mxu0
    %v263 = vadd.f32 %v212, %v262
    %v264 = vpop.f32.mrf.mxu0
    %v265 = vadd.f32 %v216, %v264
    %266 = vmatprep.mubr.bf16.mxu0 0
    %267 = vmatmul.mubr.bf16.gmra.mxu0 %v96
    %v268 = vpop.f32.mrf.mxu0
    %v269 = vadd.f32 %v212, %v268
    %v270 = vpop.f32.mrf.mxu0
    %v271 = vadd.f32 %v216, %v270
    %v272 = vpop.f32.mrf.mxu0
    %v273 = vadd.f32 %v212, %v272
    %v274 = vpop.f32.mrf.mxu0
    %v275 = vadd.f32 %v216, %v274
    %276 = vmatprep.mubr.bf16.mxu0 0
    %277 = vmatmul.mubr.bf16.gmra.mxu0 %v97
    %v278 = vpop.f32.mrf.mxu0
    %v279 = vadd.f32 %v212, %v278
    %v280 = vpop.f32.mrf.mxu0
    %v281 = vadd.f32 %v216, %v280
    %v282 = vpop.f32.mrf.mxu0
    %v283 = vadd.f32 %v212, %v282
    %v284 = vpop.f32.mrf.mxu0
    %v285 = vadd.f32 %v216, %v284
    %286 = vmatprep.mubr.bf16.mxu0 0
    %287 = vmatmul.mubr.bf16.gmra.mxu0 %v98
    %v288 = vpop.f32.mrf.mxu0
    %v289 = vadd.f32 %v212, %v288
    %v290 = vpop.f32.mrf.mxu0
    %v291 = vadd.f32 %v216, %v290
    %v292 = vpop.f32.mrf.mxu0
    %v293 = vadd.f32 %v212, %v292
    %v294 = vpop.f32.mrf.mxu0
    %v295 = vadd.f32 %v216, %v294
    %296 = vmatprep.mubr.bf16.mxu0 0
    %297 = vmatmul.mubr.bf16.gmra.mxu0 %v99
    %v298 = vpop.f32.mrf.mxu0
    %v299 = vadd.f32 %v212, %v298
    %v300 = vpop.f32.mrf.mxu0
    %v301 = vadd.f32 %v216, %v300
    %v302 = vpop.f32.mrf.mxu0
    %v303 = vadd.f32 %v212, %v302
    %v304 = vpop.f32.mrf.mxu0
    %v305 = vadd.f32 %v216, %v304
    %306 = vmatprep.mubr.bf16.mxu0 0
    %307 = vmatmul.mubr.bf16.gmra.mxu0 %v100
    %v308 = vpop.f32.mrf.mxu0
    %v309 = vadd.f32 %v212, %v308
    %v310 = vpop.f32.mrf.mxu0
    %v311 = vadd.f32 %v216, %v310
    %v312 = vpop.f32.mrf.mxu0
    %v313 = vadd.f32 %v212, %v312
    %v314 = vpop.f32.mrf.mxu0
    %v315 = vadd.f32 %v216, %v314
    %316 = vmatprep.mubr.bf16.mxu0 0
    %317 = vmatmul.mubr.bf16.gmra.mxu0 %v101
    %v318 = vpop.f32.mrf.mxu0
    %v319 = vadd.f32 %v212, %v318
    %v320 = vpop.f32.mrf.mxu0
    %v321 = vadd.f32 %v216, %v320
    %v322 = vpop.f32.mrf.mxu0
    %v323 = vadd.f32 %v212, %v322
    %v324 = vpop.f32.mrf.mxu0
    %v325 = vadd.f32 %v216, %v324
    %326 = vmatprep.mubr.bf16.mxu0 0
    %327 = vmatmul.mubr.bf16.gmra.mxu0 %v102
    %v328 = vpop.f32.mrf.mxu0
    %v329 = vadd.f32 %v212, %v328
    %v330 = vpop.f32.mrf.mxu0
    %v331 = vadd.f32 %v216, %v330
    %v332 = vpop.f32.mrf.mxu0
    %v333 = vadd.f32 %v212, %v332
    %v334 = vpop.f32.mrf.mxu0
    %v335 = vadd.f32 %v216, %v334
    %336 = vmatprep.mubr.bf16.mxu0 0
    %337 = vmatmul.mubr.bf16.gmra.mxu0 %v103
    %v338 = vpop.f32.mrf.mxu0
    %v339 = vadd.f32 %v212, %v338
    %v340 = vpop.f32.mrf.mxu0
    %v341 = vadd.f32 %v216, %v340
    %v342 = vpop.f32.mrf.mxu0
    %v343 = vadd.f32 %v212, %v342
    %v344 = vpop.f32.mrf.mxu0
    %v345 = vadd.f32 %v216, %v344
    %346 = vmatprep.mubr.bf16.mxu0 0
    %347 = vmatmul.mubr.bf16.gmra.mxu0 %v104
    %v348 = vpop.f32.mrf.mxu0
    %v349 = vadd.f32 %v212, %v348
    %v350 = vpop.f32.mrf.mxu0
    %v351 = vadd.f32 %v216, %v350
    %v352 = vpop.f32.mrf.mxu0
    %v353 = vadd.f32 %v212, %v352
    %v354 = vpop.f32.mrf.mxu0
    %v355 = vadd.f32 %v216, %v354
    %356 = vmatprep.mubr.bf16.mxu0 0
    %357 = vmatmul.mubr.bf16.gmra.mxu0 %v105
    %v358 = vpop.f32.mrf.mxu0
    %v359 = vadd.f32 %v212, %v358
    %v360 = vpop.f32.mrf.mxu0
    %v361 = vadd.f32 %v216, %v360
    %v362 = vpop.f32.mrf.mxu0
    %v363 = vadd.f32 %v212, %v362
    %v364 = vpop.f32.mrf.mxu0
    %v365 = vadd.f32 %v216, %v364
    %366 = vmatprep.mubr.bf16.mxu0 0
    %367 = vmatmul.mubr.bf16.gmra.mxu0 %v106
    %v368 = vpop.f32.mrf.mxu0
    %v369 = vadd.f32 %v212, %v368
    %v370 = vpop.f32.mrf.mxu0
    %v371 = vadd.f32 %v216, %v370
    %v372 = vpop.f32.mrf.mxu0
    %v373 = vadd.f32 %v212, %v372
    %v374 = vpop.f32.mrf.mxu0
    %v375 = vadd.f32 %v216, %v374
    %376 = vmatprep.mubr.bf16.mxu0 0
    %377 = vmatmul.mubr.bf16.gmra.mxu0 %v107
    %v378 = vpop.f32.mrf.mxu0
    %v379 = vadd.f32 %v212, %v378
    %v380 = vpop.f32.mrf.mxu0
    %v381 = vadd.f32 %v216, %v380
    %v382 = vpop.f32.mrf.mxu0
    %v383 = vadd.f32 %v212, %v382
    %v384 = vpop.f32.mrf.mxu0
    %v385 = vadd.f32 %v216, %v384
    %386 = vmatprep.mubr.bf16.mxu0 0
    %387 = vmatmul.mubr.bf16.gmra.mxu0 %v108
    %v388 = vpop.f32.mrf.mxu0
    %v389 = vadd.f32 %v212, %v388
    %v390 = vpop.f32.mrf.mxu0
    %v391 = vadd.f32 %v216, %v390
    %v392 = vpop.f32.mrf.mxu0
    %v393 = vadd.f32 %v212, %v392
    %v394 = vpop.f32.mrf.mxu0
    %v395 = vadd.f32 %v216, %v394
    %396 = vmatprep.mubr.bf16.mxu0 0
    %397 = vmatmul.mubr.bf16.gmra.mxu0 %v109
    %v398 = vpop.f32.mrf.mxu0
    %v399 = vadd.f32 %v212, %v398
    %v400 = vpop.f32.mrf.mxu0
    %v401 = vadd.f32 %v216, %v400
    %v402 = vpop.f32.mrf.mxu0
    %v403 = vadd.f32 %v212, %v402
    %v404 = vpop.f32.mrf.mxu0
    %v405 = vadd.f32 %v216, %v404
    %406 = vmatprep.mubr.bf16.mxu0 0
    %407 = vmatmul.mubr.bf16.gmra.mxu0 %v110
    %v408 = vpop.f32.mrf.mxu0
    %v409 = vadd.f32 %v212, %v408
    %v410 = vpop.f32.mrf.mxu0
    %v411 = vadd.f32 %v216, %v410
    %v412 = vpop.f32.mrf.mxu0
    %v413 = vadd.f32 %v212, %v412
    %v414 = vpop.f32.mrf.mxu0
    %v415 = vadd.f32 %v216, %v414
    %416 = vdwg.mxu0
    %417 = vmatprep.subr.bf16.mxu0 0
    %418 = vmatpush1.bf16.msra.mxu0 %v182
    %419 = vmatprep.subr.bf16.mxu0 0
    %420 = vmatpush1.bf16.msra.mxu0 %v179
    %421 = vmatprep.subr.bf16.mxu0 0
    %422 = vmatpush1.bf16.msra.mxu0 %v176
    %423 = vmatprep.subr.bf16.mxu0 0
    %424 = vmatpush1.bf16.msra.mxu0 %v173
    %425 = vmatprep.subr.bf16.mxu0 0
    %426 = vmatpush1.bf16.msra.mxu0 %v170
    %427 = vmatprep.subr.bf16.mxu0 0
    %428 = vmatpush1.bf16.msra.mxu0 %v167
    %429 = vmatprep.subr.bf16.mxu0 0
    %430 = vmatpush1.bf16.msra.mxu0 %v164
    %431 = vmatprep.subr.bf16.mxu0 0
    %432 = vmatpush1.bf16.msra.mxu0 %v161
    %433 = vmatprep.subr.bf16.mxu0 0
    %434 = vmatpush2.bf16.msra.mxu0 0
    %435 = vmatprep.subr.bf16.mxu0 0
    %436 = vmatpush2.bf16.msra.mxu0 0
    %437 = vmatprep.subr.bf16.mxu0 0
    %438 = vmatpush2.bf16.msra.mxu0 0
    %439 = vmatprep.subr.bf16.mxu0 0
    %440 = vmatpush2.bf16.msra.mxu0 0
    %441 = vmatprep.subr.bf16.mxu0 0
    %442 = vmatpush2.bf16.msra.mxu0 0
    %443 = vmatprep.subr.bf16.mxu0 0
    %444 = vmatpush2.bf16.msra.mxu0 0
    %445 = vmatprep.subr.bf16.mxu0 0
    %446 = vmatpush2.bf16.msra.mxu0 0
    %447 = vmatprep.subr.bf16.mxu0 0
    %448 = vmatpush2.bf16.msra.mxu0 0
    %449 = vmatprep.mubr.bf16.mxu0 0
    %450 = vmatmul.mubr.bf16.gmra.mxu0 %v95
    %v451 = vpop.f32.mrf.mxu0
    %v452 = vadd.f32 %v220, %v451
    %v453 = vpop.f32.mrf.mxu0
    %v454 = vpop.f32.mrf.mxu0
    %v455 = vadd.f32 %v220, %v454
    %v456 = vpop.f32.mrf.mxu0
    %457 = vmatprep.mubr.bf16.mxu0 0
    %458 = vmatmul.mubr.bf16.gmra.mxu0 %v96
    %v459 = vpop.f32.mrf.mxu0
    %v460 = vadd.f32 %v220, %v459
    %v461 = vpop.f32.mrf.mxu0
    %v462 = vpop.f32.mrf.mxu0
    %v463 = vadd.f32 %v220, %v462
    %v464 = vpop.f32.mrf.mxu0
    %465 = vmatprep.mubr.bf16.mxu0 0
    %466 = vmatmul.mubr.bf16.gmra.mxu0 %v97
    %v467 = vpop.f32.mrf.mxu0
    %v468 = vadd.f32 %v220, %v467
    %v469 = vpop.f32.mrf.mxu0
    %v470 = vpop.f32.mrf.mxu0
    %v471 = vadd.f32 %v220, %v470
    %v472 = vpop.f32.mrf.mxu0
    %473 = vmatprep.mubr.bf16.mxu0 0
    %474 = vmatmul.mubr.bf16.gmra.mxu0 %v98
    %v475 = vpop.f32.mrf.mxu0
    %v476 = vadd.f32 %v220, %v475
    %v477 = vpop.f32.mrf.mxu0
    %v478 = vpop.f32.mrf.mxu0
    %v479 = vadd.f32 %v220, %v478
    %v480 = vpop.f32.mrf.mxu0
    %481 = vmatprep.mubr.bf16.mxu0 0
    %482 = vmatmul.mubr.bf16.gmra.mxu0 %v99
    %v483 = vpop.f32.mrf.mxu0
    %v484 = vadd.f32 %v220, %v483
    %v485 = vpop.f32.mrf.mxu0
    %v486 = vpop.f32.mrf.mxu0
    %v487 = vadd.f32 %v220, %v486
    %v488 = vpop.f32.mrf.mxu0
    %489 = vmatprep.mubr.bf16.mxu0 0
    %490 = vmatmul.mubr.bf16.gmra.mxu0 %v100
    %v491 = vpop.f32.mrf.mxu0
    %v492 = vadd.f32 %v220, %v491
    %v493 = vpop.f32.mrf.mxu0
    %v494 = vpop.f32.mrf.mxu0
    %v495 = vadd.f32 %v220, %v494
    %v496 = vpop.f32.mrf.mxu0
    %497 = vmatprep.mubr.bf16.mxu0 0
    %498 = vmatmul.mubr.bf16.gmra.mxu0 %v101
    %v499 = vpop.f32.mrf.mxu0
    %v500 = vadd.f32 %v220, %v499
    %v501 = vpop.f32.mrf.mxu0
    %v502 = vpop.f32.mrf.mxu0
    %v503 = vadd.f32 %v220, %v502
    %v504 = vpop.f32.mrf.mxu0
    %505 = vmatprep.mubr.bf16.mxu0 0
    %506 = vmatmul.mubr.bf16.gmra.mxu0 %v102
    %v507 = vpop.f32.mrf.mxu0
    %v508 = vadd.f32 %v220, %v507
    %v509 = vpop.f32.mrf.mxu0
    %v510 = vpop.f32.mrf.mxu0
    %v511 = vadd.f32 %v220, %v510
    %v512 = vpop.f32.mrf.mxu0
    %513 = vmatprep.mubr.bf16.mxu0 0
    %514 = vmatmul.mubr.bf16.gmra.mxu0 %v103
    %v515 = vpop.f32.mrf.mxu0
    %v516 = vadd.f32 %v220, %v515
    %v517 = vpop.f32.mrf.mxu0
    %v518 = vpop.f32.mrf.mxu0
    %v519 = vadd.f32 %v220, %v518
    %v520 = vpop.f32.mrf.mxu0
    %521 = vmatprep.mubr.bf16.mxu0 0
    %522 = vmatmul.mubr.bf16.gmra.mxu0 %v104
    %v523 = vpop.f32.mrf.mxu0
    %v524 = vadd.f32 %v220, %v523
    %v525 = vpop.f32.mrf.mxu0
    %v526 = vpop.f32.mrf.mxu0
    %v527 = vadd.f32 %v220, %v526
    %v528 = vpop.f32.mrf.mxu0
    %529 = vmatprep.mubr.bf16.mxu0 0
    %530 = vmatmul.mubr.bf16.gmra.mxu0 %v105
    %v531 = vpop.f32.mrf.mxu0
    %v532 = vadd.f32 %v220, %v531
    %v533 = vpop.f32.mrf.mxu0
    %v534 = vpop.f32.mrf.mxu0
    %v535 = vadd.f32 %v220, %v534
    %v536 = vpop.f32.mrf.mxu0
    %537 = vmatprep.mubr.bf16.mxu0 0
    %538 = vmatmul.mubr.bf16.gmra.mxu0 %v106
    %v539 = vpop.f32.mrf.mxu0
    %v540 = vadd.f32 %v220, %v539
    %v541 = vpop.f32.mrf.mxu0
    %v542 = vpop.f32.mrf.mxu0
    %v543 = vadd.f32 %v220, %v542
    %v544 = vpop.f32.mrf.mxu0
    %545 = vmatprep.mubr.bf16.mxu0 0
    %546 = vmatmul.mubr.bf16.gmra.mxu0 %v107
    %v547 = vpop.f32.mrf.mxu0
    %v548 = vadd.f32 %v220, %v547
    %v549 = vpop.f32.mrf.mxu0
    %v550 = vpop.f32.mrf.mxu0
    %v551 = vadd.f32 %v220, %v550
    %v552 = vpop.f32.mrf.mxu0
    %553 = vmatprep.mubr.bf16.mxu0 0
    %554 = vmatmul.mubr.bf16.gmra.mxu0 %v108
    %v555 = vpop.f32.mrf.mxu0
    %v556 = vadd.f32 %v220, %v555
    %v557 = vpop.f32.mrf.mxu0
    %v558 = vpop.f32.mrf.mxu0
    %v559 = vadd.f32 %v220, %v558
    %v560 = vpop.f32.mrf.mxu0
    %561 = vmatprep.mubr.bf16.mxu0 0
    %562 = vmatmul.mubr.bf16.gmra.mxu0 %v109
    %v563 = vpop.f32.mrf.mxu0
    %v564 = vadd.f32 %v220, %v563
    %v565 = vpop.f32.mrf.mxu0
    %v566 = vpop.f32.mrf.mxu0
    %v567 = vadd.f32 %v220, %v566
    %v568 = vpop.f32.mrf.mxu0
    %569 = vmatprep.mubr.bf16.mxu0 0
    %570 = vmatmul.mubr.bf16.gmra.mxu0 %v110
    %v571 = vpop.f32.mrf.mxu0
    %v572 = vadd.f32 %v220, %v571
    %v573 = vpop.f32.mrf.mxu0
    %v574 = vpop.f32.mrf.mxu0
    %v575 = vadd.f32 %v220, %v574
    %v576 = vpop.f32.mrf.mxu0
    %577 = vdwg.mxu0
    %v578 = vmul.f32 %v259, 0.17677669
    %v579 = vmul.f32 %v263, 0.17677669
    %v580 = vmul.f32 %v269, 0.17677669
    %v581 = vmul.f32 %v273, 0.17677669
    %v582 = vmul.f32 %v279, 0.17677669
    %v583 = vmul.f32 %v283, 0.17677669
    %v584 = vmul.f32 %v289, 0.17677669
    %v585 = vmul.f32 %v293, 0.17677669
    %v586 = vmul.f32 %v299, 0.17677669
    %v587 = vmul.f32 %v303, 0.17677669
    %v588 = vmul.f32 %v309, 0.17677669
    %v589 = vmul.f32 %v313, 0.17677669
    %v590 = vmul.f32 %v319, 0.17677669
    %v591 = vmul.f32 %v323, 0.17677669
    %v592 = vmul.f32 %v329, 0.17677669
    %v593 = vmul.f32 %v333, 0.17677669
    %v594 = vmul.f32 %v339, 0.17677669
    %v595 = vmul.f32 %v343, 0.17677669
    %v596 = vmul.f32 %v349, 0.17677669
    %v597 = vmul.f32 %v353, 0.17677669
    %v598 = vmul.f32 %v359, 0.17677669
    %v599 = vmul.f32 %v363, 0.17677669
    %v600 = vmul.f32 %v369, 0.17677669
    %v601 = vmul.f32 %v373, 0.17677669
    %v602 = vmul.f32 %v379, 0.17677669
    %v603 = vmul.f32 %v383, 0.17677669
    %v604 = vmul.f32 %v389, 0.17677669
    %v605 = vmul.f32 %v393, 0.17677669
    %v606 = vmul.f32 %v399, 0.17677669
    %v607 = vmul.f32 %v403, 0.17677669
    %v608 = vmul.f32 %v409, 0.17677669
    %v609 = vmul.f32 %v413, 0.17677669
    %v610 = vpack.c.bf16 %v579, %v578
    %v611 = vpack.c.bf16 %v581, %v580
    %v612 = vpack.c.bf16 %v583, %v582
    %v613 = vpack.c.bf16 %v585, %v584
    %v614 = vpack.c.bf16 %v587, %v586
    %v615 = vpack.c.bf16 %v589, %v588
    %v616 = vpack.c.bf16 %v591, %v590
    %v617 = vpack.c.bf16 %v593, %v592
    %v618 = vpack.c.bf16 %v595, %v594
    %v619 = vpack.c.bf16 %v597, %v596
    %v620 = vpack.c.bf16 %v599, %v598
    %v621 = vpack.c.bf16 %v601, %v600
    %v622 = vpack.c.bf16 %v603, %v602
    %v623 = vpack.c.bf16 %v605, %v604
    %v624 = vpack.c.bf16 %v607, %v606
    %v625 = vpack.c.bf16 %v609, %v608
    %v626 = vpack.c.bf16 %v265, %v261
    %v627 = vpack.c.bf16 %v275, %v271
    %v628 = vpack.c.bf16 %v285, %v281
    %v629 = vpack.c.bf16 %v295, %v291
    %v630 = vpack.c.bf16 %v305, %v301
    %v631 = vpack.c.bf16 %v315, %v311
    %v632 = vpack.c.bf16 %v325, %v321
    %v633 = vpack.c.bf16 %v335, %v331
    %v634 = vpack.c.bf16 %v345, %v341
    %v635 = vpack.c.bf16 %v355, %v351
    %v636 = vpack.c.bf16 %v365, %v361
    %v637 = vpack.c.bf16 %v375, %v371
    %v638 = vpack.c.bf16 %v385, %v381
    %v639 = vpack.c.bf16 %v395, %v391
    %v640 = vpack.c.bf16 %v405, %v401
    %v641 = vpack.c.bf16 %v415, %v411
    %v642 = vpack.c.bf16 %v455, %v452
    %v643 = vpack.c.bf16 %v463, %v460
    %v644 = vpack.c.bf16 %v471, %v468
    %v645 = vpack.c.bf16 %v479, %v476
    %v646 = vpack.c.bf16 %v487, %v484
    %v647 = vpack.c.bf16 %v495, %v492
    %v648 = vpack.c.bf16 %v503, %v500
    %v649 = vpack.c.bf16 %v511, %v508
    %v650 = vpack.c.bf16 %v519, %v516
    %v651 = vpack.c.bf16 %v527, %v524
    %v652 = vpack.c.bf16 %v535, %v532
    %v653 = vpack.c.bf16 %v543, %v540
    %v654 = vpack.c.bf16 %v551, %v548
    %v655 = vpack.c.bf16 %v559, %v556
    %v656 = vpack.c.bf16 %v567, %v564
    %v657 = vpack.c.bf16 %v575, %v572
    %vm658 = vcmask 261120
    %v660 = vsel %vm658, %v610, 0
    %v663 = vsel %vm658, %v611, 0
    %v666 = vsel %vm658, %v612, 0
    %v669 = vsel %vm658, %v613, 0
    %v672 = vsel %vm658, %v614, 0
    %v675 = vsel %vm658, %v615, 0
    %v678 = vsel %vm658, %v616, 0
    %v681 = vsel %vm658, %v617, 0
    %v684 = vsel %vm658, %v626, 0
    %v687 = vsel %vm658, %v627, 0
    %v690 = vsel %vm658, %v628, 0
    %v693 = vsel %vm658, %v629, 0
    %v696 = vsel %vm658, %v630, 0
    %v699 = vsel %vm658, %v631, 0
    %v702 = vsel %vm658, %v632, 0
    %v705 = vsel %vm658, %v633, 0
    %707 = vmatprep.subr.bf16.mxu0 0
    %708 = vmatpush1.bf16.xpose.msra.mxu0 %v705
    %709 = vmatprep.subr.bf16.mxu0 0
    %710 = vmatpush1.bf16.xpose.msra.mxu0 %v702
    %711 = vmatprep.subr.bf16.mxu0 0
    %712 = vmatpush1.bf16.xpose.msra.mxu0 %v699
    %713 = vmatprep.subr.bf16.mxu0 0
    %714 = vmatpush1.bf16.xpose.msra.mxu0 %v696
    %715 = vmatprep.subr.bf16.mxu0 0
    %716 = vmatpush1.bf16.xpose.msra.mxu0 %v693
    %717 = vmatprep.subr.bf16.mxu0 0
    %718 = vmatpush1.bf16.xpose.msra.mxu0 %v690
    %719 = vmatprep.subr.bf16.mxu0 0
    %720 = vmatpush1.bf16.xpose.msra.mxu0 %v687
    %721 = vmatprep.subr.bf16.mxu0 0
    %722 = vmatpush1.bf16.xpose.msra.mxu0 %v684
    %723 = vmatprep.subr.bf16.mxu0 0
    %724 = vmatpush2.bf16.xpose.msra.mxu0 0
    %725 = vmatprep.subr.bf16.mxu0 0
    %726 = vmatpush2.bf16.xpose.msra.mxu0 0
    %727 = vmatprep.subr.bf16.mxu0 0
    %728 = vmatpush2.bf16.xpose.msra.mxu0 0
    %729 = vmatprep.subr.bf16.mxu0 0
    %730 = vmatpush2.bf16.xpose.msra.mxu0 0
    %731 = vmatprep.subr.bf16.mxu0 0
    %732 = vmatpush2.bf16.xpose.msra.mxu0 0
    %733 = vmatprep.subr.bf16.mxu0 0
    %734 = vmatpush2.bf16.xpose.msra.mxu0 0
    %735 = vmatprep.subr.bf16.mxu0 0
    %736 = vmatpush2.bf16.xpose.msra.mxu0 0
    %737 = vmatprep.subr.bf16.mxu0 0
    %738 = vmatpush2.bf16.xpose.msra.mxu0 0
    %739 = vmatprep.mubr.bf16.mxu0 0
    %740 = vmatmul.mubr.bf16.gmra.mxu0 %v660
    %v741 = vpop.f32.mrf.mxu0
    %v742 = vadd.f32 0.0, %v741
    %v743 = vpop.f32.mrf.mxu0
    %v744 = vpop.f32.mrf.mxu0
    %v745 = vadd.f32 0.0, %v744
    %v746 = vpop.f32.mrf.mxu0
    %747 = vmatprep.mubr.bf16.mxu0 0
    %748 = vmatmul.mubr.bf16.gmra.mxu0 %v663
    %v749 = vpop.f32.mrf.mxu0
    %v750 = vadd.f32 0.0, %v749
    %v751 = vpop.f32.mrf.mxu0
    %v752 = vpop.f32.mrf.mxu0
    %v753 = vadd.f32 0.0, %v752
    %v754 = vpop.f32.mrf.mxu0
    %755 = vmatprep.mubr.bf16.mxu0 0
    %756 = vmatmul.mubr.bf16.gmra.mxu0 %v666
    %v757 = vpop.f32.mrf.mxu0
    %v758 = vadd.f32 0.0, %v757
    %v759 = vpop.f32.mrf.mxu0
    %v760 = vpop.f32.mrf.mxu0
    %v761 = vadd.f32 0.0, %v760
    %v762 = vpop.f32.mrf.mxu0
    %763 = vmatprep.mubr.bf16.mxu0 0
    %764 = vmatmul.mubr.bf16.gmra.mxu0 %v669
    %v765 = vpop.f32.mrf.mxu0
    %v766 = vadd.f32 0.0, %v765
    %v767 = vpop.f32.mrf.mxu0
    %v768 = vpop.f32.mrf.mxu0
    %v769 = vadd.f32 0.0, %v768
    %v770 = vpop.f32.mrf.mxu0
    %771 = vmatprep.mubr.bf16.mxu0 0
    %772 = vmatmul.mubr.bf16.gmra.mxu0 %v672
    %v773 = vpop.f32.mrf.mxu0
    %v774 = vadd.f32 0.0, %v773
    %v775 = vpop.f32.mrf.mxu0
    %v776 = vpop.f32.mrf.mxu0
    %v777 = vadd.f32 0.0, %v776
    %v778 = vpop.f32.mrf.mxu0
    %779 = vmatprep.mubr.bf16.mxu0 0
    %780 = vmatmul.mubr.bf16.gmra.mxu0 %v675
    %v781 = vpop.f32.mrf.mxu0
    %v782 = vadd.f32 0.0, %v781
    %v783 = vpop.f32.mrf.mxu0
    %v784 = vpop.f32.mrf.mxu0
    %v785 = vadd.f32 0.0, %v784
    %v786 = vpop.f32.mrf.mxu0
    %787 = vmatprep.mubr.bf16.mxu0 0
    %788 = vmatmul.mubr.bf16.gmra.mxu0 %v678
    %v789 = vpop.f32.mrf.mxu0
    %v790 = vadd.f32 0.0, %v789
    %v791 = vpop.f32.mrf.mxu0
    %v792 = vpop.f32.mrf.mxu0
    %v793 = vadd.f32 0.0, %v792
    %v794 = vpop.f32.mrf.mxu0
    %795 = vmatprep.mubr.bf16.mxu0 0
    %796 = vmatmul.mubr.bf16.gmra.mxu0 %v681
    %v797 = vpop.f32.mrf.mxu0
    %v798 = vadd.f32 0.0, %v797
    %v799 = vpop.f32.mrf.mxu0
    %v800 = vpop.f32.mrf.mxu0
    %v801 = vadd.f32 0.0, %v800
    %v802 = vpop.f32.mrf.mxu0
    %803 = vdwg.mxu0
    %v805 = vsel %vm658, %v618, 0
    %v808 = vsel %vm658, %v619, 0
    %v811 = vsel %vm658, %v620, 0
    %v814 = vsel %vm658, %v621, 0
    %v817 = vsel %vm658, %v622, 0
    %v820 = vsel %vm658, %v623, 0
    %v823 = vsel %vm658, %v624, 0
    %v826 = vsel %vm658, %v625, 0
    %v829 = vsel %vm658, %v634, 0
    %v832 = vsel %vm658, %v635, 0
    %v835 = vsel %vm658, %v636, 0
    %v838 = vsel %vm658, %v637, 0
    %v841 = vsel %vm658, %v638, 0
    %v844 = vsel %vm658, %v639, 0
    %v847 = vsel %vm658, %v640, 0
    %v850 = vsel %vm658, %v641, 0
    %852 = vmatprep.subr.bf16.mxu0 0
    %853 = vmatpush1.bf16.xpose.msra.mxu0 %v850
    %854 = vmatprep.subr.bf16.mxu0 0
    %855 = vmatpush1.bf16.xpose.msra.mxu0 %v847
    %856 = vmatprep.subr.bf16.mxu0 0
    %857 = vmatpush1.bf16.xpose.msra.mxu0 %v844
    %858 = vmatprep.subr.bf16.mxu0 0
    %859 = vmatpush1.bf16.xpose.msra.mxu0 %v841
    %860 = vmatprep.subr.bf16.mxu0 0
    %861 = vmatpush1.bf16.xpose.msra.mxu0 %v838
    %862 = vmatprep.subr.bf16.mxu0 0
    %863 = vmatpush1.bf16.xpose.msra.mxu0 %v835
    %864 = vmatprep.subr.bf16.mxu0 0
    %865 = vmatpush1.bf16.xpose.msra.mxu0 %v832
    %866 = vmatprep.subr.bf16.mxu0 0
    %867 = vmatpush1.bf16.xpose.msra.mxu0 %v829
    %868 = vmatprep.subr.bf16.mxu0 0
    %869 = vmatpush2.bf16.xpose.msra.mxu0 0
    %870 = vmatprep.subr.bf16.mxu0 0
    %871 = vmatpush2.bf16.xpose.msra.mxu0 0
    %872 = vmatprep.subr.bf16.mxu0 0
    %873 = vmatpush2.bf16.xpose.msra.mxu0 0
    %874 = vmatprep.subr.bf16.mxu0 0
    %875 = vmatpush2.bf16.xpose.msra.mxu0 0
    %876 = vmatprep.subr.bf16.mxu0 0
    %877 = vmatpush2.bf16.xpose.msra.mxu0 0
    %878 = vmatprep.subr.bf16.mxu0 0
    %879 = vmatpush2.bf16.xpose.msra.mxu0 0
    %880 = vmatprep.subr.bf16.mxu0 0
    %881 = vmatpush2.bf16.xpose.msra.mxu0 0
    %882 = vmatprep.subr.bf16.mxu0 0
    %883 = vmatpush2.bf16.xpose.msra.mxu0 0
    %884 = vmatprep.mubr.bf16.mxu0 0
    %885 = vmatmul.mubr.bf16.gmra.mxu0 %v805
    %v886 = vpop.f32.mrf.mxu0
    %v887 = vadd.f32 0.0, %v886
    %v888 = vpop.f32.mrf.mxu0
    %v889 = vpop.f32.mrf.mxu0
    %v890 = vadd.f32 0.0, %v889
    %v891 = vpop.f32.mrf.mxu0
    %892 = vmatprep.mubr.bf16.mxu0 0
    %893 = vmatmul.mubr.bf16.gmra.mxu0 %v808
    %v894 = vpop.f32.mrf.mxu0
    %v895 = vadd.f32 0.0, %v894
    %v896 = vpop.f32.mrf.mxu0
    %v897 = vpop.f32.mrf.mxu0
    %v898 = vadd.f32 0.0, %v897
    %v899 = vpop.f32.mrf.mxu0
    %900 = vmatprep.mubr.bf16.mxu0 0
    %901 = vmatmul.mubr.bf16.gmra.mxu0 %v811
    %v902 = vpop.f32.mrf.mxu0
    %v903 = vadd.f32 0.0, %v902
    %v904 = vpop.f32.mrf.mxu0
    %v905 = vpop.f32.mrf.mxu0
    %v906 = vadd.f32 0.0, %v905
    %v907 = vpop.f32.mrf.mxu0
    %908 = vmatprep.mubr.bf16.mxu0 0
    %909 = vmatmul.mubr.bf16.gmra.mxu0 %v814
    %v910 = vpop.f32.mrf.mxu0
    %v911 = vadd.f32 0.0, %v910
    %v912 = vpop.f32.mrf.mxu0
    %v913 = vpop.f32.mrf.mxu0
    %v914 = vadd.f32 0.0, %v913
    %v915 = vpop.f32.mrf.mxu0
    %916 = vmatprep.mubr.bf16.mxu0 0
    %917 = vmatmul.mubr.bf16.gmra.mxu0 %v817
    %v918 = vpop.f32.mrf.mxu0
    %v919 = vadd.f32 0.0, %v918
    %v920 = vpop.f32.mrf.mxu0
    %v921 = vpop.f32.mrf.mxu0
    %v922 = vadd.f32 0.0, %v921
    %v923 = vpop.f32.mrf.mxu0
    %924 = vmatprep.mubr.bf16.mxu0 0
    %925 = vmatmul.mubr.bf16.gmra.mxu0 %v820
    %v926 = vpop.f32.mrf.mxu0
    %v927 = vadd.f32 0.0, %v926
    %v928 = vpop.f32.mrf.mxu0
    %v929 = vpop.f32.mrf.mxu0
    %v930 = vadd.f32 0.0, %v929
    %v931 = vpop.f32.mrf.mxu0
    %932 = vmatprep.mubr.bf16.mxu0 0
    %933 = vmatmul.mubr.bf16.gmra.mxu0 %v823
    %v934 = vpop.f32.mrf.mxu0
    %v935 = vadd.f32 0.0, %v934
    %v936 = vpop.f32.mrf.mxu0
    %v937 = vpop.f32.mrf.mxu0
    %v938 = vadd.f32 0.0, %v937
    %v939 = vpop.f32.mrf.mxu0
    %940 = vmatprep.mubr.bf16.mxu0 0
    %941 = vmatmul.mubr.bf16.gmra.mxu0 %v826
    %v942 = vpop.f32.mrf.mxu0
    %v943 = vadd.f32 0.0, %v942
    %v944 = vpop.f32.mrf.mxu0
    %v945 = vpop.f32.mrf.mxu0
    %v946 = vadd.f32 0.0, %v945
    %v947 = vpop.f32.mrf.mxu0
    %948 = vdwg.mxu0
    %949 = vmax.xlane.f32.xlu0 %v742
    %v950 = vpop.xlane.xlu0 %949
    %951 = vmax.xlane.f32.xlu0 %v745
    %v952 = vpop.xlane.xlu0 %951
    %953 = vmax.xlane.f32.xlu0 %v750
    %v954 = vpop.xlane.xlu0 %953
    %955 = vmax.xlane.f32.xlu0 %v753
    %v956 = vpop.xlane.xlu0 %955
    %957 = vmax.xlane.f32.xlu0 %v758
    %v958 = vpop.xlane.xlu0 %957
    %959 = vmax.xlane.f32.xlu0 %v761
    %v960 = vpop.xlane.xlu0 %959
    %961 = vmax.xlane.f32.xlu0 %v766
    %v962 = vpop.xlane.xlu0 %961
    %963 = vmax.xlane.f32.xlu0 %v769
    %v964 = vpop.xlane.xlu0 %963
    %965 = vmax.xlane.f32.xlu0 %v774
    %v966 = vpop.xlane.xlu0 %965
    %967 = vmax.xlane.f32.xlu0 %v777
    %v968 = vpop.xlane.xlu0 %967
    %969 = vmax.xlane.f32.xlu0 %v782
    %v970 = vpop.xlane.xlu0 %969
    %971 = vmax.xlane.f32.xlu0 %v785
    %v972 = vpop.xlane.xlu0 %971
    %973 = vmax.xlane.f32.xlu0 %v790
    %v974 = vpop.xlane.xlu0 %973
    %975 = vmax.xlane.f32.xlu0 %v793
    %v976 = vpop.xlane.xlu0 %975
    %977 = vmax.xlane.f32.xlu0 %v798
    %v978 = vpop.xlane.xlu0 %977
    %979 = vmax.xlane.f32.xlu0 %v801
    %v980 = vpop.xlane.xlu0 %979
    %981 = vmax.xlane.f32.xlu0 %v887
    %v982 = vpop.xlane.xlu0 %981
    %983 = vmax.xlane.f32.xlu0 %v890
    %v984 = vpop.xlane.xlu0 %983
    %985 = vmax.xlane.f32.xlu0 %v895
    %v986 = vpop.xlane.xlu0 %985
    %987 = vmax.xlane.f32.xlu0 %v898
    %v988 = vpop.xlane.xlu0 %987
    %989 = vmax.xlane.f32.xlu0 %v903
    %v990 = vpop.xlane.xlu0 %989
    %991 = vmax.xlane.f32.xlu0 %v906
    %v992 = vpop.xlane.xlu0 %991
    %993 = vmax.xlane.f32.xlu0 %v911
    %v994 = vpop.xlane.xlu0 %993
    %995 = vmax.xlane.f32.xlu0 %v914
    %v996 = vpop.xlane.xlu0 %995
    %997 = vmax.xlane.f32.xlu0 %v919
    %v998 = vpop.xlane.xlu0 %997
    %999 = vmax.xlane.f32.xlu0 %v922
    %v1000 = vpop.xlane.xlu0 %999
    %1001 = vmax.xlane.f32.xlu0 %v927
    %v1002 = vpop.xlane.xlu0 %1001
    %1003 = vmax.xlane.f32.xlu0 %v930
    %v1004 = vpop.xlane.xlu0 %1003
    %1005 = vmax.xlane.f32.xlu0 %v935
    %v1006 = vpop.xlane.xlu0 %1005
    %1007 = vmax.xlane.f32.xlu0 %v938
    %v1008 = vpop.xlane.xlu0 %1007
    %1009 = vmax.xlane.f32.xlu0 %v943
    %v1010 = vpop.xlane.xlu0 %1009
    %1011 = vmax.xlane.f32.xlu0 %v946
    %v1012 = vpop.xlane.xlu0 %1011
    %v1013 = vsub.f32 %v742, %v950
    %v1014 = vsub.f32 %v745, %v952
    %v1015 = vsub.f32 %v750, %v954
    %v1016 = vsub.f32 %v753, %v956
    %v1017 = vsub.f32 %v758, %v958
    %v1018 = vsub.f32 %v761, %v960
    %v1019 = vsub.f32 %v766, %v962
    %v1020 = vsub.f32 %v769, %v964
    %v1021 = vsub.f32 %v774, %v966
    %v1022 = vsub.f32 %v777, %v968
    %v1023 = vsub.f32 %v782, %v970
    %v1024 = vsub.f32 %v785, %v972
    %v1025 = vsub.f32 %v790, %v974
    %v1026 = vsub.f32 %v793, %v976
    %v1027 = vsub.f32 %v798, %v978
    %v1028 = vsub.f32 %v801, %v980
    %v1029 = vsub.f32 %v887, %v982
    %v1030 = vsub.f32 %v890, %v984
    %v1031 = vsub.f32 %v895, %v986
    %v1032 = vsub.f32 %v898, %v988
    %v1033 = vsub.f32 %v903, %v990
    %v1034 = vsub.f32 %v906, %v992
    %v1035 = vsub.f32 %v911, %v994
    %v1036 = vsub.f32 %v914, %v996
    %v1037 = vsub.f32 %v919, %v998
    %v1038 = vsub.f32 %v922, %v1000
    %v1039 = vsub.f32 %v927, %v1002
    %v1040 = vsub.f32 %v930, %v1004
    %v1041 = vsub.f32 %v935, %v1006
    %v1042 = vsub.f32 %v938, %v1008
    %v1043 = vsub.f32 %v943, %v1010
    %v1044 = vsub.f32 %v946, %v1012
    %v1045 = vmul.f32 %v1013, 1.442695
    %v1046 = vpow.pop %v1045
    %v1047 = vmul.f32 %v1014, 1.442695
    %v1048 = vpow.pop %v1047
    %v1049 = vmul.f32 %v1015, 1.442695
    %v1050 = vpow.pop %v1049
    %v1051 = vmul.f32 %v1016, 1.442695
    %v1052 = vpow.pop %v1051
    %v1053 = vmul.f32 %v1017, 1.442695
    %v1054 = vpow.pop %v1053
    %v1055 = vmul.f32 %v1018, 1.442695
    %v1056 = vpow.pop %v1055
    %v1057 = vmul.f32 %v1019, 1.442695
    %v1058 = vpow.pop %v1057
    %v1059 = vmul.f32 %v1020, 1.442695
    %v1060 = vpow.pop %v1059
    %v1061 = vmul.f32 %v1021, 1.442695
    %v1062 = vpow.pop %v1061
    %v1063 = vmul.f32 %v1022, 1.442695
    %v1064 = vpow.pop %v1063
    %v1065 = vmul.f32 %v1023, 1.442695
    %v1066 = vpow.pop %v1065
    %v1067 = vmul.f32 %v1024, 1.442695
    %v1068 = vpow.pop %v1067
    %v1069 = vmul.f32 %v1025, 1.442695
    %v1070 = vpow.pop %v1069
    %v1071 = vmul.f32 %v1026, 1.442695
    %v1072 = vpow.pop %v1071
    %v1073 = vmul.f32 %v1027, 1.442695
    %v1074 = vpow.pop %v1073
    %v1075 = vmul.f32 %v1028, 1.442695
    %v1076 = vpow.pop %v1075
    %v1077 = vmul.f32 %v1029, 1.442695
    %v1078 = vpow.pop %v1077
    %v1079 = vmul.f32 %v1030, 1.442695
    %v1080 = vpow.pop %v1079
    %v1081 = vmul.f32 %v1031, 1.442695
    %v1082 = vpow.pop %v1081
    %v1083 = vmul.f32 %v1032, 1.442695
    %v1084 = vpow.pop %v1083
    %v1085 = vmul.f32 %v1033, 1.442695
    %v1086 = vpow.pop %v1085
    %v1087 = vmul.f32 %v1034, 1.442695
    %v1088 = vpow.pop %v1087
    %v1089 = vmul.f32 %v1035, 1.442695
    %v1090 = vpow.pop %v1089
    %v1091 = vmul.f32 %v1036, 1.442695
    %v1092 = vpow.pop %v1091
    %v1093 = vmul.f32 %v1037, 1.442695
    %v1094 = vpow.pop %v1093
    %v1095 = vmul.f32 %v1038, 1.442695
    %v1096 = vpow.pop %v1095
    %v1097 = vmul.f32 %v1039, 1.442695
    %v1098 = vpow.pop %v1097
    %v1099 = vmul.f32 %v1040, 1.442695
    %v1100 = vpow.pop %v1099
    %v1101 = vmul.f32 %v1041, 1.442695
    %v1102 = vpow.pop %v1101
    %v1103 = vmul.f32 %v1042, 1.442695
    %v1104 = vpow.pop %v1103
    %v1105 = vmul.f32 %v1043, 1.442695
    %v1106 = vpow.pop %v1105
    %v1107 = vmul.f32 %v1044, 1.442695
    %v1108 = vpow.pop %v1107
    %1109 = vadd.xlane.f32.xlu0 %v1046
    %v1110 = vpop.xlane.xlu0 %1109
    %1111 = vadd.xlane.f32.xlu0 %v1048
    %v1112 = vpop.xlane.xlu0 %1111
    %1113 = vadd.xlane.f32.xlu0 %v1050
    %v1114 = vpop.xlane.xlu0 %1113
    %1115 = vadd.xlane.f32.xlu0 %v1052
    %v1116 = vpop.xlane.xlu0 %1115
    %1117 = vadd.xlane.f32.xlu0 %v1054
    %v1118 = vpop.xlane.xlu0 %1117
    %1119 = vadd.xlane.f32.xlu0 %v1056
    %v1120 = vpop.xlane.xlu0 %1119
    %1121 = vadd.xlane.f32.xlu0 %v1058
    %v1122 = vpop.xlane.xlu0 %1121
    %1123 = vadd.xlane.f32.xlu0 %v1060
    %v1124 = vpop.xlane.xlu0 %1123
    %1125 = vadd.xlane.f32.xlu0 %v1062
    %v1126 = vpop.xlane.xlu0 %1125
    %1127 = vadd.xlane.f32.xlu0 %v1064
    %v1128 = vpop.xlane.xlu0 %1127
    %1129 = vadd.xlane.f32.xlu0 %v1066
    %v1130 = vpop.xlane.xlu0 %1129
    %1131 = vadd.xlane.f32.xlu0 %v1068
    %v1132 = vpop.xlane.xlu0 %1131
    %1133 = vadd.xlane.f32.xlu0 %v1070
    %v1134 = vpop.xlane.xlu0 %1133
    %1135 = vadd.xlane.f32.xlu0 %v1072
    %v1136 = vpop.xlane.xlu0 %1135
    %1137 = vadd.xlane.f32.xlu0 %v1074
    %v1138 = vpop.xlane.xlu0 %1137
    %1139 = vadd.xlane.f32.xlu0 %v1076
    %v1140 = vpop.xlane.xlu0 %1139
    %1141 = vadd.xlane.f32.xlu0 %v1078
    %v1142 = vpop.xlane.xlu0 %1141
    %1143 = vadd.xlane.f32.xlu0 %v1080
    %v1144 = vpop.xlane.xlu0 %1143
    %1145 = vadd.xlane.f32.xlu0 %v1082
    %v1146 = vpop.xlane.xlu0 %1145
    %1147 = vadd.xlane.f32.xlu0 %v1084
    %v1148 = vpop.xlane.xlu0 %1147
    %1149 = vadd.xlane.f32.xlu0 %v1086
    %v1150 = vpop.xlane.xlu0 %1149
    %1151 = vadd.xlane.f32.xlu0 %v1088
    %v1152 = vpop.xlane.xlu0 %1151
    %1153 = vadd.xlane.f32.xlu0 %v1090
    %v1154 = vpop.xlane.xlu0 %1153
    %1155 = vadd.xlane.f32.xlu0 %v1092
    %v1156 = vpop.xlane.xlu0 %1155
    %1157 = vadd.xlane.f32.xlu0 %v1094
    %v1158 = vpop.xlane.xlu0 %1157
    %1159 = vadd.xlane.f32.xlu0 %v1096
    %v1160 = vpop.xlane.xlu0 %1159
    %1161 = vadd.xlane.f32.xlu0 %v1098
    %v1162 = vpop.xlane.xlu0 %1161
    %1163 = vadd.xlane.f32.xlu0 %v1100
    %v1164 = vpop.xlane.xlu0 %1163
    %1165 = vadd.xlane.f32.xlu0 %v1102
    %v1166 = vpop.xlane.xlu0 %1165
    %1167 = vadd.xlane.f32.xlu0 %v1104
    %v1168 = vpop.xlane.xlu0 %1167
    %1169 = vadd.xlane.f32.xlu0 %v1106
    %v1170 = vpop.xlane.xlu0 %1169
    %1171 = vadd.xlane.f32.xlu0 %v1108
    %v1172 = vpop.xlane.xlu0 %1171
    %v1173 = vrcp.pop %v1110
    %v1174 = vrcp.pop %v1112
    %v1175 = vrcp.pop %v1114
    %v1176 = vrcp.pop %v1116
    %v1177 = vrcp.pop %v1118
    %v1178 = vrcp.pop %v1120
    %v1179 = vrcp.pop %v1122
    %v1180 = vrcp.pop %v1124
    %v1181 = vrcp.pop %v1126
    %v1182 = vrcp.pop %v1128
    %v1183 = vrcp.pop %v1130
    %v1184 = vrcp.pop %v1132
    %v1185 = vrcp.pop %v1134
    %v1186 = vrcp.pop %v1136
    %v1187 = vrcp.pop %v1138
    %v1188 = vrcp.pop %v1140
    %v1189 = vrcp.pop %v1142
    %v1190 = vrcp.pop %v1144
    %v1191 = vrcp.pop %v1146
    %v1192 = vrcp.pop %v1148
    %v1193 = vrcp.pop %v1150
    %v1194 = vrcp.pop %v1152
    %v1195 = vrcp.pop %v1154
    %v1196 = vrcp.pop %v1156
    %v1197 = vrcp.pop %v1158
    %v1198 = vrcp.pop %v1160
    %v1199 = vrcp.pop %v1162
    %v1200 = vrcp.pop %v1164
    %v1201 = vrcp.pop %v1166
    %v1202 = vrcp.pop %v1168
    %v1203 = vrcp.pop %v1170
    %v1204 = vrcp.pop %v1172
    %v1205 = vmul.f32 %v1046, %v1173
    %v1206 = vmul.f32 %v1048, %v1174
    %v1207 = vmul.f32 %v1050, %v1175
    %v1208 = vmul.f32 %v1052, %v1176
    %v1209 = vmul.f32 %v1054, %v1177
    %v1210 = vmul.f32 %v1056, %v1178
    %v1211 = vmul.f32 %v1058, %v1179
    %v1212 = vmul.f32 %v1060, %v1180
    %v1213 = vmul.f32 %v1062, %v1181
    %v1214 = vmul.f32 %v1064, %v1182
    %v1215 = vmul.f32 %v1066, %v1183
    %v1216 = vmul.f32 %v1068, %v1184
    %v1217 = vmul.f32 %v1070, %v1185
    %v1218 = vmul.f32 %v1072, %v1186
    %v1219 = vmul.f32 %v1074, %v1187
    %v1220 = vmul.f32 %v1076, %v1188
    %v1221 = vmul.f32 %v1078, %v1189
    %v1222 = vmul.f32 %v1080, %v1190
    %v1223 = vmul.f32 %v1082, %v1191
    %v1224 = vmul.f32 %v1084, %v1192
    %v1225 = vmul.f32 %v1086, %v1193
    %v1226 = vmul.f32 %v1088, %v1194
    %v1227 = vmul.f32 %v1090, %v1195
    %v1228 = vmul.f32 %v1092, %v1196
    %v1229 = vmul.f32 %v1094, %v1197
    %v1230 = vmul.f32 %v1096, %v1198
    %v1231 = vmul.f32 %v1098, %v1199
    %v1232 = vmul.f32 %v1100, %v1200
    %v1233 = vmul.f32 %v1102, %v1201
    %v1234 = vmul.f32 %v1104, %v1202
    %v1235 = vmul.f32 %v1106, %v1203
    %v1236 = vmul.f32 %v1108, %v1204
    %v1237 = vpack.c.bf16 %v1206, %v1205
    %v1238 = vpack.c.bf16 %v1208, %v1207
    %v1239 = vpack.c.bf16 %v1210, %v1209
    %v1240 = vpack.c.bf16 %v1212, %v1211
    %v1241 = vpack.c.bf16 %v1214, %v1213
    %v1242 = vpack.c.bf16 %v1216, %v1215
    %v1243 = vpack.c.bf16 %v1218, %v1217
    %v1244 = vpack.c.bf16 %v1220, %v1219
    %v1245 = vpack.c.bf16 %v1222, %v1221
    %v1246 = vpack.c.bf16 %v1224, %v1223
    %v1247 = vpack.c.bf16 %v1226, %v1225
    %v1248 = vpack.c.bf16 %v1228, %v1227
    %v1249 = vpack.c.bf16 %v1230, %v1229
    %v1250 = vpack.c.bf16 %v1232, %v1231
    %v1251 = vpack.c.bf16 %v1234, %v1233
    %v1252 = vpack.c.bf16 %v1236, %v1235
    %1253 = vmatprep.subr.bf16.mxu0 0
    %1254 = vmatpush1.bf16.msra.mxu0 %v649
    %1255 = vmatprep.subr.bf16.mxu0 0
    %1256 = vmatpush1.bf16.msra.mxu0 %v648
    %1257 = vmatprep.subr.bf16.mxu0 0
    %1258 = vmatpush1.bf16.msra.mxu0 %v647
    %1259 = vmatprep.subr.bf16.mxu0 0
    %1260 = vmatpush1.bf16.msra.mxu0 %v646
    %1261 = vmatprep.subr.bf16.mxu0 0
    %1262 = vmatpush1.bf16.msra.mxu0 %v645
    %1263 = vmatprep.subr.bf16.mxu0 0
    %1264 = vmatpush1.bf16.msra.mxu0 %v644
    %1265 = vmatprep.subr.bf16.mxu0 0
    %1266 = vmatpush1.bf16.msra.mxu0 %v643
    %1267 = vmatprep.subr.bf16.mxu0 0
    %1268 = vmatpush1.bf16.msra.mxu0 %v642
    %1269 = vmatprep.subr.bf16.mxu0 0
    %1270 = vmatpush2.bf16.msra.mxu0 0
    %1271 = vmatprep.subr.bf16.mxu0 0
    %1272 = vmatpush2.bf16.msra.mxu0 0
    %1273 = vmatprep.subr.bf16.mxu0 0
    %1274 = vmatpush2.bf16.msra.mxu0 0
    %1275 = vmatprep.subr.bf16.mxu0 0
    %1276 = vmatpush2.bf16.msra.mxu0 0
    %1277 = vmatprep.subr.bf16.mxu0 0
    %1278 = vmatpush2.bf16.msra.mxu0 0
    %1279 = vmatprep.subr.bf16.mxu0 0
    %1280 = vmatpush2.bf16.msra.mxu0 0
    %1281 = vmatprep.subr.bf16.mxu0 0
    %1282 = vmatpush2.bf16.msra.mxu0 0
    %1283 = vmatprep.subr.bf16.mxu0 0
    %1284 = vmatpush2.bf16.msra.mxu0 0
    %1285 = vmatprep.mubr.bf16.mxu0 0
    %1286 = vmatmul.mubr.bf16.gmra.mxu0 %v1237
    %v1287 = vpop.f32.mrf.mxu0
    %v1288 = vadd.f32 0.0, %v1287
    %v1289 = vpop.f32.mrf.mxu0
    %v1290 = vpop.f32.mrf.mxu0
    %v1291 = vadd.f32 0.0, %v1290
    %v1292 = vpop.f32.mrf.mxu0
    %1293 = vmatprep.mubr.bf16.mxu0 0
    %1294 = vmatmul.mubr.bf16.gmra.mxu0 %v1238
    %v1295 = vpop.f32.mrf.mxu0
    %v1296 = vadd.f32 0.0, %v1295
    %v1297 = vpop.f32.mrf.mxu0
    %v1298 = vpop.f32.mrf.mxu0
    %v1299 = vadd.f32 0.0, %v1298
    %v1300 = vpop.f32.mrf.mxu0
    %1301 = vmatprep.mubr.bf16.mxu0 0
    %1302 = vmatmul.mubr.bf16.gmra.mxu0 %v1239
    %v1303 = vpop.f32.mrf.mxu0
    %v1304 = vadd.f32 0.0, %v1303
    %v1305 = vpop.f32.mrf.mxu0
    %v1306 = vpop.f32.mrf.mxu0
    %v1307 = vadd.f32 0.0, %v1306
    %v1308 = vpop.f32.mrf.mxu0
    %1309 = vmatprep.mubr.bf16.mxu0 0
    %1310 = vmatmul.mubr.bf16.gmra.mxu0 %v1240
    %v1311 = vpop.f32.mrf.mxu0
    %v1312 = vadd.f32 0.0, %v1311
    %v1313 = vpop.f32.mrf.mxu0
    %v1314 = vpop.f32.mrf.mxu0
    %v1315 = vadd.f32 0.0, %v1314
    %v1316 = vpop.f32.mrf.mxu0
    %1317 = vmatprep.mubr.bf16.mxu0 0
    %1318 = vmatmul.mubr.bf16.gmra.mxu0 %v1241
    %v1319 = vpop.f32.mrf.mxu0
    %v1320 = vadd.f32 0.0, %v1319
    %v1321 = vpop.f32.mrf.mxu0
    %v1322 = vpop.f32.mrf.mxu0
    %v1323 = vadd.f32 0.0, %v1322
    %v1324 = vpop.f32.mrf.mxu0
    %1325 = vmatprep.mubr.bf16.mxu0 0
    %1326 = vmatmul.mubr.bf16.gmra.mxu0 %v1242
    %v1327 = vpop.f32.mrf.mxu0
    %v1328 = vadd.f32 0.0, %v1327
    %v1329 = vpop.f32.mrf.mxu0
    %v1330 = vpop.f32.mrf.mxu0
    %v1331 = vadd.f32 0.0, %v1330
    %v1332 = vpop.f32.mrf.mxu0
    %1333 = vmatprep.mubr.bf16.mxu0 0
    %1334 = vmatmul.mubr.bf16.gmra.mxu0 %v1243
    %v1335 = vpop.f32.mrf.mxu0
    %v1336 = vadd.f32 0.0, %v1335
    %v1337 = vpop.f32.mrf.mxu0
    %v1338 = vpop.f32.mrf.mxu0
    %v1339 = vadd.f32 0.0, %v1338
    %v1340 = vpop.f32.mrf.mxu0
    %1341 = vmatprep.mubr.bf16.mxu0 0
    %1342 = vmatmul.mubr.bf16.gmra.mxu0 %v1244
    %v1343 = vpop.f32.mrf.mxu0
    %v1344 = vadd.f32 0.0, %v1343
    %v1345 = vpop.f32.mrf.mxu0
    %v1346 = vpop.f32.mrf.mxu0
    %v1347 = vadd.f32 0.0, %v1346
    %v1348 = vpop.f32.mrf.mxu0
    %1349 = vdwg.mxu0
    %1350 = vmatprep.subr.bf16.mxu0 0
    %1351 = vmatpush1.bf16.msra.mxu0 %v657
    %1352 = vmatprep.subr.bf16.mxu0 0
    %1353 = vmatpush1.bf16.msra.mxu0 %v656
    %1354 = vmatprep.subr.bf16.mxu0 0
    %1355 = vmatpush1.bf16.msra.mxu0 %v655
    %1356 = vmatprep.subr.bf16.mxu0 0
    %1357 = vmatpush1.bf16.msra.mxu0 %v654
    %1358 = vmatprep.subr.bf16.mxu0 0
    %1359 = vmatpush1.bf16.msra.mxu0 %v653
    %1360 = vmatprep.subr.bf16.mxu0 0
    %1361 = vmatpush1.bf16.msra.mxu0 %v652
    %1362 = vmatprep.subr.bf16.mxu0 0
    %1363 = vmatpush1.bf16.msra.mxu0 %v651
    %1364 = vmatprep.subr.bf16.mxu0 0
    %1365 = vmatpush1.bf16.msra.mxu0 %v650
    %1366 = vmatprep.subr.bf16.mxu0 0
    %1367 = vmatpush2.bf16.msra.mxu0 0
    %1368 = vmatprep.subr.bf16.mxu0 0
    %1369 = vmatpush2.bf16.msra.mxu0 0
    %1370 = vmatprep.subr.bf16.mxu0 0
    %1371 = vmatpush2.bf16.msra.mxu0 0
    %1372 = vmatprep.subr.bf16.mxu0 0
    %1373 = vmatpush2.bf16.msra.mxu0 0
    %1374 = vmatprep.subr.bf16.mxu0 0
    %1375 = vmatpush2.bf16.msra.mxu0 0
    %1376 = vmatprep.subr.bf16.mxu0 0
    %1377 = vmatpush2.bf16.msra.mxu0 0
    %1378 = vmatprep.subr.bf16.mxu0 0
    %1379 = vmatpush2.bf16.msra.mxu0 0
    %1380 = vmatprep.subr.bf16.mxu0 0
    %1381 = vmatpush2.bf16.msra.mxu0 0
    %1382 = vmatprep.mubr.bf16.mxu0 0
    %1383 = vmatmul.mubr.bf16.gmra.mxu0 %v1245
    %v1384 = vpop.f32.mrf.mxu0
    %v1385 = vadd.f32 0.0, %v1384
    %v1386 = vpop.f32.mrf.mxu0
    %v1387 = vpop.f32.mrf.mxu0
    %v1388 = vadd.f32 0.0, %v1387
    %v1389 = vpop.f32.mrf.mxu0
    %1390 = vmatprep.mubr.bf16.mxu0 0
    %1391 = vmatmul.mubr.bf16.gmra.mxu0 %v1246
    %v1392 = vpop.f32.mrf.mxu0
    %v1393 = vadd.f32 0.0, %v1392
    %v1394 = vpop.f32.mrf.mxu0
    %v1395 = vpop.f32.mrf.mxu0
    %v1396 = vadd.f32 0.0, %v1395
    %v1397 = vpop.f32.mrf.mxu0
    %1398 = vmatprep.mubr.bf16.mxu0 0
    %1399 = vmatmul.mubr.bf16.gmra.mxu0 %v1247
    %v1400 = vpop.f32.mrf.mxu0
    %v1401 = vadd.f32 0.0, %v1400
    %v1402 = vpop.f32.mrf.mxu0
    %v1403 = vpop.f32.mrf.mxu0
    %v1404 = vadd.f32 0.0, %v1403
    %v1405 = vpop.f32.mrf.mxu0
    %1406 = vmatprep.mubr.bf16.mxu0 0
    %1407 = vmatmul.mubr.bf16.gmra.mxu0 %v1248
    %v1408 = vpop.f32.mrf.mxu0
    %v1409 = vadd.f32 0.0, %v1408
    %v1410 = vpop.f32.mrf.mxu0
    %v1411 = vpop.f32.mrf.mxu0
    %v1412 = vadd.f32 0.0, %v1411
    %v1413 = vpop.f32.mrf.mxu0
    %1414 = vmatprep.mubr.bf16.mxu0 0
    %1415 = vmatmul.mubr.bf16.gmra.mxu0 %v1249
    %v1416 = vpop.f32.mrf.mxu0
    %v1417 = vadd.f32 0.0, %v1416
    %v1418 = vpop.f32.mrf.mxu0
    %v1419 = vpop.f32.mrf.mxu0
    %v1420 = vadd.f32 0.0, %v1419
    %v1421 = vpop.f32.mrf.mxu0
    %1422 = vmatprep.mubr.bf16.mxu0 0
    %1423 = vmatmul.mubr.bf16.gmra.mxu0 %v1250
    %v1424 = vpop.f32.mrf.mxu0
    %v1425 = vadd.f32 0.0, %v1424
    %v1426 = vpop.f32.mrf.mxu0
    %v1427 = vpop.f32.mrf.mxu0
    %v1428 = vadd.f32 0.0, %v1427
    %v1429 = vpop.f32.mrf.mxu0
    %1430 = vmatprep.mubr.bf16.mxu0 0
    %1431 = vmatmul.mubr.bf16.gmra.mxu0 %v1251
    %v1432 = vpop.f32.mrf.mxu0
    %v1433 = vadd.f32 0.0, %v1432
    %v1434 = vpop.f32.mrf.mxu0
    %v1435 = vpop.f32.mrf.mxu0
    %v1436 = vadd.f32 0.0, %v1435
    %v1437 = vpop.f32.mrf.mxu0
    %1438 = vmatprep.mubr.bf16.mxu0 0
    %1439 = vmatmul.mubr.bf16.gmra.mxu0 %v1252
    %v1440 = vpop.f32.mrf.mxu0
    %v1441 = vadd.f32 0.0, %v1440
    %v1442 = vpop.f32.mrf.mxu0
    %v1443 = vpop.f32.mrf.mxu0
    %v1444 = vadd.f32 0.0, %v1443
    %v1445 = vpop.f32.mrf.mxu0
    %1446 = vdwg.mxu0
    %v1447 = vpack.c.bf16 %v1291, %v1288
    %v1448 = vpack.c.bf16 %v1299, %v1296
    %v1449 = vpack.c.bf16 %v1307, %v1304
    %v1450 = vpack.c.bf16 %v1315, %v1312
    %v1451 = vpack.c.bf16 %v1323, %v1320
    %v1452 = vpack.c.bf16 %v1331, %v1328
    %v1453 = vpack.c.bf16 %v1339, %v1336
    %v1454 = vpack.c.bf16 %v1347, %v1344
    %v1455 = vpack.c.bf16 %v1388, %v1385
    %v1456 = vpack.c.bf16 %v1396, %v1393
    %v1457 = vpack.c.bf16 %v1404, %v1401
    %v1458 = vpack.c.bf16 %v1412, %v1409
    %v1459 = vpack.c.bf16 %v1420, %v1417
    %v1460 = vpack.c.bf16 %v1428, %v1425
    %v1461 = vpack.c.bf16 %v1436, %v1433
    %v1462 = vpack.c.bf16 %v1444, %v1441
    %v1479 = vunpack.c.l.b16 %v1447
    %v1480 = vunpack.c.h.b16 %v1447
    %v1481 = vunpack.c.l.b16 %v1448
    %v1482 = vunpack.c.h.b16 %v1448
    %v1483 = vunpack.c.l.b16 %v1449
    %v1484 = vunpack.c.h.b16 %v1449
    %v1485 = vunpack.c.l.b16 %v1450
    %v1486 = vunpack.c.h.b16 %v1450
    %v1487 = vunpack.c.l.b16 %v1451
    %v1488 = vunpack.c.h.b16 %v1451
    %v1489 = vunpack.c.l.b16 %v1452
    %v1490 = vunpack.c.h.b16 %v1452
    %v1491 = vunpack.c.l.b16 %v1453
    %v1492 = vunpack.c.h.b16 %v1453
    %v1493 = vunpack.c.l.b16 %v1454
    %v1494 = vunpack.c.h.b16 %v1454
    %v1495 = vunpack.c.l.b16 %v1455
    %v1496 = vunpack.c.h.b16 %v1455
    %v1497 = vunpack.c.l.b16 %v1456
    %v1498 = vunpack.c.h.b16 %v1456
    %v1499 = vunpack.c.l.b16 %v1457
    %v1500 = vunpack.c.h.b16 %v1457
    %v1501 = vunpack.c.l.b16 %v1458
    %v1502 = vunpack.c.h.b16 %v1458
    %v1503 = vunpack.c.l.b16 %v1459
    %v1504 = vunpack.c.h.b16 %v1459
    %v1505 = vunpack.c.l.b16 %v1460
    %v1506 = vunpack.c.h.b16 %v1460
    %v1507 = vunpack.c.l.b16 %v1461
    %v1508 = vunpack.c.h.b16 %v1461
    %v1509 = vunpack.c.l.b16 %v1462
    %v1510 = vunpack.c.h.b16 %v1462
    %v1511 = vpack.c.b16 %v1479, %v1479
    %v1512 = vpack.c.b16 %v1480, %v1480
    %v1513 = vpack.c.b16 %v1481, %v1481
    %v1514 = vpack.c.b16 %v1482, %v1482
    %v1515 = vpack.c.b16 %v1483, %v1483
    %v1516 = vpack.c.b16 %v1484, %v1484
    %v1517 = vpack.c.b16 %v1485, %v1485
    %v1518 = vpack.c.b16 %v1486, %v1486
    %v1519 = vpack.c.b16 %v1487, %v1487
    %v1520 = vpack.c.b16 %v1488, %v1488
    %v1521 = vpack.c.b16 %v1489, %v1489
    %v1522 = vpack.c.b16 %v1490, %v1490
    %v1523 = vpack.c.b16 %v1491, %v1491
    %v1524 = vpack.c.b16 %v1492, %v1492
    %v1525 = vpack.c.b16 %v1493, %v1493
    %v1526 = vpack.c.b16 %v1494, %v1494
    %v1527 = vpack.c.b16 %v1495, %v1495
    %v1528 = vpack.c.b16 %v1496, %v1496
    %v1529 = vpack.c.b16 %v1497, %v1497
    %v1530 = vpack.c.b16 %v1498, %v1498
    %v1531 = vpack.c.b16 %v1499, %v1499
    %v1532 = vpack.c.b16 %v1500, %v1500
    %v1533 = vpack.c.b16 %v1501, %v1501
    %v1534 = vpack.c.b16 %v1502, %v1502
    %v1535 = vpack.c.b16 %v1503, %v1503
    %v1536 = vpack.c.b16 %v1504, %v1504
    %v1537 = vpack.c.b16 %v1505, %v1505
    %v1538 = vpack.c.b16 %v1506, %v1506
    %v1539 = vpack.c.b16 %v1507, %v1507
    %v1540 = vpack.c.b16 %v1508, %v1508
    %v1541 = vpack.c.b16 %v1509, %v1509
    %v1542 = vpack.c.b16 %v1510, %v1510
    %vm1575 = vcmask 257024
    %1576 = vst.msk [vmem:[#allocation2] sm:$0xf] %vm1575, %v1511
    %1577 = vst.msk [vmem:[#allocation2 + $0x4] sm:$0xf] %vm1575, %v1512
    %1578 = vst.msk [vmem:[#allocation2 + $0x8] sm:$0xf] %vm1575, %v1513
    %1579 = vst.msk [vmem:[#allocation2 + $0xc] sm:$0xf] %vm1575, %v1514
    %1580 = vst.msk [vmem:[#allocation2 + $0x10] sm:$0xf] %vm1575, %v1515
    %1581 = vst.msk [vmem:[#allocation2 + $0x14] sm:$0xf] %vm1575, %v1516
    %1582 = vst.msk [vmem:[#allocation2 + $0x18] sm:$0xf] %vm1575, %v1517
    %1583 = vst.msk [vmem:[#allocation2 + $0x1c] sm:$0xf] %vm1575, %v1518
    %1584 = vst.msk [vmem:[#allocation2 + $0x20] sm:$0xf] %vm1575, %v1519
    %1585 = vst.msk [vmem:[#allocation2 + $0x24] sm:$0xf] %vm1575, %v1520
    %1586 = vst.msk [vmem:[#allocation2 + $0x28] sm:$0xf] %vm1575, %v1521
    %1587 = vst.msk [vmem:[#allocation2 + $0x2c] sm:$0xf] %vm1575, %v1522
    %1588 = vst.msk [vmem:[#allocation2 + $0x30] sm:$0xf] %vm1575, %v1523
    %1589 = vst.msk [vmem:[#allocation2 + $0x34] sm:$0xf] %vm1575, %v1524
    %1590 = vst.msk [vmem:[#allocation2 + $0x38] sm:$0xf] %vm1575, %v1525
    %1591 = vst.msk [vmem:[#allocation2 + $0x3c] sm:$0xf] %vm1575, %v1526
    %1592 = vst.msk [vmem:[#allocation2 + $0x40] sm:$0xf] %vm1575, %v1527
    %1593 = vst.msk [vmem:[#allocation2 + $0x44] sm:$0xf] %vm1575, %v1528
    %1594 = vst.msk [vmem:[#allocation2 + $0x48] sm:$0xf] %vm1575, %v1529
    %1595 = vst.msk [vmem:[#allocation2 + $0x4c] sm:$0xf] %vm1575, %v1530
    %1596 = vst.msk [vmem:[#allocation2 + $0x50] sm:$0xf] %vm1575, %v1531
    %1597 = vst.msk [vmem:[#allocation2 + $0x54] sm:$0xf] %vm1575, %v1532
    %1598 = vst.msk [vmem:[#allocation2 + $0x58] sm:$0xf] %vm1575, %v1533
    %1599 = vst.msk [vmem:[#allocation2 + $0x5c] sm:$0xf] %vm1575, %v1534
    %1600 = vst.msk [vmem:[#allocation2 + $0x60] sm:$0xf] %vm1575, %v1535
    %1601 = vst.msk [vmem:[#allocation2 + $0x64] sm:$0xf] %vm1575, %v1536
    %1602 = vst.msk [vmem:[#allocation2 + $0x68] sm:$0xf] %vm1575, %v1537
    %1603 = vst.msk [vmem:[#allocation2 + $0x6c] sm:$0xf] %vm1575, %v1538
    %1604 = vst.msk [vmem:[#allocation2 + $0x70] sm:$0xf] %vm1575, %v1539
    %1605 = vst.msk [vmem:[#allocation2 + $0x74] sm:$0xf] %vm1575, %v1540
    %1606 = vst.msk [vmem:[#allocation2 + $0x78] sm:$0xf] %vm1575, %v1541
    %1607 = vst.msk [vmem:[#allocation2 + $0x7c] sm:$0xf] %vm1575, %v1542
    %1616 = vrot.lane.b32.xlu0 %v610, 96
    %v1617 = vpop.permute.xlu0 %1616
    %1618 = vrot.lane.b32.xlu0 %v611, 96
    %v1619 = vpop.permute.xlu0 %1618
    %1620 = vrot.lane.b32.xlu0 %v612, 96
    %v1621 = vpop.permute.xlu0 %1620
    %1622 = vrot.lane.b32.xlu0 %v613, 96
    %v1623 = vpop.permute.xlu0 %1622
    %1624 = vrot.lane.b32.xlu0 %v614, 96
    %v1625 = vpop.permute.xlu0 %1624
    %1626 = vrot.lane.b32.xlu0 %v615, 96
    %v1627 = vpop.permute.xlu0 %1626
    %1628 = vrot.lane.b32.xlu0 %v616, 96
    %v1629 = vpop.permute.xlu0 %1628
    %1630 = vrot.lane.b32.xlu0 %v617, 96
    %v1631 = vpop.permute.xlu0 %1630
    %1640 = vrot.lane.b32.xlu0 %v626, 96
    %v1641 = vpop.permute.xlu0 %1640
    %1642 = vrot.lane.b32.xlu0 %v627, 96
    %v1643 = vpop.permute.xlu0 %1642
    %1644 = vrot.lane.b32.xlu0 %v628, 96
    %v1645 = vpop.permute.xlu0 %1644
    %1646 = vrot.lane.b32.xlu0 %v629, 96
    %v1647 = vpop.permute.xlu0 %1646
    %1648 = vrot.lane.b32.xlu0 %v630, 96
    %v1649 = vpop.permute.xlu0 %1648
    %1650 = vrot.lane.b32.xlu0 %v631, 96
    %v1651 = vpop.permute.xlu0 %1650
    %1652 = vrot.lane.b32.xlu0 %v632, 96
    %v1653 = vpop.permute.xlu0 %1652
    %1654 = vrot.lane.b32.xlu0 %v633, 96
    %v1655 = vpop.permute.xlu0 %1654
    %v1657 = vsel %vm658, %v1617, 0
    %v1660 = vsel %vm658, %v1619, 0
    %v1663 = vsel %vm658, %v1621, 0
    %v1666 = vsel %vm658, %v1623, 0
    %v1669 = vsel %vm658, %v1625, 0
    %v1672 = vsel %vm658, %v1627, 0
    %v1675 = vsel %vm658, %v1629, 0
    %v1678 = vsel %vm658, %v1631, 0
    %v1681 = vsel %vm658, %v1641, 0
    %v1684 = vsel %vm658, %v1643, 0
    %v1687 = vsel %vm658, %v1645, 0
    %v1690 = vsel %vm658, %v1647, 0
    %v1693 = vsel %vm658, %v1649, 0
    %v1696 = vsel %vm658, %v1651, 0
    %v1699 = vsel %vm658, %v1653, 0
    %v1702 = vsel %vm658, %v1655, 0
    %1704 = vmatprep.subr.bf16.mxu0 0
    %1705 = vmatpush1.bf16.xpose.msra.mxu0 %v1702
    %1706 = vmatprep.subr.bf16.mxu0 0
    %1707 = vmatpush1.bf16.xpose.msra.mxu0 %v1699
    %1708 = vmatprep.subr.bf16.mxu0 0
    %1709 = vmatpush1.bf16.xpose.msra.mxu0 %v1696
    %1710 = vmatprep.subr.bf16.mxu0 0
    %1711 = vmatpush1.bf16.xpose.msra.mxu0 %v1693
    %1712 = vmatprep.subr.bf16.mxu0 0
    %1713 = vmatpush1.bf16.xpose.msra.mxu0 %v1690
    %1714 = vmatprep.subr.bf16.mxu0 0
    %1715 = vmatpush1.bf16.xpose.msra.mxu0 %v1687
    %1716 = vmatprep.subr.bf16.mxu0 0
    %1717 = vmatpush1.bf16.xpose.msra.mxu0 %v1684
    %1718 = vmatprep.subr.bf16.mxu0 0
    %1719 = vmatpush1.bf16.xpose.msra.mxu0 %v1681
    %1720 = vmatprep.subr.bf16.mxu0 0
    %1721 = vmatpush2.bf16.xpose.msra.mxu0 0
    %1722 = vmatprep.subr.bf16.mxu0 0
    %1723 = vmatpush2.bf16.xpose.msra.mxu0 0
    %1724 = vmatprep.subr.bf16.mxu0 0
    %1725 = vmatpush2.bf16.xpose.msra.mxu0 0
    %1726 = vmatprep.subr.bf16.mxu0 0
    %1727 = vmatpush2.bf16.xpose.msra.mxu0 0
    %1728 = vmatprep.subr.bf16.mxu0 0
    %1729 = vmatpush2.bf16.xpose.msra.mxu0 0
    %1730 = vmatprep.subr.bf16.mxu0 0
    %1731 = vmatpush2.bf16.xpose.msra.mxu0 0
    %1732 = vmatprep.subr.bf16.mxu0 0
    %1733 = vmatpush2.bf16.xpose.msra.mxu0 0
    %1734 = vmatprep.subr.bf16.mxu0 0
    %1735 = vmatpush2.bf16.xpose.msra.mxu0 0
    %1736 = vmatprep.mubr.bf16.mxu0 0
    %1737 = vmatmul.mubr.bf16.gmra.mxu0 %v1657
    %v1738 = vpop.f32.mrf.mxu0
    %v1739 = vadd.f32 0.0, %v1738
    %v1740 = vpop.f32.mrf.mxu0
    %v1741 = vpop.f32.mrf.mxu0
    %v1742 = vadd.f32 0.0, %v1741
    %v1743 = vpop.f32.mrf.mxu0
    %1744 = vmatprep.mubr.bf16.mxu0 0
    %1745 = vmatmul.mubr.bf16.gmra.mxu0 %v1660
    %v1746 = vpop.f32.mrf.mxu0
    %v1747 = vadd.f32 0.0, %v1746
    %v1748 = vpop.f32.mrf.mxu0
    %v1749 = vpop.f32.mrf.mxu0
    %v1750 = vadd.f32 0.0, %v1749
    %v1751 = vpop.f32.mrf.mxu0
    %1752 = vmatprep.mubr.bf16.mxu0 0
    %1753 = vmatmul.mubr.bf16.gmra.mxu0 %v1663
    %v1754 = vpop.f32.mrf.mxu0
    %v1755 = vadd.f32 0.0, %v1754
    %v1756 = vpop.f32.mrf.mxu0
    %v1757 = vpop.f32.mrf.mxu0
    %v1758 = vadd.f32 0.0, %v1757
    %v1759 = vpop.f32.mrf.mxu0
    %1760 = vmatprep.mubr.bf16.mxu0 0
    %1761 = vmatmul.mubr.bf16.gmra.mxu0 %v1666
    %v1762 = vpop.f32.mrf.mxu0
    %v1763 = vadd.f32 0.0, %v1762
    %v1764 = vpop.f32.mrf.mxu0
    %v1765 = vpop.f32.mrf.mxu0
    %v1766 = vadd.f32 0.0, %v1765
    %v1767 = vpop.f32.mrf.mxu0
    %1768 = vmatprep.mubr.bf16.mxu0 0
    %1769 = vmatmul.mubr.bf16.gmra.mxu0 %v1669
    %v1770 = vpop.f32.mrf.mxu0
    %v1771 = vadd.f32 0.0, %v1770
    %v1772 = vpop.f32.mrf.mxu0
    %v1773 = vpop.f32.mrf.mxu0
    %v1774 = vadd.f32 0.0, %v1773
    %v1775 = vpop.f32.mrf.mxu0
    %1776 = vmatprep.mubr.bf16.mxu0 0
    %1777 = vmatmul.mubr.bf16.gmra.mxu0 %v1672
    %v1778 = vpop.f32.mrf.mxu0
    %v1779 = vadd.f32 0.0, %v1778
    %v1780 = vpop.f32.mrf.mxu0
    %v1781 = vpop.f32.mrf.mxu0
    %v1782 = vadd.f32 0.0, %v1781
    %v1783 = vpop.f32.mrf.mxu0
    %1784 = vmatprep.mubr.bf16.mxu0 0
    %1785 = vmatmul.mubr.bf16.gmra.mxu0 %v1675
    %v1786 = vpop.f32.mrf.mxu0
    %v1787 = vadd.f32 0.0, %v1786
    %v1788 = vpop.f32.mrf.mxu0
    %v1789 = vpop.f32.mrf.mxu0
    %v1790 = vadd.f32 0.0, %v1789
    %v1791 = vpop.f32.mrf.mxu0
    %1792 = vmatprep.mubr.bf16.mxu0 0
    %1793 = vmatmul.mubr.bf16.gmra.mxu0 %v1678
    %v1794 = vpop.f32.mrf.mxu0
    %v1795 = vadd.f32 0.0, %v1794
    %v1796 = vpop.f32.mrf.mxu0
    %v1797 = vpop.f32.mrf.mxu0
    %v1798 = vadd.f32 0.0, %v1797
    %v1799 = vpop.f32.mrf.mxu0
    %1800 = vdwg.mxu0
    %1809 = vrot.lane.b32.xlu0 %v618, 96
    %v1810 = vpop.permute.xlu0 %1809
    %1811 = vrot.lane.b32.xlu0 %v619, 96
    %v1812 = vpop.permute.xlu0 %1811
    %1813 = vrot.lane.b32.xlu0 %v620, 96
    %v1814 = vpop.permute.xlu0 %1813
    %1815 = vrot.lane.b32.xlu0 %v621, 96
    %v1816 = vpop.permute.xlu0 %1815
    %1817 = vrot.lane.b32.xlu0 %v622, 96
    %v1818 = vpop.permute.xlu0 %1817
    %1819 = vrot.lane.b32.xlu0 %v623, 96
    %v1820 = vpop.permute.xlu0 %1819
    %1821 = vrot.lane.b32.xlu0 %v624, 96
    %v1822 = vpop.permute.xlu0 %1821
    %1823 = vrot.lane.b32.xlu0 %v625, 96
    %v1824 = vpop.permute.xlu0 %1823
    %1833 = vrot.lane.b32.xlu0 %v634, 96
    %v1834 = vpop.permute.xlu0 %1833
    %1835 = vrot.lane.b32.xlu0 %v635, 96
    %v1836 = vpop.permute.xlu0 %1835
    %1837 = vrot.lane.b32.xlu0 %v636, 96
    %v1838 = vpop.permute.xlu0 %1837
    %1839 = vrot.lane.b32.xlu0 %v637, 96
    %v1840 = vpop.permute.xlu0 %1839
    %1841 = vrot.lane.b32.xlu0 %v638, 96
    %v1842 = vpop.permute.xlu0 %1841
    %1843 = vrot.lane.b32.xlu0 %v639, 96
    %v1844 = vpop.permute.xlu0 %1843
    %1845 = vrot.lane.b32.xlu0 %v640, 96
    %v1846 = vpop.permute.xlu0 %1845
    %1847 = vrot.lane.b32.xlu0 %v641, 96
    %v1848 = vpop.permute.xlu0 %1847
    %v1850 = vsel %vm658, %v1810, 0
    %v1853 = vsel %vm658, %v1812, 0
    %v1856 = vsel %vm658, %v1814, 0
    %v1859 = vsel %vm658, %v1816, 0
    %v1862 = vsel %vm658, %v1818, 0
    %v1865 = vsel %vm658, %v1820, 0
    %v1868 = vsel %vm658, %v1822, 0
    %v1871 = vsel %vm658, %v1824, 0
    %v1874 = vsel %vm658, %v1834, 0
    %v1877 = vsel %vm658, %v1836, 0
    %v1880 = vsel %vm658, %v1838, 0
    %v1883 = vsel %vm658, %v1840, 0
    %v1886 = vsel %vm658, %v1842, 0
    %v1889 = vsel %vm658, %v1844, 0
    %v1892 = vsel %vm658, %v1846, 0
    %v1895 = vsel %vm658, %v1848, 0
    %1897 = vmatprep.subr.bf16.mxu0 0
    %1898 = vmatpush1.bf16.xpose.msra.mxu0 %v1895
    %1899 = vmatprep.subr.bf16.mxu0 0
    %1900 = vmatpush1.bf16.xpose.msra.mxu0 %v1892
    %1901 = vmatprep.subr.bf16.mxu0 0
    %1902 = vmatpush1.bf16.xpose.msra.mxu0 %v1889
    %1903 = vmatprep.subr.bf16.mxu0 0
    %1904 = vmatpush1.bf16.xpose.msra.mxu0 %v1886
    %1905 = vmatprep.subr.bf16.mxu0 0
    %1906 = vmatpush1.bf16.xpose.msra.mxu0 %v1883
    %1907 = vmatprep.subr.bf16.mxu0 0
    %1908 = vmatpush1.bf16.xpose.msra.mxu0 %v1880
    %1909 = vmatprep.subr.bf16.mxu0 0
    %1910 = vmatpush1.bf16.xpose.msra.mxu0 %v1877
    %1911 = vmatprep.subr.bf16.mxu0 0
    %1912 = vmatpush1.bf16.xpose.msra.mxu0 %v1874
    %1913 = vmatprep.subr.bf16.mxu0 0
    %1914 = vmatpush2.bf16.xpose.msra.mxu0 0
    %1915 = vmatprep.subr.bf16.mxu0 0
    %1916 = vmatpush2.bf16.xpose.msra.mxu0 0
    %1917 = vmatprep.subr.bf16.mxu0 0
    %1918 = vmatpush2.bf16.xpose.msra.mxu0 0
    %1919 = vmatprep.subr.bf16.mxu0 0
    %1920 = vmatpush2.bf16.xpose.msra.mxu0 0
    %1921 = vmatprep.subr.bf16.mxu0 0
    %1922 = vmatpush2.bf16.xpose.msra.mxu0 0
    %1923 = vmatprep.subr.bf16.mxu0 0
    %1924 = vmatpush2.bf16.xpose.msra.mxu0 0
    %1925 = vmatprep.subr.bf16.mxu0 0
    %1926 = vmatpush2.bf16.xpose.msra.mxu0 0
    %1927 = vmatprep.subr.bf16.mxu0 0
    %1928 = vmatpush2.bf16.xpose.msra.mxu0 0
    %1929 = vmatprep.mubr.bf16.mxu0 0
    %1930 = vmatmul.mubr.bf16.gmra.mxu0 %v1850
    %v1931 = vpop.f32.mrf.mxu0
    %v1932 = vadd.f32 0.0, %v1931
    %v1933 = vpop.f32.mrf.mxu0
    %v1934 = vpop.f32.mrf.mxu0
    %v1935 = vadd.f32 0.0, %v1934
    %v1936 = vpop.f32.mrf.mxu0
    %1937 = vmatprep.mubr.bf16.mxu0 0
    %1938 = vmatmul.mubr.bf16.gmra.mxu0 %v1853
    %v1939 = vpop.f32.mrf.mxu0
    %v1940 = vadd.f32 0.0, %v1939
    %v1941 = vpop.f32.mrf.mxu0
    %v1942 = vpop.f32.mrf.mxu0
    %v1943 = vadd.f32 0.0, %v1942
    %v1944 = vpop.f32.mrf.mxu0
    %1945 = vmatprep.mubr.bf16.mxu0 0
    %1946 = vmatmul.mubr.bf16.gmra.mxu0 %v1856
    %v1947 = vpop.f32.mrf.mxu0
    %v1948 = vadd.f32 0.0, %v1947
    %v1949 = vpop.f32.mrf.mxu0
    %v1950 = vpop.f32.mrf.mxu0
    %v1951 = vadd.f32 0.0, %v1950
    %v1952 = vpop.f32.mrf.mxu0
    %1953 = vmatprep.mubr.bf16.mxu0 0
    %1954 = vmatmul.mubr.bf16.gmra.mxu0 %v1859
    %v1955 = vpop.f32.mrf.mxu0
    %v1956 = vadd.f32 0.0, %v1955
    %v1957 = vpop.f32.mrf.mxu0
    %v1958 = vpop.f32.mrf.mxu0
    %v1959 = vadd.f32 0.0, %v1958
    %v1960 = vpop.f32.mrf.mxu0
    %1961 = vmatprep.mubr.bf16.mxu0 0
    %1962 = vmatmul.mubr.bf16.gmra.mxu0 %v1862
    %v1963 = vpop.f32.mrf.mxu0
    %v1964 = vadd.f32 0.0, %v1963
    %v1965 = vpop.f32.mrf.mxu0
    %v1966 = vpop.f32.mrf.mxu0
    %v1967 = vadd.f32 0.0, %v1966
    %v1968 = vpop.f32.mrf.mxu0
    %1969 = vmatprep.mubr.bf16.mxu0 0
    %1970 = vmatmul.mubr.bf16.gmra.mxu0 %v1865
    %v1971 = vpop.f32.mrf.mxu0
    %v1972 = vadd.f32 0.0, %v1971
    %v1973 = vpop.f32.mrf.mxu0
    %v1974 = vpop.f32.mrf.mxu0
    %v1975 = vadd.f32 0.0, %v1974
    %v1976 = vpop.f32.mrf.mxu0
    %1977 = vmatprep.mubr.bf16.mxu0 0
    %1978 = vmatmul.mubr.bf16.gmra.mxu0 %v1868
    %v1979 = vpop.f32.mrf.mxu0
    %v1980 = vadd.f32 0.0, %v1979
    %v1981 = vpop.f32.mrf.mxu0
    %v1982 = vpop.f32.mrf.mxu0
    %v1983 = vadd.f32 0.0, %v1982
    %v1984 = vpop.f32.mrf.mxu0
    %1985 = vmatprep.mubr.bf16.mxu0 0
    %1986 = vmatmul.mubr.bf16.gmra.mxu0 %v1871
    %v1987 = vpop.f32.mrf.mxu0
    %v1988 = vadd.f32 0.0, %v1987
    %v1989 = vpop.f32.mrf.mxu0
    %v1990 = vpop.f32.mrf.mxu0
    %v1991 = vadd.f32 0.0, %v1990
    %v1992 = vpop.f32.mrf.mxu0
    %1993 = vdwg.mxu0
    %1994 = vmax.xlane.f32.xlu0 %v1739
    %v1995 = vpop.xlane.xlu0 %1994
    %1996 = vmax.xlane.f32.xlu0 %v1742
    %v1997 = vpop.xlane.xlu0 %1996
    %1998 = vmax.xlane.f32.xlu0 %v1747
    %v1999 = vpop.xlane.xlu0 %1998
    %2000 = vmax.xlane.f32.xlu0 %v1750
    %v2001 = vpop.xlane.xlu0 %2000
    %2002 = vmax.xlane.f32.xlu0 %v1755
    %v2003 = vpop.xlane.xlu0 %2002
    %2004 = vmax.xlane.f32.xlu0 %v1758
    %v2005 = vpop.xlane.xlu0 %2004
    %2006 = vmax.xlane.f32.xlu0 %v1763
    %v2007 = vpop.xlane.xlu0 %2006
    %2008 = vmax.xlane.f32.xlu0 %v1766
    %v2009 = vpop.xlane.xlu0 %2008
    %2010 = vmax.xlane.f32.xlu0 %v1771
    %v2011 = vpop.xlane.xlu0 %2010
    %2012 = vmax.xlane.f32.xlu0 %v1774
    %v2013 = vpop.xlane.xlu0 %2012
    %2014 = vmax.xlane.f32.xlu0 %v1779
    %v2015 = vpop.xlane.xlu0 %2014
    %2016 = vmax.xlane.f32.xlu0 %v1782
    %v2017 = vpop.xlane.xlu0 %2016
    %2018 = vmax.xlane.f32.xlu0 %v1787
    %v2019 = vpop.xlane.xlu0 %2018
    %2020 = vmax.xlane.f32.xlu0 %v1790
    %v2021 = vpop.xlane.xlu0 %2020
    %2022 = vmax.xlane.f32.xlu0 %v1795
    %v2023 = vpop.xlane.xlu0 %2022
    %2024 = vmax.xlane.f32.xlu0 %v1798
    %v2025 = vpop.xlane.xlu0 %2024
    %2026 = vmax.xlane.f32.xlu0 %v1932
    %v2027 = vpop.xlane.xlu0 %2026
    %2028 = vmax.xlane.f32.xlu0 %v1935
    %v2029 = vpop.xlane.xlu0 %2028
    %2030 = vmax.xlane.f32.xlu0 %v1940
    %v2031 = vpop.xlane.xlu0 %2030
    %2032 = vmax.xlane.f32.xlu0 %v1943
    %v2033 = vpop.xlane.xlu0 %2032
    %2034 = vmax.xlane.f32.xlu0 %v1948
    %v2035 = vpop.xlane.xlu0 %2034
    %2036 = vmax.xlane.f32.xlu0 %v1951
    %v2037 = vpop.xlane.xlu0 %2036
    %2038 = vmax.xlane.f32.xlu0 %v1956
    %v2039 = vpop.xlane.xlu0 %2038
    %2040 = vmax.xlane.f32.xlu0 %v1959
    %v2041 = vpop.xlane.xlu0 %2040
    %2042 = vmax.xlane.f32.xlu0 %v1964
    %v2043 = vpop.xlane.xlu0 %2042
    %2044 = vmax.xlane.f32.xlu0 %v1967
    %v2045 = vpop.xlane.xlu0 %2044
    %2046 = vmax.xlane.f32.xlu0 %v1972
    %v2047 = vpop.xlane.xlu0 %2046
    %2048 = vmax.xlane.f32.xlu0 %v1975
    %v2049 = vpop.xlane.xlu0 %2048
    %2050 = vmax.xlane.f32.xlu0 %v1980
    %v2051 = vpop.xlane.xlu0 %2050
    %2052 = vmax.xlane.f32.xlu0 %v1983
    %v2053 = vpop.xlane.xlu0 %2052
    %2054 = vmax.xlane.f32.xlu0 %v1988
    %v2055 = vpop.xlane.xlu0 %2054
    %2056 = vmax.xlane.f32.xlu0 %v1991
    %v2057 = vpop.xlane.xlu0 %2056
    %v2058 = vsub.f32 %v1739, %v1995
    %v2059 = vsub.f32 %v1742, %v1997
    %v2060 = vsub.f32 %v1747, %v1999
    %v2061 = vsub.f32 %v1750, %v2001
    %v2062 = vsub.f32 %v1755, %v2003
    %v2063 = vsub.f32 %v1758, %v2005
    %v2064 = vsub.f32 %v1763, %v2007
    %v2065 = vsub.f32 %v1766, %v2009
    %v2066 = vsub.f32 %v1771, %v2011
    %v2067 = vsub.f32 %v1774, %v2013
    %v2068 = vsub.f32 %v1779, %v2015
    %v2069 = vsub.f32 %v1782, %v2017
    %v2070 = vsub.f32 %v1787, %v2019
    %v2071 = vsub.f32 %v1790, %v2021
    %v2072 = vsub.f32 %v1795, %v2023
    %v2073 = vsub.f32 %v1798, %v2025
    %v2074 = vsub.f32 %v1932, %v2027
    %v2075 = vsub.f32 %v1935, %v2029
    %v2076 = vsub.f32 %v1940, %v2031
    %v2077 = vsub.f32 %v1943, %v2033
    %v2078 = vsub.f32 %v1948, %v2035
    %v2079 = vsub.f32 %v1951, %v2037
    %v2080 = vsub.f32 %v1956, %v2039
    %v2081 = vsub.f32 %v1959, %v2041
    %v2082 = vsub.f32 %v1964, %v2043
    %v2083 = vsub.f32 %v1967, %v2045
    %v2084 = vsub.f32 %v1972, %v2047
    %v2085 = vsub.f32 %v1975, %v2049
    %v2086 = vsub.f32 %v1980, %v2051
    %v2087 = vsub.f32 %v1983, %v2053
    %v2088 = vsub.f32 %v1988, %v2055
    %v2089 = vsub.f32 %v1991, %v2057
    %v2090 = vmul.f32 %v2058, 1.442695
    %v2091 = vpow.pop %v2090
    %v2092 = vmul.f32 %v2059, 1.442695
    %v2093 = vpow.pop %v2092
    %v2094 = vmul.f32 %v2060, 1.442695
    %v2095 = vpow.pop %v2094
    %v2096 = vmul.f32 %v2061, 1.442695
    %v2097 = vpow.pop %v2096
    %v2098 = vmul.f32 %v2062, 1.442695
    %v2099 = vpow.pop %v2098
    %v2100 = vmul.f32 %v2063, 1.442695
    %v2101 = vpow.pop %v2100
    %v2102 = vmul.f32 %v2064, 1.442695
    %v2103 = vpow.pop %v2102
    %v2104 = vmul.f32 %v2065, 1.442695
    %v2105 = vpow.pop %v2104
    %v2106 = vmul.f32 %v2066, 1.442695
    %v2107 = vpow.pop %v2106
    %v2108 = vmul.f32 %v2067, 1.442695
    %v2109 = vpow.pop %v2108
    %v2110 = vmul.f32 %v2068, 1.442695
    %v2111 = vpow.pop %v2110
    %v2112 = vmul.f32 %v2069, 1.442695
    %v2113 = vpow.pop %v2112
    %v2114 = vmul.f32 %v2070, 1.442695
    %v2115 = vpow.pop %v2114
    %v2116 = vmul.f32 %v2071, 1.442695
    %v2117 = vpow.pop %v2116
    %v2118 = vmul.f32 %v2072, 1.442695
    %v2119 = vpow.pop %v2118
    %v2120 = vmul.f32 %v2073, 1.442695
    %v2121 = vpow.pop %v2120
    %v2122 = vmul.f32 %v2074, 1.442695
    %v2123 = vpow.pop %v2122
    %v2124 = vmul.f32 %v2075, 1.442695
    %v2125 = vpow.pop %v2124
    %v2126 = vmul.f32 %v2076, 1.442695
    %v2127 = vpow.pop %v2126
    %v2128 = vmul.f32 %v2077, 1.442695
    %v2129 = vpow.pop %v2128
    %v2130 = vmul.f32 %v2078, 1.442695
    %v2131 = vpow.pop %v2130
    %v2132 = vmul.f32 %v2079, 1.442695
    %v2133 = vpow.pop %v2132
    %v2134 = vmul.f32 %v2080, 1.442695
    %v2135 = vpow.pop %v2134
    %v2136 = vmul.f32 %v2081, 1.442695
    %v2137 = vpow.pop %v2136
    %v2138 = vmul.f32 %v2082, 1.442695
    %v2139 = vpow.pop %v2138
    %v2140 = vmul.f32 %v2083, 1.442695
    %v2141 = vpow.pop %v2140
    %v2142 = vmul.f32 %v2084, 1.442695
    %v2143 = vpow.pop %v2142
    %v2144 = vmul.f32 %v2085, 1.442695
    %v2145 = vpow.pop %v2144
    %v2146 = vmul.f32 %v2086, 1.442695
    %v2147 = vpow.pop %v2146
    %v2148 = vmul.f32 %v2087, 1.442695
    %v2149 = vpow.pop %v2148
    %v2150 = vmul.f32 %v2088, 1.442695
    %v2151 = vpow.pop %v2150
    %v2152 = vmul.f32 %v2089, 1.442695
    %v2153 = vpow.pop %v2152
    %2154 = vadd.xlane.f32.xlu0 %v2091
    %v2155 = vpop.xlane.xlu0 %2154
    %2156 = vadd.xlane.f32.xlu0 %v2093
    %v2157 = vpop.xlane.xlu0 %2156
    %2158 = vadd.xlane.f32.xlu0 %v2095
    %v2159 = vpop.xlane.xlu0 %2158
    %2160 = vadd.xlane.f32.xlu0 %v2097
    %v2161 = vpop.xlane.xlu0 %2160
    %2162 = vadd.xlane.f32.xlu0 %v2099
    %v2163 = vpop.xlane.xlu0 %2162
    %2164 = vadd.xlane.f32.xlu0 %v2101
    %v2165 = vpop.xlane.xlu0 %2164
    %2166 = vadd.xlane.f32.xlu0 %v2103
    %v2167 = vpop.xlane.xlu0 %2166
    %2168 = vadd.xlane.f32.xlu0 %v2105
    %v2169 = vpop.xlane.xlu0 %2168
    %2170 = vadd.xlane.f32.xlu0 %v2107
    %v2171 = vpop.xlane.xlu0 %2170
    %2172 = vadd.xlane.f32.xlu0 %v2109
    %v2173 = vpop.xlane.xlu0 %2172
    %2174 = vadd.xlane.f32.xlu0 %v2111
    %v2175 = vpop.xlane.xlu0 %2174
    %2176 = vadd.xlane.f32.xlu0 %v2113
    %v2177 = vpop.xlane.xlu0 %2176
    %2178 = vadd.xlane.f32.xlu0 %v2115
    %v2179 = vpop.xlane.xlu0 %2178
    %2180 = vadd.xlane.f32.xlu0 %v2117
    %v2181 = vpop.xlane.xlu0 %2180
    %2182 = vadd.xlane.f32.xlu0 %v2119
    %v2183 = vpop.xlane.xlu0 %2182
    %2184 = vadd.xlane.f32.xlu0 %v2121
    %v2185 = vpop.xlane.xlu0 %2184
    %2186 = vadd.xlane.f32.xlu0 %v2123
    %v2187 = vpop.xlane.xlu0 %2186
    %2188 = vadd.xlane.f32.xlu0 %v2125
    %v2189 = vpop.xlane.xlu0 %2188
    %2190 = vadd.xlane.f32.xlu0 %v2127
    %v2191 = vpop.xlane.xlu0 %2190
    %2192 = vadd.xlane.f32.xlu0 %v2129
    %v2193 = vpop.xlane.xlu0 %2192
    %2194 = vadd.xlane.f32.xlu0 %v2131
    %v2195 = vpop.xlane.xlu0 %2194
    %2196 = vadd.xlane.f32.xlu0 %v2133
    %v2197 = vpop.xlane.xlu0 %2196
    %2198 = vadd.xlane.f32.xlu0 %v2135
    %v2199 = vpop.xlane.xlu0 %2198
    %2200 = vadd.xlane.f32.xlu0 %v2137
    %v2201 = vpop.xlane.xlu0 %2200
    %2202 = vadd.xlane.f32.xlu0 %v2139
    %v2203 = vpop.xlane.xlu0 %2202
    %2204 = vadd.xlane.f32.xlu0 %v2141
    %v2205 = vpop.xlane.xlu0 %2204
    %2206 = vadd.xlane.f32.xlu0 %v2143
    %v2207 = vpop.xlane.xlu0 %2206
    %2208 = vadd.xlane.f32.xlu0 %v2145
    %v2209 = vpop.xlane.xlu0 %2208
    %2210 = vadd.xlane.f32.xlu0 %v2147
    %v2211 = vpop.xlane.xlu0 %2210
    %2212 = vadd.xlane.f32.xlu0 %v2149
    %v2213 = vpop.xlane.xlu0 %2212
    %2214 = vadd.xlane.f32.xlu0 %v2151
    %v2215 = vpop.xlane.xlu0 %2214
    %2216 = vadd.xlane.f32.xlu0 %v2153
    %v2217 = vpop.xlane.xlu0 %2216
    %v2218 = vrcp.pop %v2155
    %v2219 = vrcp.pop %v2157
    %v2220 = vrcp.pop %v2159
    %v2221 = vrcp.pop %v2161
    %v2222 = vrcp.pop %v2163
    %v2223 = vrcp.pop %v2165
    %v2224 = vrcp.pop %v2167
    %v2225 = vrcp.pop %v2169
    %v2226 = vrcp.pop %v2171
    %v2227 = vrcp.pop %v2173
    %v2228 = vrcp.pop %v2175
    %v2229 = vrcp.pop %v2177
    %v2230 = vrcp.pop %v2179
    %v2231 = vrcp.pop %v2181
    %v2232 = vrcp.pop %v2183
    %v2233 = vrcp.pop %v2185
    %v2234 = vrcp.pop %v2187
    %v2235 = vrcp.pop %v2189
    %v2236 = vrcp.pop %v2191
    %v2237 = vrcp.pop %v2193
    %v2238 = vrcp.pop %v2195
    %v2239 = vrcp.pop %v2197
    %v2240 = vrcp.pop %v2199
    %v2241 = vrcp.pop %v2201
    %v2242 = vrcp.pop %v2203
    %v2243 = vrcp.pop %v2205
    %v2244 = vrcp.pop %v2207
    %v2245 = vrcp.pop %v2209
    %v2246 = vrcp.pop %v2211
    %v2247 = vrcp.pop %v2213
    %v2248 = vrcp.pop %v2215
    %v2249 = vrcp.pop %v2217
    %v2250 = vmul.f32 %v2091, %v2218
    %v2251 = vmul.f32 %v2093, %v2219
    %v2252 = vmul.f32 %v2095, %v2220
    %v2253 = vmul.f32 %v2097, %v2221
    %v2254 = vmul.f32 %v2099, %v2222
    %v2255 = vmul.f32 %v2101, %v2223
    %v2256 = vmul.f32 %v2103, %v2224
    %v2257 = vmul.f32 %v2105, %v2225
    %v2258 = vmul.f32 %v2107, %v2226
    %v2259 = vmul.f32 %v2109, %v2227
    %v2260 = vmul.f32 %v2111, %v2228
    %v2261 = vmul.f32 %v2113, %v2229
    %v2262 = vmul.f32 %v2115, %v2230
    %v2263 = vmul.f32 %v2117, %v2231
    %v2264 = vmul.f32 %v2119, %v2232
    %v2265 = vmul.f32 %v2121, %v2233
    %v2266 = vmul.f32 %v2123, %v2234
    %v2267 = vmul.f32 %v2125, %v2235
    %v2268 = vmul.f32 %v2127, %v2236
    %v2269 = vmul.f32 %v2129, %v2237
    %v2270 = vmul.f32 %v2131, %v2238
    %v2271 = vmul.f32 %v2133, %v2239
    %v2272 = vmul.f32 %v2135, %v2240
    %v2273 = vmul.f32 %v2137, %v2241
    %v2274 = vmul.f32 %v2139, %v2242
    %v2275 = vmul.f32 %v2141, %v2243
    %v2276 = vmul.f32 %v2143, %v2244
    %v2277 = vmul.f32 %v2145, %v2245
    %v2278 = vmul.f32 %v2147, %v2246
    %v2279 = vmul.f32 %v2149, %v2247
    %v2280 = vmul.f32 %v2151, %v2248
    %v2281 = vmul.f32 %v2153, %v2249
    %v2282 = vpack.c.bf16 %v2251, %v2250
    %v2283 = vpack.c.bf16 %v2253, %v2252
    %v2284 = vpack.c.bf16 %v2255, %v2254
    %v2285 = vpack.c.bf16 %v2257, %v2256
    %v2286 = vpack.c.bf16 %v2259, %v2258
    %v2287 = vpack.c.bf16 %v2261, %v2260
    %v2288 = vpack.c.bf16 %v2263, %v2262
    %v2289 = vpack.c.bf16 %v2265, %v2264
    %v2290 = vpack.c.bf16 %v2267, %v2266
    %v2291 = vpack.c.bf16 %v2269, %v2268
    %v2292 = vpack.c.bf16 %v2271, %v2270
    %v2293 = vpack.c.bf16 %v2273, %v2272
    %v2294 = vpack.c.bf16 %v2275, %v2274
    %v2295 = vpack.c.bf16 %v2277, %v2276
    %v2296 = vpack.c.bf16 %v2279, %v2278
    %v2297 = vpack.c.bf16 %v2281, %v2280
    %2306 = vrot.lane.b32.xlu0 %v642, 96
    %v2307 = vpop.permute.xlu0 %2306
    %2308 = vrot.lane.b32.xlu0 %v643, 96
    %v2309 = vpop.permute.xlu0 %2308
    %2310 = vrot.lane.b32.xlu0 %v644, 96
    %v2311 = vpop.permute.xlu0 %2310
    %2312 = vrot.lane.b32.xlu0 %v645, 96
    %v2313 = vpop.permute.xlu0 %2312
    %2314 = vrot.lane.b32.xlu0 %v646, 96
    %v2315 = vpop.permute.xlu0 %2314
    %2316 = vrot.lane.b32.xlu0 %v647, 96
    %v2317 = vpop.permute.xlu0 %2316
    %2318 = vrot.lane.b32.xlu0 %v648, 96
    %v2319 = vpop.permute.xlu0 %2318
    %2320 = vrot.lane.b32.xlu0 %v649, 96
    %v2321 = vpop.permute.xlu0 %2320
    %2330 = vmatprep.subr.bf16.mxu0 0
    %2331 = vmatpush1.bf16.msra.mxu0 %v2321
    %2332 = vmatprep.subr.bf16.mxu0 0
    %2333 = vmatpush1.bf16.msra.mxu0 %v2319
    %2334 = vmatprep.subr.bf16.mxu0 0
    %2335 = vmatpush1.bf16.msra.mxu0 %v2317
    %2336 = vmatprep.subr.bf16.mxu0 0
    %2337 = vmatpush1.bf16.msra.mxu0 %v2315
    %2338 = vmatprep.subr.bf16.mxu0 0
    %2339 = vmatpush1.bf16.msra.mxu0 %v2313
    %2340 = vmatprep.subr.bf16.mxu0 0
    %2341 = vmatpush1.bf16.msra.mxu0 %v2311
    %2342 = vmatprep.subr.bf16.mxu0 0
    %2343 = vmatpush1.bf16.msra.mxu0 %v2309
    %2344 = vmatprep.subr.bf16.mxu0 0
    %2345 = vmatpush1.bf16.msra.mxu0 %v2307
    %2346 = vmatprep.subr.bf16.mxu0 0
    %2347 = vmatpush2.bf16.msra.mxu0 0
    %2348 = vmatprep.subr.bf16.mxu0 0
    %2349 = vmatpush2.bf16.msra.mxu0 0
    %2350 = vmatprep.subr.bf16.mxu0 0
    %2351 = vmatpush2.bf16.msra.mxu0 0
    %2352 = vmatprep.subr.bf16.mxu0 0
    %2353 = vmatpush2.bf16.msra.mxu0 0
    %2354 = vmatprep.subr.bf16.mxu0 0
    %2355 = vmatpush2.bf16.msra.mxu0 0
    %2356 = vmatprep.subr.bf16.mxu0 0
    %2357 = vmatpush2.bf16.msra.mxu0 0
    %2358 = vmatprep.subr.bf16.mxu0 0
    %2359 = vmatpush2.bf16.msra.mxu0 0
    %2360 = vmatprep.subr.bf16.mxu0 0
    %2361 = vmatpush2.bf16.msra.mxu0 0
    %2362 = vmatprep.mubr.bf16.mxu0 0
    %2363 = vmatmul.mubr.bf16.gmra.mxu0 %v2282
    %v2364 = vpop.f32.mrf.mxu0
    %v2365 = vadd.f32 0.0, %v2364
    %v2366 = vpop.f32.mrf.mxu0
    %v2367 = vpop.f32.mrf.mxu0
    %v2368 = vadd.f32 0.0, %v2367
    %v2369 = vpop.f32.mrf.mxu0
    %2370 = vmatprep.mubr.bf16.mxu0 0
    %2371 = vmatmul.mubr.bf16.gmra.mxu0 %v2283
    %v2372 = vpop.f32.mrf.mxu0
    %v2373 = vadd.f32 0.0, %v2372
    %v2374 = vpop.f32.mrf.mxu0
    %v2375 = vpop.f32.mrf.mxu0
    %v2376 = vadd.f32 0.0, %v2375
    %v2377 = vpop.f32.mrf.mxu0
    %2378 = vmatprep.mubr.bf16.mxu0 0
    %2379 = vmatmul.mubr.bf16.gmra.mxu0 %v2284
    %v2380 = vpop.f32.mrf.mxu0
    %v2381 = vadd.f32 0.0, %v2380
    %v2382 = vpop.f32.mrf.mxu0
    %v2383 = vpop.f32.mrf.mxu0
    %v2384 = vadd.f32 0.0, %v2383
    %v2385 = vpop.f32.mrf.mxu0
    %2386 = vmatprep.mubr.bf16.mxu0 0
    %2387 = vmatmul.mubr.bf16.gmra.mxu0 %v2285
    %v2388 = vpop.f32.mrf.mxu0
    %v2389 = vadd.f32 0.0, %v2388
    %v2390 = vpop.f32.mrf.mxu0
    %v2391 = vpop.f32.mrf.mxu0
    %v2392 = vadd.f32 0.0, %v2391
    %v2393 = vpop.f32.mrf.mxu0
    %2394 = vmatprep.mubr.bf16.mxu0 0
    %2395 = vmatmul.mubr.bf16.gmra.mxu0 %v2286
    %v2396 = vpop.f32.mrf.mxu0
    %v2397 = vadd.f32 0.0, %v2396
    %v2398 = vpop.f32.mrf.mxu0
    %v2399 = vpop.f32.mrf.mxu0
    %v2400 = vadd.f32 0.0, %v2399
    %v2401 = vpop.f32.mrf.mxu0
    %2402 = vmatprep.mubr.bf16.mxu0 0
    %2403 = vmatmul.mubr.bf16.gmra.mxu0 %v2287
    %v2404 = vpop.f32.mrf.mxu0
    %v2405 = vadd.f32 0.0, %v2404
    %v2406 = vpop.f32.mrf.mxu0
    %v2407 = vpop.f32.mrf.mxu0
    %v2408 = vadd.f32 0.0, %v2407
    %v2409 = vpop.f32.mrf.mxu0
    %2410 = vmatprep.mubr.bf16.mxu0 0
    %2411 = vmatmul.mubr.bf16.gmra.mxu0 %v2288
    %v2412 = vpop.f32.mrf.mxu0
    %v2413 = vadd.f32 0.0, %v2412
    %v2414 = vpop.f32.mrf.mxu0
    %v2415 = vpop.f32.mrf.mxu0
    %v2416 = vadd.f32 0.0, %v2415
    %v2417 = vpop.f32.mrf.mxu0
    %2418 = vmatprep.mubr.bf16.mxu0 0
    %2419 = vmatmul.mubr.bf16.gmra.mxu0 %v2289
    %v2420 = vpop.f32.mrf.mxu0
    %v2421 = vadd.f32 0.0, %v2420
    %v2422 = vpop.f32.mrf.mxu0
    %v2423 = vpop.f32.mrf.mxu0
    %v2424 = vadd.f32 0.0, %v2423
    %v2425 = vpop.f32.mrf.mxu0
    %2426 = vdwg.mxu0
    %2435 = vrot.lane.b32.xlu0 %v650, 96
    %v2436 = vpop.permute.xlu0 %2435
    %2437 = vrot.lane.b32.xlu0 %v651, 96
    %v2438 = vpop.permute.xlu0 %2437
    %2439 = vrot.lane.b32.xlu0 %v652, 96
    %v2440 = vpop.permute.xlu0 %2439
    %2441 = vrot.lane.b32.xlu0 %v653, 96
    %v2442 = vpop.permute.xlu0 %2441
    %2443 = vrot.lane.b32.xlu0 %v654, 96
    %v2444 = vpop.permute.xlu0 %2443
    %2445 = vrot.lane.b32.xlu0 %v655, 96
    %v2446 = vpop.permute.xlu0 %2445
    %2447 = vrot.lane.b32.xlu0 %v656, 96
    %v2448 = vpop.permute.xlu0 %2447
    %2449 = vrot.lane.b32.xlu0 %v657, 96
    %v2450 = vpop.permute.xlu0 %2449
    %2459 = vmatprep.subr.bf16.mxu0 0
    %2460 = vmatpush1.bf16.msra.mxu0 %v2450
    %2461 = vmatprep.subr.bf16.mxu0 0
    %2462 = vmatpush1.bf16.msra.mxu0 %v2448
    %2463 = vmatprep.subr.bf16.mxu0 0
    %2464 = vmatpush1.bf16.msra.mxu0 %v2446
    %2465 = vmatprep.subr.bf16.mxu0 0
    %2466 = vmatpush1.bf16.msra.mxu0 %v2444
    %2467 = vmatprep.subr.bf16.mxu0 0
    %2468 = vmatpush1.bf16.msra.mxu0 %v2442
    %2469 = vmatprep.subr.bf16.mxu0 0
    %2470 = vmatpush1.bf16.msra.mxu0 %v2440
    %2471 = vmatprep.subr.bf16.mxu0 0
    %2472 = vmatpush1.bf16.msra.mxu0 %v2438
    %2473 = vmatprep.subr.bf16.mxu0 0
    %2474 = vmatpush1.bf16.msra.mxu0 %v2436
    %2475 = vmatprep.subr.bf16.mxu0 0
    %2476 = vmatpush2.bf16.msra.mxu0 0
    %2477 = vmatprep.subr.bf16.mxu0 0
    %2478 = vmatpush2.bf16.msra.mxu0 0
    %2479 = vmatprep.subr.bf16.mxu0 0
    %2480 = vmatpush2.bf16.msra.mxu0 0
    %2481 = vmatprep.subr.bf16.mxu0 0
    %2482 = vmatpush2.bf16.msra.mxu0 0
    %2483 = vmatprep.subr.bf16.mxu0 0
    %2484 = vmatpush2.bf16.msra.mxu0 0
    %2485 = vmatprep.subr.bf16.mxu0 0
    %2486 = vmatpush2.bf16.msra.mxu0 0
    %2487 = vmatprep.subr.bf16.mxu0 0
    %2488 = vmatpush2.bf16.msra.mxu0 0
    %2489 = vmatprep.subr.bf16.mxu0 0
    %2490 = vmatpush2.bf16.msra.mxu0 0
    %2491 = vmatprep.mubr.bf16.mxu0 0
    %2492 = vmatmul.mubr.bf16.gmra.mxu0 %v2290
    %v2493 = vpop.f32.mrf.mxu0
    %v2494 = vadd.f32 0.0, %v2493
    %v2495 = vpop.f32.mrf.mxu0
    %v2496 = vpop.f32.mrf.mxu0
    %v2497 = vadd.f32 0.0, %v2496
    %v2498 = vpop.f32.mrf.mxu0
    %2499 = vmatprep.mubr.bf16.mxu0 0
    %2500 = vmatmul.mubr.bf16.gmra.mxu0 %v2291
    %v2501 = vpop.f32.mrf.mxu0
    %v2502 = vadd.f32 0.0, %v2501
    %v2503 = vpop.f32.mrf.mxu0
    %v2504 = vpop.f32.mrf.mxu0
    %v2505 = vadd.f32 0.0, %v2504
    %v2506 = vpop.f32.mrf.mxu0
    %2507 = vmatprep.mubr.bf16.mxu0 0
    %2508 = vmatmul.mubr.bf16.gmra.mxu0 %v2292
    %v2509 = vpop.f32.mrf.mxu0
    %v2510 = vadd.f32 0.0, %v2509
    %v2511 = vpop.f32.mrf.mxu0
    %v2512 = vpop.f32.mrf.mxu0
    %v2513 = vadd.f32 0.0, %v2512
    %v2514 = vpop.f32.mrf.mxu0
    %2515 = vmatprep.mubr.bf16.mxu0 0
    %2516 = vmatmul.mubr.bf16.gmra.mxu0 %v2293
    %v2517 = vpop.f32.mrf.mxu0
    %v2518 = vadd.f32 0.0, %v2517
    %v2519 = vpop.f32.mrf.mxu0
    %v2520 = vpop.f32.mrf.mxu0
    %v2521 = vadd.f32 0.0, %v2520
    %v2522 = vpop.f32.mrf.mxu0
    %2523 = vmatprep.mubr.bf16.mxu0 0
    %2524 = vmatmul.mubr.bf16.gmra.mxu0 %v2294
    %v2525 = vpop.f32.mrf.mxu0
    %v2526 = vadd.f32 0.0, %v2525
    %v2527 = vpop.f32.mrf.mxu0
    %v2528 = vpop.f32.mrf.mxu0
    %v2529 = vadd.f32 0.0, %v2528
    %v2530 = vpop.f32.mrf.mxu0
    %2531 = vmatprep.mubr.bf16.mxu0 0
    %2532 = vmatmul.mubr.bf16.gmra.mxu0 %v2295
    %v2533 = vpop.f32.mrf.mxu0
    %v2534 = vadd.f32 0.0, %v2533
    %v2535 = vpop.f32.mrf.mxu0
    %v2536 = vpop.f32.mrf.mxu0
    %v2537 = vadd.f32 0.0, %v2536
    %v2538 = vpop.f32.mrf.mxu0
    %2539 = vmatprep.mubr.bf16.mxu0 0
    %2540 = vmatmul.mubr.bf16.gmra.mxu0 %v2296
    %v2541 = vpop.f32.mrf.mxu0
    %v2542 = vadd.f32 0.0, %v2541
    %v2543 = vpop.f32.mrf.mxu0
    %v2544 = vpop.f32.mrf.mxu0
    %v2545 = vadd.f32 0.0, %v2544
    %v2546 = vpop.f32.mrf.mxu0
    %2547 = vmatprep.mubr.bf16.mxu0 0
    %2548 = vmatmul.mubr.bf16.gmra.mxu0 %v2297
    %v2549 = vpop.f32.mrf.mxu0
    %v2550 = vadd.f32 0.0, %v2549
    %v2551 = vpop.f32.mrf.mxu0
    %v2552 = vpop.f32.mrf.mxu0
    %v2553 = vadd.f32 0.0, %v2552
    %v2554 = vpop.f32.mrf.mxu0
    %2555 = vdwg.mxu0
    %v2556 = vpack.c.bf16 %v2368, %v2365
    %v2557 = vpack.c.bf16 %v2376, %v2373
    %v2558 = vpack.c.bf16 %v2384, %v2381
    %v2559 = vpack.c.bf16 %v2392, %v2389
    %v2560 = vpack.c.bf16 %v2400, %v2397
    %v2561 = vpack.c.bf16 %v2408, %v2405
    %v2562 = vpack.c.bf16 %v2416, %v2413
    %v2563 = vpack.c.bf16 %v2424, %v2421
    %v2564 = vpack.c.bf16 %v2497, %v2494
    %v2565 = vpack.c.bf16 %v2505, %v2502
    %v2566 = vpack.c.bf16 %v2513, %v2510
    %v2567 = vpack.c.bf16 %v2521, %v2518
    %v2568 = vpack.c.bf16 %v2529, %v2526
    %v2569 = vpack.c.bf16 %v2537, %v2534
    %v2570 = vpack.c.bf16 %v2545, %v2542
    %v2571 = vpack.c.bf16 %v2553, %v2550
    %v2588 = vunpack.c.l.b16 %v2556
    %v2589 = vunpack.c.h.b16 %v2556
    %v2590 = vunpack.c.l.b16 %v2557
    %v2591 = vunpack.c.h.b16 %v2557
    %v2592 = vunpack.c.l.b16 %v2558
    %v2593 = vunpack.c.h.b16 %v2558
    %v2594 = vunpack.c.l.b16 %v2559
    %v2595 = vunpack.c.h.b16 %v2559
    %v2596 = vunpack.c.l.b16 %v2560
    %v2597 = vunpack.c.h.b16 %v2560
    %v2598 = vunpack.c.l.b16 %v2561
    %v2599 = vunpack.c.h.b16 %v2561
    %v2600 = vunpack.c.l.b16 %v2562
    %v2601 = vunpack.c.h.b16 %v2562
    %v2602 = vunpack.c.l.b16 %v2563
    %v2603 = vunpack.c.h.b16 %v2563
    %v2604 = vunpack.c.l.b16 %v2564
    %v2605 = vunpack.c.h.b16 %v2564
    %v2606 = vunpack.c.l.b16 %v2565
    %v2607 = vunpack.c.h.b16 %v2565
    %v2608 = vunpack.c.l.b16 %v2566
    %v2609 = vunpack.c.h.b16 %v2566
    %v2610 = vunpack.c.l.b16 %v2567
    %v2611 = vunpack.c.h.b16 %v2567
    %v2612 = vunpack.c.l.b16 %v2568
    %v2613 = vunpack.c.h.b16 %v2568
    %v2614 = vunpack.c.l.b16 %v2569
    %v2615 = vunpack.c.h.b16 %v2569
    %v2616 = vunpack.c.l.b16 %v2570
    %v2617 = vunpack.c.h.b16 %v2570
    %v2618 = vunpack.c.l.b16 %v2571
    %v2619 = vunpack.c.h.b16 %v2571
    %v2620 = vpack.c.b16 %v2588, %v2588
    %v2621 = vpack.c.b16 %v2589, %v2589
    %v2622 = vpack.c.b16 %v2590, %v2590
    %v2623 = vpack.c.b16 %v2591, %v2591
    %v2624 = vpack.c.b16 %v2592, %v2592
    %v2625 = vpack.c.b16 %v2593, %v2593
    %v2626 = vpack.c.b16 %v2594, %v2594
    %v2627 = vpack.c.b16 %v2595, %v2595
    %v2628 = vpack.c.b16 %v2596, %v2596
    %v2629 = vpack.c.b16 %v2597, %v2597
    %v2630 = vpack.c.b16 %v2598, %v2598
    %v2631 = vpack.c.b16 %v2599, %v2599
    %v2632 = vpack.c.b16 %v2600, %v2600
    %v2633 = vpack.c.b16 %v2601, %v2601
    %v2634 = vpack.c.b16 %v2602, %v2602
    %v2635 = vpack.c.b16 %v2603, %v2603
    %v2636 = vpack.c.b16 %v2604, %v2604
    %v2637 = vpack.c.b16 %v2605, %v2605
    %v2638 = vpack.c.b16 %v2606, %v2606
    %v2639 = vpack.c.b16 %v2607, %v2607
    %v2640 = vpack.c.b16 %v2608, %v2608
    %v2641 = vpack.c.b16 %v2609, %v2609
    %v2642 = vpack.c.b16 %v2610, %v2610
    %v2643 = vpack.c.b16 %v2611, %v2611
    %v2644 = vpack.c.b16 %v2612, %v2612
    %v2645 = vpack.c.b16 %v2613, %v2613
    %v2646 = vpack.c.b16 %v2614, %v2614
    %v2647 = vpack.c.b16 %v2615, %v2615
    %v2648 = vpack.c.b16 %v2616, %v2616
    %v2649 = vpack.c.b16 %v2617, %v2617
    %v2650 = vpack.c.b16 %v2618, %v2618
    %v2651 = vpack.c.b16 %v2619, %v2619
    %2652 = vrot.lane.b32.xlu0 %v2620, 32
    %v2653 = vpop.permute.xlu0 %2652
    %2654 = vrot.lane.b32.xlu0 %v2621, 32
    %v2655 = vpop.permute.xlu0 %2654
    %2656 = vrot.lane.b32.xlu0 %v2622, 32
    %v2657 = vpop.permute.xlu0 %2656
    %2658 = vrot.lane.b32.xlu0 %v2623, 32
    %v2659 = vpop.permute.xlu0 %2658
    %2660 = vrot.lane.b32.xlu0 %v2624, 32
    %v2661 = vpop.permute.xlu0 %2660
    %2662 = vrot.lane.b32.xlu0 %v2625, 32
    %v2663 = vpop.permute.xlu0 %2662
    %2664 = vrot.lane.b32.xlu0 %v2626, 32
    %v2665 = vpop.permute.xlu0 %2664
    %2666 = vrot.lane.b32.xlu0 %v2627, 32
    %v2667 = vpop.permute.xlu0 %2666
    %2668 = vrot.lane.b32.xlu0 %v2628, 32
    %v2669 = vpop.permute.xlu0 %2668
    %2670 = vrot.lane.b32.xlu0 %v2629, 32
    %v2671 = vpop.permute.xlu0 %2670
    %2672 = vrot.lane.b32.xlu0 %v2630, 32
    %v2673 = vpop.permute.xlu0 %2672
    %2674 = vrot.lane.b32.xlu0 %v2631, 32
    %v2675 = vpop.permute.xlu0 %2674
    %2676 = vrot.lane.b32.xlu0 %v2632, 32
    %v2677 = vpop.permute.xlu0 %2676
    %2678 = vrot.lane.b32.xlu0 %v2633, 32
    %v2679 = vpop.permute.xlu0 %2678
    %2680 = vrot.lane.b32.xlu0 %v2634, 32
    %v2681 = vpop.permute.xlu0 %2680
    %2682 = vrot.lane.b32.xlu0 %v2635, 32
    %v2683 = vpop.permute.xlu0 %2682
    %2684 = vrot.lane.b32.xlu0 %v2636, 32
    %v2685 = vpop.permute.xlu0 %2684
    %2686 = vrot.lane.b32.xlu0 %v2637, 32
    %v2687 = vpop.permute.xlu0 %2686
    %2688 = vrot.lane.b32.xlu0 %v2638, 32
    %v2689 = vpop.permute.xlu0 %2688
    %2690 = vrot.lane.b32.xlu0 %v2639, 32
    %v2691 = vpop.permute.xlu0 %2690
    %2692 = vrot.lane.b32.xlu0 %v2640, 32
    %v2693 = vpop.permute.xlu0 %2692
    %2694 = vrot.lane.b32.xlu0 %v2641, 32
    %v2695 = vpop.permute.xlu0 %2694
    %2696 = vrot.lane.b32.xlu0 %v2642, 32
    %v2697 = vpop.permute.xlu0 %2696
    %2698 = vrot.lane.b32.xlu0 %v2643, 32
    %v2699 = vpop.permute.xlu0 %2698
    %2700 = vrot.lane.b32.xlu0 %v2644, 32
    %v2701 = vpop.permute.xlu0 %2700
    %2702 = vrot.lane.b32.xlu0 %v2645, 32
    %v2703 = vpop.permute.xlu0 %2702
    %2704 = vrot.lane.b32.xlu0 %v2646, 32
    %v2705 = vpop.permute.xlu0 %2704
    %2706 = vrot.lane.b32.xlu0 %v2647, 32
    %v2707 = vpop.permute.xlu0 %2706
    %2708 = vrot.lane.b32.xlu0 %v2648, 32
    %v2709 = vpop.permute.xlu0 %2708
    %2710 = vrot.lane.b32.xlu0 %v2649, 32
    %v2711 = vpop.permute.xlu0 %2710
    %2712 = vrot.lane.b32.xlu0 %v2650, 32
    %v2713 = vpop.permute.xlu0 %2712
    %2714 = vrot.lane.b32.xlu0 %v2651, 32
    %v2715 = vpop.permute.xlu0 %2714
    %vm2748 = vcmask 519424
    %2749 = vst.msk [vmem:[#allocation2] sm:$0xf] %vm2748, %v2653
    %2750 = vst.msk [vmem:[#allocation2 + $0x4] sm:$0xf] %vm2748, %v2655
    %2751 = vst.msk [vmem:[#allocation2 + $0x8] sm:$0xf] %vm2748, %v2657
    %2752 = vst.msk [vmem:[#allocation2 + $0xc] sm:$0xf] %vm2748, %v2659
    %2753 = vst.msk [vmem:[#allocation2 + $0x10] sm:$0xf] %vm2748, %v2661
    %2754 = vst.msk [vmem:[#allocation2 + $0x14] sm:$0xf] %vm2748, %v2663
    %2755 = vst.msk [vmem:[#allocation2 + $0x18] sm:$0xf] %vm2748, %v2665
    %2756 = vst.msk [vmem:[#allocation2 + $0x1c] sm:$0xf] %vm2748, %v2667
    %2757 = vst.msk [vmem:[#allocation2 + $0x20] sm:$0xf] %vm2748, %v2669
    %2758 = vst.msk [vmem:[#allocation2 + $0x24] sm:$0xf] %vm2748, %v2671
    %2759 = vst.msk [vmem:[#allocation2 + $0x28] sm:$0xf] %vm2748, %v2673
    %2760 = vst.msk [vmem:[#allocation2 + $0x2c] sm:$0xf] %vm2748, %v2675
    %2761 = vst.msk [vmem:[#allocation2 + $0x30] sm:$0xf] %vm2748, %v2677
    %2762 = vst.msk [vmem:[#allocation2 + $0x34] sm:$0xf] %vm2748, %v2679
    %2763 = vst.msk [vmem:[#allocation2 + $0x38] sm:$0xf] %vm2748, %v2681
    %2764 = vst.msk [vmem:[#allocation2 + $0x3c] sm:$0xf] %vm2748, %v2683
    %2765 = vst.msk [vmem:[#allocation2 + $0x40] sm:$0xf] %vm2748, %v2685
    %2766 = vst.msk [vmem:[#allocation2 + $0x44] sm:$0xf] %vm2748, %v2687
    %2767 = vst.msk [vmem:[#allocation2 + $0x48] sm:$0xf] %vm2748, %v2689
    %2768 = vst.msk [vmem:[#allocation2 + $0x4c] sm:$0xf] %vm2748, %v2691
    %2769 = vst.msk [vmem:[#allocation2 + $0x50] sm:$0xf] %vm2748, %v2693
    %2770 = vst.msk [vmem:[#allocation2 + $0x54] sm:$0xf] %vm2748, %v2695
    %2771 = vst.msk [vmem:[#allocation2 + $0x58] sm:$0xf] %vm2748, %v2697
    %2772 = vst.msk [vmem:[#allocation2 + $0x5c] sm:$0xf] %vm2748, %v2699
    %2773 = vst.msk [vmem:[#allocation2 + $0x60] sm:$0xf] %vm2748, %v2701
    %2774 = vst.msk [vmem:[#allocation2 + $0x64] sm:$0xf] %vm2748, %v2703
    %2775 = vst.msk [vmem:[#allocation2 + $0x68] sm:$0xf] %vm2748, %v2705
    %2776 = vst.msk [vmem:[#allocation2 + $0x6c] sm:$0xf] %vm2748, %v2707
    %2777 = vst.msk [vmem:[#allocation2 + $0x70] sm:$0xf] %vm2748, %v2709
    %2778 = vst.msk [vmem:[#allocation2 + $0x74] sm:$0xf] %vm2748, %v2711
    %2779 = vst.msk [vmem:[#allocation2 + $0x78] sm:$0xf] %vm2748, %v2713
    %2780 = vst.msk [vmem:[#allocation2 + $0x7c] sm:$0xf] %vm2748, %v2715
    %2781 = vrot.lane.b32.xlu0 %v610, 64
    %v2782 = vpop.permute.xlu0 %2781
    %2783 = vrot.lane.b32.xlu0 %v611, 64
    %v2784 = vpop.permute.xlu0 %2783
    %2785 = vrot.lane.b32.xlu0 %v612, 64
    %v2786 = vpop.permute.xlu0 %2785
    %2787 = vrot.lane.b32.xlu0 %v613, 64
    %v2788 = vpop.permute.xlu0 %2787
    %2789 = vrot.lane.b32.xlu0 %v614, 64
    %v2790 = vpop.permute.xlu0 %2789
    %2791 = vrot.lane.b32.xlu0 %v615, 64
    %v2792 = vpop.permute.xlu0 %2791
    %2793 = vrot.lane.b32.xlu0 %v616, 64
    %v2794 = vpop.permute.xlu0 %2793
    %2795 = vrot.lane.b32.xlu0 %v617, 64
    %v2796 = vpop.permute.xlu0 %2795
    %2797 = vrot.lane.b32.xlu0 %v626, 64
    %v2798 = vpop.permute.xlu0 %2797
    %2799 = vrot.lane.b32.xlu0 %v627, 64
    %v2800 = vpop.permute.xlu0 %2799
    %2801 = vrot.lane.b32.xlu0 %v628, 64
    %v2802 = vpop.permute.xlu0 %2801
    %2803 = vrot.lane.b32.xlu0 %v629, 64
    %v2804 = vpop.permute.xlu0 %2803
    %2805 = vrot.lane.b32.xlu0 %v630, 64
    %v2806 = vpop.permute.xlu0 %2805
    %2807 = vrot.lane.b32.xlu0 %v631, 64
    %v2808 = vpop.permute.xlu0 %2807
    %2809 = vrot.lane.b32.xlu0 %v632, 64
    %v2810 = vpop.permute.xlu0 %2809
    %2811 = vrot.lane.b32.xlu0 %v633, 64
    %v2812 = vpop.permute.xlu0 %2811
    %v2814 = vsel %vm658, %v2782, 0
    %v2817 = vsel %vm658, %v2784, 0
    %v2820 = vsel %vm658, %v2786, 0
    %v2823 = vsel %vm658, %v2788, 0
    %v2826 = vsel %vm658, %v2790, 0
    %v2829 = vsel %vm658, %v2792, 0
    %v2832 = vsel %vm658, %v2794, 0
    %v2835 = vsel %vm658, %v2796, 0
    %v2838 = vsel %vm658, %v2798, 0
    %v2841 = vsel %vm658, %v2800, 0
    %v2844 = vsel %vm658, %v2802, 0
    %v2847 = vsel %vm658, %v2804, 0
    %v2850 = vsel %vm658, %v2806, 0
    %v2853 = vsel %vm658, %v2808, 0
    %v2856 = vsel %vm658, %v2810, 0
    %v2859 = vsel %vm658, %v2812, 0
    %2861 = vmatprep.subr.bf16.mxu0 0
    %2862 = vmatpush1.bf16.xpose.msra.mxu0 %v2859
    %2863 = vmatprep.subr.bf16.mxu0 0
    %2864 = vmatpush1.bf16.xpose.msra.mxu0 %v2856
    %2865 = vmatprep.subr.bf16.mxu0 0
    %2866 = vmatpush1.bf16.xpose.msra.mxu0 %v2853
    %2867 = vmatprep.subr.bf16.mxu0 0
    %2868 = vmatpush1.bf16.xpose.msra.mxu0 %v2850
    %2869 = vmatprep.subr.bf16.mxu0 0
    %2870 = vmatpush1.bf16.xpose.msra.mxu0 %v2847
    %2871 = vmatprep.subr.bf16.mxu0 0
    %2872 = vmatpush1.bf16.xpose.msra.mxu0 %v2844
    %2873 = vmatprep.subr.bf16.mxu0 0
    %2874 = vmatpush1.bf16.xpose.msra.mxu0 %v2841
    %2875 = vmatprep.subr.bf16.mxu0 0
    %2876 = vmatpush1.bf16.xpose.msra.mxu0 %v2838
    %2877 = vmatprep.subr.bf16.mxu0 0
    %2878 = vmatpush2.bf16.xpose.msra.mxu0 0
    %2879 = vmatprep.subr.bf16.mxu0 0
    %2880 = vmatpush2.bf16.xpose.msra.mxu0 0
    %2881 = vmatprep.subr.bf16.mxu0 0
    %2882 = vmatpush2.bf16.xpose.msra.mxu0 0
    %2883 = vmatprep.subr.bf16.mxu0 0
    %2884 = vmatpush2.bf16.xpose.msra.mxu0 0
    %2885 = vmatprep.subr.bf16.mxu0 0
    %2886 = vmatpush2.bf16.xpose.msra.mxu0 0
    %2887 = vmatprep.subr.bf16.mxu0 0
    %2888 = vmatpush2.bf16.xpose.msra.mxu0 0
    %2889 = vmatprep.subr.bf16.mxu0 0
    %2890 = vmatpush2.bf16.xpose.msra.mxu0 0
    %2891 = vmatprep.subr.bf16.mxu0 0
    %2892 = vmatpush2.bf16.xpose.msra.mxu0 0
    %2893 = vmatprep.mubr.bf16.mxu0 0
    %2894 = vmatmul.mubr.bf16.gmra.mxu0 %v2814
    %v2895 = vpop.f32.mrf.mxu0
    %v2896 = vadd.f32 0.0, %v2895
    %v2897 = vpop.f32.mrf.mxu0
    %v2898 = vpop.f32.mrf.mxu0
    %v2899 = vadd.f32 0.0, %v2898
    %v2900 = vpop.f32.mrf.mxu0
    %2901 = vmatprep.mubr.bf16.mxu0 0
    %2902 = vmatmul.mubr.bf16.gmra.mxu0 %v2817
    %v2903 = vpop.f32.mrf.mxu0
    %v2904 = vadd.f32 0.0, %v2903
    %v2905 = vpop.f32.mrf.mxu0
    %v2906 = vpop.f32.mrf.mxu0
    %v2907 = vadd.f32 0.0, %v2906
    %v2908 = vpop.f32.mrf.mxu0
    %2909 = vmatprep.mubr.bf16.mxu0 0
    %2910 = vmatmul.mubr.bf16.gmra.mxu0 %v2820
    %v2911 = vpop.f32.mrf.mxu0
    %v2912 = vadd.f32 0.0, %v2911
    %v2913 = vpop.f32.mrf.mxu0
    %v2914 = vpop.f32.mrf.mxu0
    %v2915 = vadd.f32 0.0, %v2914
    %v2916 = vpop.f32.mrf.mxu0
    %2917 = vmatprep.mubr.bf16.mxu0 0
    %2918 = vmatmul.mubr.bf16.gmra.mxu0 %v2823
    %v2919 = vpop.f32.mrf.mxu0
    %v2920 = vadd.f32 0.0, %v2919
    %v2921 = vpop.f32.mrf.mxu0
    %v2922 = vpop.f32.mrf.mxu0
    %v2923 = vadd.f32 0.0, %v2922
    %v2924 = vpop.f32.mrf.mxu0
    %2925 = vmatprep.mubr.bf16.mxu0 0
    %2926 = vmatmul.mubr.bf16.gmra.mxu0 %v2826
    %v2927 = vpop.f32.mrf.mxu0
    %v2928 = vadd.f32 0.0, %v2927
    %v2929 = vpop.f32.mrf.mxu0
    %v2930 = vpop.f32.mrf.mxu0
    %v2931 = vadd.f32 0.0, %v2930
    %v2932 = vpop.f32.mrf.mxu0
    %2933 = vmatprep.mubr.bf16.mxu0 0
    %2934 = vmatmul.mubr.bf16.gmra.mxu0 %v2829
    %v2935 = vpop.f32.mrf.mxu0
    %v2936 = vadd.f32 0.0, %v2935
    %v2937 = vpop.f32.mrf.mxu0
    %v2938 = vpop.f32.mrf.mxu0
    %v2939 = vadd.f32 0.0, %v2938
    %v2940 = vpop.f32.mrf.mxu0
    %2941 = vmatprep.mubr.bf16.mxu0 0
    %2942 = vmatmul.mubr.bf16.gmra.mxu0 %v2832
    %v2943 = vpop.f32.mrf.mxu0
    %v2944 = vadd.f32 0.0, %v2943
    %v2945 = vpop.f32.mrf.mxu0
    %v2946 = vpop.f32.mrf.mxu0
    %v2947 = vadd.f32 0.0, %v2946
    %v2948 = vpop.f32.mrf.mxu0
    %2949 = vmatprep.mubr.bf16.mxu0 0
    %2950 = vmatmul.mubr.bf16.gmra.mxu0 %v2835
    %v2951 = vpop.f32.mrf.mxu0
    %v2952 = vadd.f32 0.0, %v2951
    %v2953 = vpop.f32.mrf.mxu0
    %v2954 = vpop.f32.mrf.mxu0
    %v2955 = vadd.f32 0.0, %v2954
    %v2956 = vpop.f32.mrf.mxu0
    %2957 = vdwg.mxu0
    %2958 = vrot.lane.b32.xlu0 %v618, 64
    %v2959 = vpop.permute.xlu0 %2958
    %2960 = vrot.lane.b32.xlu0 %v619, 64
    %v2961 = vpop.permute.xlu0 %2960
    %2962 = vrot.lane.b32.xlu0 %v620, 64
    %v2963 = vpop.permute.xlu0 %2962
    %2964 = vrot.lane.b32.xlu0 %v621, 64
    %v2965 = vpop.permute.xlu0 %2964
    %2966 = vrot.lane.b32.xlu0 %v622, 64
    %v2967 = vpop.permute.xlu0 %2966
    %2968 = vrot.lane.b32.xlu0 %v623, 64
    %v2969 = vpop.permute.xlu0 %2968
    %2970 = vrot.lane.b32.xlu0 %v624, 64
    %v2971 = vpop.permute.xlu0 %2970
    %2972 = vrot.lane.b32.xlu0 %v625, 64
    %v2973 = vpop.permute.xlu0 %2972
    %2974 = vrot.lane.b32.xlu0 %v634, 64
    %v2975 = vpop.permute.xlu0 %2974
    %2976 = vrot.lane.b32.xlu0 %v635, 64
    %v2977 = vpop.permute.xlu0 %2976
    %2978 = vrot.lane.b32.xlu0 %v636, 64
    %v2979 = vpop.permute.xlu0 %2978
    %2980 = vrot.lane.b32.xlu0 %v637, 64
    %v2981 = vpop.permute.xlu0 %2980
    %2982 = vrot.lane.b32.xlu0 %v638, 64
    %v2983 = vpop.permute.xlu0 %2982
    %2984 = vrot.lane.b32.xlu0 %v639, 64
    %v2985 = vpop.permute.xlu0 %2984
    %2986 = vrot.lane.b32.xlu0 %v640, 64
    %v2987 = vpop.permute.xlu0 %2986
    %2988 = vrot.lane.b32.xlu0 %v641, 64
    %v2989 = vpop.permute.xlu0 %2988
    %v2991 = vsel %vm658, %v2959, 0
    %v2994 = vsel %vm658, %v2961, 0
    %v2997 = vsel %vm658, %v2963, 0
    %v3000 = vsel %vm658, %v2965, 0
    %v3003 = vsel %vm658, %v2967, 0
    %v3006 = vsel %vm658, %v2969, 0
    %v3009 = vsel %vm658, %v2971, 0
    %v3012 = vsel %vm658, %v2973, 0
    %v3015 = vsel %vm658, %v2975, 0
    %v3018 = vsel %vm658, %v2977, 0
    %v3021 = vsel %vm658, %v2979, 0
    %v3024 = vsel %vm658, %v2981, 0
    %v3027 = vsel %vm658, %v2983, 0
    %v3030 = vsel %vm658, %v2985, 0
    %v3033 = vsel %vm658, %v2987, 0
    %v3036 = vsel %vm658, %v2989, 0
    %3038 = vmatprep.subr.bf16.mxu0 0
    %3039 = vmatpush1.bf16.xpose.msra.mxu0 %v3036
    %3040 = vmatprep.subr.bf16.mxu0 0
    %3041 = vmatpush1.bf16.xpose.msra.mxu0 %v3033
    %3042 = vmatprep.subr.bf16.mxu0 0
    %3043 = vmatpush1.bf16.xpose.msra.mxu0 %v3030
    %3044 = vmatprep.subr.bf16.mxu0 0
    %3045 = vmatpush1.bf16.xpose.msra.mxu0 %v3027
    %3046 = vmatprep.subr.bf16.mxu0 0
    %3047 = vmatpush1.bf16.xpose.msra.mxu0 %v3024
    %3048 = vmatprep.subr.bf16.mxu0 0
    %3049 = vmatpush1.bf16.xpose.msra.mxu0 %v3021
    %3050 = vmatprep.subr.bf16.mxu0 0
    %3051 = vmatpush1.bf16.xpose.msra.mxu0 %v3018
    %3052 = vmatprep.subr.bf16.mxu0 0
    %3053 = vmatpush1.bf16.xpose.msra.mxu0 %v3015
    %3054 = vmatprep.subr.bf16.mxu0 0
    %3055 = vmatpush2.bf16.xpose.msra.mxu0 0
    %3056 = vmatprep.subr.bf16.mxu0 0
    %3057 = vmatpush2.bf16.xpose.msra.mxu0 0
    %3058 = vmatprep.subr.bf16.mxu0 0
    %3059 = vmatpush2.bf16.xpose.msra.mxu0 0
    %3060 = vmatprep.subr.bf16.mxu0 0
    %3061 = vmatpush2.bf16.xpose.msra.mxu0 0
    %3062 = vmatprep.subr.bf16.mxu0 0
    %3063 = vmatpush2.bf16.xpose.msra.mxu0 0
    %3064 = vmatprep.subr.bf16.mxu0 0
    %3065 = vmatpush2.bf16.xpose.msra.mxu0 0
    %3066 = vmatprep.subr.bf16.mxu0 0
    %3067 = vmatpush2.bf16.xpose.msra.mxu0 0
    %3068 = vmatprep.subr.bf16.mxu0 0
    %3069 = vmatpush2.bf16.xpose.msra.mxu0 0
    %3070 = vmatprep.mubr.bf16.mxu0 0
    %3071 = vmatmul.mubr.bf16.gmra.mxu0 %v2991
    %v3072 = vpop.f32.mrf.mxu0
    %v3073 = vadd.f32 0.0, %v3072
    %v3074 = vpop.f32.mrf.mxu0
    %v3075 = vpop.f32.mrf.mxu0
    %v3076 = vadd.f32 0.0, %v3075
    %v3077 = vpop.f32.mrf.mxu0
    %3078 = vmatprep.mubr.bf16.mxu0 0
    %3079 = vmatmul.mubr.bf16.gmra.mxu0 %v2994
    %v3080 = vpop.f32.mrf.mxu0
    %v3081 = vadd.f32 0.0, %v3080
    %v3082 = vpop.f32.mrf.mxu0
    %v3083 = vpop.f32.mrf.mxu0
    %v3084 = vadd.f32 0.0, %v3083
    %v3085 = vpop.f32.mrf.mxu0
    %3086 = vmatprep.mubr.bf16.mxu0 0
    %3087 = vmatmul.mubr.bf16.gmra.mxu0 %v2997
    %v3088 = vpop.f32.mrf.mxu0
    %v3089 = vadd.f32 0.0, %v3088
    %v3090 = vpop.f32.mrf.mxu0
    %v3091 = vpop.f32.mrf.mxu0
    %v3092 = vadd.f32 0.0, %v3091
    %v3093 = vpop.f32.mrf.mxu0
    %3094 = vmatprep.mubr.bf16.mxu0 0
    %3095 = vmatmul.mubr.bf16.gmra.mxu0 %v3000
    %v3096 = vpop.f32.mrf.mxu0
    %v3097 = vadd.f32 0.0, %v3096
    %v3098 = vpop.f32.mrf.mxu0
    %v3099 = vpop.f32.mrf.mxu0
    %v3100 = vadd.f32 0.0, %v3099
    %v3101 = vpop.f32.mrf.mxu0
    %3102 = vmatprep.mubr.bf16.mxu0 0
    %3103 = vmatmul.mubr.bf16.gmra.mxu0 %v3003
    %v3104 = vpop.f32.mrf.mxu0
    %v3105 = vadd.f32 0.0, %v3104
    %v3106 = vpop.f32.mrf.mxu0
    %v3107 = vpop.f32.mrf.mxu0
    %v3108 = vadd.f32 0.0, %v3107
    %v3109 = vpop.f32.mrf.mxu0
    %3110 = vmatprep.mubr.bf16.mxu0 0
    %3111 = vmatmul.mubr.bf16.gmra.mxu0 %v3006
    %v3112 = vpop.f32.mrf.mxu0
    %v3113 = vadd.f32 0.0, %v3112
    %v3114 = vpop.f32.mrf.mxu0
    %v3115 = vpop.f32.mrf.mxu0
    %v3116 = vadd.f32 0.0, %v3115
    %v3117 = vpop.f32.mrf.mxu0
    %3118 = vmatprep.mubr.bf16.mxu0 0
    %3119 = vmatmul.mubr.bf16.gmra.mxu0 %v3009
    %v3120 = vpop.f32.mrf.mxu0
    %v3121 = vadd.f32 0.0, %v3120
    %v3122 = vpop.f32.mrf.mxu0
    %v3123 = vpop.f32.mrf.mxu0
    %v3124 = vadd.f32 0.0, %v3123
    %v3125 = vpop.f32.mrf.mxu0
    %3126 = vmatprep.mubr.bf16.mxu0 0
    %3127 = vmatmul.mubr.bf16.gmra.mxu0 %v3012
    %v3128 = vpop.f32.mrf.mxu0
    %v3129 = vadd.f32 0.0, %v3128
    %v3130 = vpop.f32.mrf.mxu0
    %v3131 = vpop.f32.mrf.mxu0
    %v3132 = vadd.f32 0.0, %v3131
    %v3133 = vpop.f32.mrf.mxu0
    %3134 = vdwg.mxu0
    %3135 = vmax.xlane.f32.xlu0 %v2896
    %v3136 = vpop.xlane.xlu0 %3135
    %3137 = vmax.xlane.f32.xlu0 %v2899
    %v3138 = vpop.xlane.xlu0 %3137
    %3139 = vmax.xlane.f32.xlu0 %v2904
    %v3140 = vpop.xlane.xlu0 %3139
    %3141 = vmax.xlane.f32.xlu0 %v2907
    %v3142 = vpop.xlane.xlu0 %3141
    %3143 = vmax.xlane.f32.xlu0 %v2912
    %v3144 = vpop.xlane.xlu0 %3143
    %3145 = vmax.xlane.f32.xlu0 %v2915
    %v3146 = vpop.xlane.xlu0 %3145
    %3147 = vmax.xlane.f32.xlu0 %v2920
    %v3148 = vpop.xlane.xlu0 %3147
    %3149 = vmax.xlane.f32.xlu0 %v2923
    %v3150 = vpop.xlane.xlu0 %3149
    %3151 = vmax.xlane.f32.xlu0 %v2928
    %v3152 = vpop.xlane.xlu0 %3151
    %3153 = vmax.xlane.f32.xlu0 %v2931
    %v3154 = vpop.xlane.xlu0 %3153
    %3155 = vmax.xlane.f32.xlu0 %v2936
    %v3156 = vpop.xlane.xlu0 %3155
    %3157 = vmax.xlane.f32.xlu0 %v2939
    %v3158 = vpop.xlane.xlu0 %3157
    %3159 = vmax.xlane.f32.xlu0 %v2944
    %v3160 = vpop.xlane.xlu0 %3159
    %3161 = vmax.xlane.f32.xlu0 %v2947
    %v3162 = vpop.xlane.xlu0 %3161
    %3163 = vmax.xlane.f32.xlu0 %v2952
    %v3164 = vpop.xlane.xlu0 %3163
    %3165 = vmax.xlane.f32.xlu0 %v2955
    %v3166 = vpop.xlane.xlu0 %3165
    %3167 = vmax.xlane.f32.xlu0 %v3073
    %v3168 = vpop.xlane.xlu0 %3167
    %3169 = vmax.xlane.f32.xlu0 %v3076
    %v3170 = vpop.xlane.xlu0 %3169
    %3171 = vmax.xlane.f32.xlu0 %v3081
    %v3172 = vpop.xlane.xlu0 %3171
    %3173 = vmax.xlane.f32.xlu0 %v3084
    %v3174 = vpop.xlane.xlu0 %3173
    %3175 = vmax.xlane.f32.xlu0 %v3089
    %v3176 = vpop.xlane.xlu0 %3175
    %3177 = vmax.xlane.f32.xlu0 %v3092
    %v3178 = vpop.xlane.xlu0 %3177
    %3179 = vmax.xlane.f32.xlu0 %v3097
    %v3180 = vpop.xlane.xlu0 %3179
    %3181 = vmax.xlane.f32.xlu0 %v3100
    %v3182 = vpop.xlane.xlu0 %3181
    %3183 = vmax.xlane.f32.xlu0 %v3105
    %v3184 = vpop.xlane.xlu0 %3183
    %3185 = vmax.xlane.f32.xlu0 %v3108
    %v3186 = vpop.xlane.xlu0 %3185
    %3187 = vmax.xlane.f32.xlu0 %v3113
    %v3188 = vpop.xlane.xlu0 %3187
    %3189 = vmax.xlane.f32.xlu0 %v3116
    %v3190 = vpop.xlane.xlu0 %3189
    %3191 = vmax.xlane.f32.xlu0 %v3121
    %v3192 = vpop.xlane.xlu0 %3191
    %3193 = vmax.xlane.f32.xlu0 %v3124
    %v3194 = vpop.xlane.xlu0 %3193
    %3195 = vmax.xlane.f32.xlu0 %v3129
    %v3196 = vpop.xlane.xlu0 %3195
    %3197 = vmax.xlane.f32.xlu0 %v3132
    %v3198 = vpop.xlane.xlu0 %3197
    %v3199 = vsub.f32 %v2896, %v3136
    %v3200 = vsub.f32 %v2899, %v3138
    %v3201 = vsub.f32 %v2904, %v3140
    %v3202 = vsub.f32 %v2907, %v3142
    %v3203 = vsub.f32 %v2912, %v3144
    %v3204 = vsub.f32 %v2915, %v3146
    %v3205 = vsub.f32 %v2920, %v3148
    %v3206 = vsub.f32 %v2923, %v3150
    %v3207 = vsub.f32 %v2928, %v3152
    %v3208 = vsub.f32 %v2931, %v3154
    %v3209 = vsub.f32 %v2936, %v3156
    %v3210 = vsub.f32 %v2939, %v3158
    %v3211 = vsub.f32 %v2944, %v3160
    %v3212 = vsub.f32 %v2947, %v3162
    %v3213 = vsub.f32 %v2952, %v3164
    %v3214 = vsub.f32 %v2955, %v3166
    %v3215 = vsub.f32 %v3073, %v3168
    %v3216 = vsub.f32 %v3076, %v3170
    %v3217 = vsub.f32 %v3081, %v3172
    %v3218 = vsub.f32 %v3084, %v3174
    %v3219 = vsub.f32 %v3089, %v3176
    %v3220 = vsub.f32 %v3092, %v3178
    %v3221 = vsub.f32 %v3097, %v3180
    %v3222 = vsub.f32 %v3100, %v3182
    %v3223 = vsub.f32 %v3105, %v3184
    %v3224 = vsub.f32 %v3108, %v3186
    %v3225 = vsub.f32 %v3113, %v3188
    %v3226 = vsub.f32 %v3116, %v3190
    %v3227 = vsub.f32 %v3121, %v3192
    %v3228 = vsub.f32 %v3124, %v3194
    %v3229 = vsub.f32 %v3129, %v3196
    %v3230 = vsub.f32 %v3132, %v3198
    %v3231 = vmul.f32 %v3199, 1.442695
    %v3232 = vpow.pop %v3231
    %v3233 = vmul.f32 %v3200, 1.442695
    %v3234 = vpow.pop %v3233
    %v3235 = vmul.f32 %v3201, 1.442695
    %v3236 = vpow.pop %v3235
    %v3237 = vmul.f32 %v3202, 1.442695
    %v3238 = vpow.pop %v3237
    %v3239 = vmul.f32 %v3203, 1.442695
    %v3240 = vpow.pop %v3239
    %v3241 = vmul.f32 %v3204, 1.442695
    %v3242 = vpow.pop %v3241
    %v3243 = vmul.f32 %v3205, 1.442695
    %v3244 = vpow.pop %v3243
    %v3245 = vmul.f32 %v3206, 1.442695
    %v3246 = vpow.pop %v3245
    %v3247 = vmul.f32 %v3207, 1.442695
    %v3248 = vpow.pop %v3247
    %v3249 = vmul.f32 %v3208, 1.442695
    %v3250 = vpow.pop %v3249
    %v3251 = vmul.f32 %v3209, 1.442695
    %v3252 = vpow.pop %v3251
    %v3253 = vmul.f32 %v3210, 1.442695
    %v3254 = vpow.pop %v3253
    %v3255 = vmul.f32 %v3211, 1.442695
    %v3256 = vpow.pop %v3255
    %v3257 = vmul.f32 %v3212, 1.442695
    %v3258 = vpow.pop %v3257
    %v3259 = vmul.f32 %v3213, 1.442695
    %v3260 = vpow.pop %v3259
    %v3261 = vmul.f32 %v3214, 1.442695
    %v3262 = vpow.pop %v3261
    %v3263 = vmul.f32 %v3215, 1.442695
    %v3264 = vpow.pop %v3263
    %v3265 = vmul.f32 %v3216, 1.442695
    %v3266 = vpow.pop %v3265
    %v3267 = vmul.f32 %v3217, 1.442695
    %v3268 = vpow.pop %v3267
    %v3269 = vmul.f32 %v3218, 1.442695
    %v3270 = vpow.pop %v3269
    %v3271 = vmul.f32 %v3219, 1.442695
    %v3272 = vpow.pop %v3271
    %v3273 = vmul.f32 %v3220, 1.442695
    %v3274 = vpow.pop %v3273
    %v3275 = vmul.f32 %v3221, 1.442695
    %v3276 = vpow.pop %v3275
    %v3277 = vmul.f32 %v3222, 1.442695
    %v3278 = vpow.pop %v3277
    %v3279 = vmul.f32 %v3223, 1.442695
    %v3280 = vpow.pop %v3279
    %v3281 = vmul.f32 %v3224, 1.442695
    %v3282 = vpow.pop %v3281
    %v3283 = vmul.f32 %v3225, 1.442695
    %v3284 = vpow.pop %v3283
    %v3285 = vmul.f32 %v3226, 1.442695
    %v3286 = vpow.pop %v3285
    %v3287 = vmul.f32 %v3227, 1.442695
    %v3288 = vpow.pop %v3287
    %v3289 = vmul.f32 %v3228, 1.442695
    %v3290 = vpow.pop %v3289
    %v3291 = vmul.f32 %v3229, 1.442695
    %v3292 = vpow.pop %v3291
    %v3293 = vmul.f32 %v3230, 1.442695
    %v3294 = vpow.pop %v3293
    %3295 = vadd.xlane.f32.xlu0 %v3232
    %v3296 = vpop.xlane.xlu0 %3295
    %3297 = vadd.xlane.f32.xlu0 %v3234
    %v3298 = vpop.xlane.xlu0 %3297
    %3299 = vadd.xlane.f32.xlu0 %v3236
    %v3300 = vpop.xlane.xlu0 %3299
    %3301 = vadd.xlane.f32.xlu0 %v3238
    %v3302 = vpop.xlane.xlu0 %3301
    %3303 = vadd.xlane.f32.xlu0 %v3240
    %v3304 = vpop.xlane.xlu0 %3303
    %3305 = vadd.xlane.f32.xlu0 %v3242
    %v3306 = vpop.xlane.xlu0 %3305
    %3307 = vadd.xlane.f32.xlu0 %v3244
    %v3308 = vpop.xlane.xlu0 %3307
    %3309 = vadd.xlane.f32.xlu0 %v3246
    %v3310 = vpop.xlane.xlu0 %3309
    %3311 = vadd.xlane.f32.xlu0 %v3248
    %v3312 = vpop.xlane.xlu0 %3311
    %3313 = vadd.xlane.f32.xlu0 %v3250
    %v3314 = vpop.xlane.xlu0 %3313
    %3315 = vadd.xlane.f32.xlu0 %v3252
    %v3316 = vpop.xlane.xlu0 %3315
    %3317 = vadd.xlane.f32.xlu0 %v3254
    %v3318 = vpop.xlane.xlu0 %3317
    %3319 = vadd.xlane.f32.xlu0 %v3256
    %v3320 = vpop.xlane.xlu0 %3319
    %3321 = vadd.xlane.f32.xlu0 %v3258
    %v3322 = vpop.xlane.xlu0 %3321
    %3323 = vadd.xlane.f32.xlu0 %v3260
    %v3324 = vpop.xlane.xlu0 %3323
    %3325 = vadd.xlane.f32.xlu0 %v3262
    %v3326 = vpop.xlane.xlu0 %3325
    %3327 = vadd.xlane.f32.xlu0 %v3264
    %v3328 = vpop.xlane.xlu0 %3327
    %3329 = vadd.xlane.f32.xlu0 %v3266
    %v3330 = vpop.xlane.xlu0 %3329
    %3331 = vadd.xlane.f32.xlu0 %v3268
    %v3332 = vpop.xlane.xlu0 %3331
    %3333 = vadd.xlane.f32.xlu0 %v3270
    %v3334 = vpop.xlane.xlu0 %3333
    %3335 = vadd.xlane.f32.xlu0 %v3272
    %v3336 = vpop.xlane.xlu0 %3335
    %3337 = vadd.xlane.f32.xlu0 %v3274
    %v3338 = vpop.xlane.xlu0 %3337
    %3339 = vadd.xlane.f32.xlu0 %v3276
    %v3340 = vpop.xlane.xlu0 %3339
    %3341 = vadd.xlane.f32.xlu0 %v3278
    %v3342 = vpop.xlane.xlu0 %3341
    %3343 = vadd.xlane.f32.xlu0 %v3280
    %v3344 = vpop.xlane.xlu0 %3343
    %3345 = vadd.xlane.f32.xlu0 %v3282
    %v3346 = vpop.xlane.xlu0 %3345
    %3347 = vadd.xlane.f32.xlu0 %v3284
    %v3348 = vpop.xlane.xlu0 %3347
    %3349 = vadd.xlane.f32.xlu0 %v3286
    %v3350 = vpop.xlane.xlu0 %3349
    %3351 = vadd.xlane.f32.xlu0 %v3288
    %v3352 = vpop.xlane.xlu0 %3351
    %3353 = vadd.xlane.f32.xlu0 %v3290
    %v3354 = vpop.xlane.xlu0 %3353
    %3355 = vadd.xlane.f32.xlu0 %v3292
    %v3356 = vpop.xlane.xlu0 %3355
    %3357 = vadd.xlane.f32.xlu0 %v3294
    %v3358 = vpop.xlane.xlu0 %3357
    %v3359 = vrcp.pop %v3296
    %v3360 = vrcp.pop %v3298
    %v3361 = vrcp.pop %v3300
    %v3362 = vrcp.pop %v3302
    %v3363 = vrcp.pop %v3304
    %v3364 = vrcp.pop %v3306
    %v3365 = vrcp.pop %v3308
    %v3366 = vrcp.pop %v3310
    %v3367 = vrcp.pop %v3312
    %v3368 = vrcp.pop %v3314
    %v3369 = vrcp.pop %v3316
    %v3370 = vrcp.pop %v3318
    %v3371 = vrcp.pop %v3320
    %v3372 = vrcp.pop %v3322
    %v3373 = vrcp.pop %v3324
    %v3374 = vrcp.pop %v3326
    %v3375 = vrcp.pop %v3328
    %v3376 = vrcp.pop %v3330
    %v3377 = vrcp.pop %v3332
    %v3378 = vrcp.pop %v3334
    %v3379 = vrcp.pop %v3336
    %v3380 = vrcp.pop %v3338
    %v3381 = vrcp.pop %v3340
    %v3382 = vrcp.pop %v3342
    %v3383 = vrcp.pop %v3344
    %v3384 = vrcp.pop %v3346
    %v3385 = vrcp.pop %v3348
    %v3386 = vrcp.pop %v3350
    %v3387 = vrcp.pop %v3352
    %v3388 = vrcp.pop %v3354
    %v3389 = vrcp.pop %v3356
    %v3390 = vrcp.pop %v3358
    %v3391 = vmul.f32 %v3232, %v3359
    %v3392 = vmul.f32 %v3234, %v3360
    %v3393 = vmul.f32 %v3236, %v3361
    %v3394 = vmul.f32 %v3238, %v3362
    %v3395 = vmul.f32 %v3240, %v3363
    %v3396 = vmul.f32 %v3242, %v3364
    %v3397 = vmul.f32 %v3244, %v3365
    %v3398 = vmul.f32 %v3246, %v3366
    %v3399 = vmul.f32 %v3248, %v3367
    %v3400 = vmul.f32 %v3250, %v3368
    %v3401 = vmul.f32 %v3252, %v3369
    %v3402 = vmul.f32 %v3254, %v3370
    %v3403 = vmul.f32 %v3256, %v3371
    %v3404 = vmul.f32 %v3258, %v3372
    %v3405 = vmul.f32 %v3260, %v3373
    %v3406 = vmul.f32 %v3262, %v3374
    %v3407 = vmul.f32 %v3264, %v3375
    %v3408 = vmul.f32 %v3266, %v3376
    %v3409 = vmul.f32 %v3268, %v3377
    %v3410 = vmul.f32 %v3270, %v3378
    %v3411 = vmul.f32 %v3272, %v3379
    %v3412 = vmul.f32 %v3274, %v3380
    %v3413 = vmul.f32 %v3276, %v3381
    %v3414 = vmul.f32 %v3278, %v3382
    %v3415 = vmul.f32 %v3280, %v3383
    %v3416 = vmul.f32 %v3282, %v3384
    %v3417 = vmul.f32 %v3284, %v3385
    %v3418 = vmul.f32 %v3286, %v3386
    %v3419 = vmul.f32 %v3288, %v3387
    %v3420 = vmul.f32 %v3290, %v3388
    %v3421 = vmul.f32 %v3292, %v3389
    %v3422 = vmul.f32 %v3294, %v3390
    %v3423 = vpack.c.bf16 %v3392, %v3391
    %v3424 = vpack.c.bf16 %v3394, %v3393
    %v3425 = vpack.c.bf16 %v3396, %v3395
    %v3426 = vpack.c.bf16 %v3398, %v3397
    %v3427 = vpack.c.bf16 %v3400, %v3399
    %v3428 = vpack.c.bf16 %v3402, %v3401
    %v3429 = vpack.c.bf16 %v3404, %v3403
    %v3430 = vpack.c.bf16 %v3406, %v3405
    %v3431 = vpack.c.bf16 %v3408, %v3407
    %v3432 = vpack.c.bf16 %v3410, %v3409
    %v3433 = vpack.c.bf16 %v3412, %v3411
    %v3434 = vpack.c.bf16 %v3414, %v3413
    %v3435 = vpack.c.bf16 %v3416, %v3415
    %v3436 = vpack.c.bf16 %v3418, %v3417
    %v3437 = vpack.c.bf16 %v3420, %v3419
    %v3438 = vpack.c.bf16 %v3422, %v3421
    %3439 = vrot.lane.b32.xlu0 %v642, 64
    %v3440 = vpop.permute.xlu0 %3439
    %3441 = vrot.lane.b32.xlu0 %v643, 64
    %v3442 = vpop.permute.xlu0 %3441
    %3443 = vrot.lane.b32.xlu0 %v644, 64
    %v3444 = vpop.permute.xlu0 %3443
    %3445 = vrot.lane.b32.xlu0 %v645, 64
    %v3446 = vpop.permute.xlu0 %3445
    %3447 = vrot.lane.b32.xlu0 %v646, 64
    %v3448 = vpop.permute.xlu0 %3447
    %3449 = vrot.lane.b32.xlu0 %v647, 64
    %v3450 = vpop.permute.xlu0 %3449
    %3451 = vrot.lane.b32.xlu0 %v648, 64
    %v3452 = vpop.permute.xlu0 %3451
    %3453 = vrot.lane.b32.xlu0 %v649, 64
    %v3454 = vpop.permute.xlu0 %3453
    %3463 = vmatprep.subr.bf16.mxu0 0
    %3464 = vmatpush1.bf16.msra.mxu0 %v3454
    %3465 = vmatprep.subr.bf16.mxu0 0
    %3466 = vmatpush1.bf16.msra.mxu0 %v3452
    %3467 = vmatprep.subr.bf16.mxu0 0
    %3468 = vmatpush1.bf16.msra.mxu0 %v3450
    %3469 = vmatprep.subr.bf16.mxu0 0
    %3470 = vmatpush1.bf16.msra.mxu0 %v3448
    %3471 = vmatprep.subr.bf16.mxu0 0
    %3472 = vmatpush1.bf16.msra.mxu0 %v3446
    %3473 = vmatprep.subr.bf16.mxu0 0
    %3474 = vmatpush1.bf16.msra.mxu0 %v3444
    %3475 = vmatprep.subr.bf16.mxu0 0
    %3476 = vmatpush1.bf16.msra.mxu0 %v3442
    %3477 = vmatprep.subr.bf16.mxu0 0
    %3478 = vmatpush1.bf16.msra.mxu0 %v3440
    %3479 = vmatprep.subr.bf16.mxu0 0
    %3480 = vmatpush2.bf16.msra.mxu0 0
    %3481 = vmatprep.subr.bf16.mxu0 0
    %3482 = vmatpush2.bf16.msra.mxu0 0
    %3483 = vmatprep.subr.bf16.mxu0 0
    %3484 = vmatpush2.bf16.msra.mxu0 0
    %3485 = vmatprep.subr.bf16.mxu0 0
    %3486 = vmatpush2.bf16.msra.mxu0 0
    %3487 = vmatprep.subr.bf16.mxu0 0
    %3488 = vmatpush2.bf16.msra.mxu0 0
    %3489 = vmatprep.subr.bf16.mxu0 0
    %3490 = vmatpush2.bf16.msra.mxu0 0
    %3491 = vmatprep.subr.bf16.mxu0 0
    %3492 = vmatpush2.bf16.msra.mxu0 0
    %3493 = vmatprep.subr.bf16.mxu0 0
    %3494 = vmatpush2.bf16.msra.mxu0 0
    %3495 = vmatprep.mubr.bf16.mxu0 0
    %3496 = vmatmul.mubr.bf16.gmra.mxu0 %v3423
    %v3497 = vpop.f32.mrf.mxu0
    %v3498 = vadd.f32 0.0, %v3497
    %v3499 = vpop.f32.mrf.mxu0
    %v3500 = vpop.f32.mrf.mxu0
    %v3501 = vadd.f32 0.0, %v3500
    %v3502 = vpop.f32.mrf.mxu0
    %3503 = vmatprep.mubr.bf16.mxu0 0
    %3504 = vmatmul.mubr.bf16.gmra.mxu0 %v3424
    %v3505 = vpop.f32.mrf.mxu0
    %v3506 = vadd.f32 0.0, %v3505
    %v3507 = vpop.f32.mrf.mxu0
    %v3508 = vpop.f32.mrf.mxu0
    %v3509 = vadd.f32 0.0, %v3508
    %v3510 = vpop.f32.mrf.mxu0
    %3511 = vmatprep.mubr.bf16.mxu0 0
    %3512 = vmatmul.mubr.bf16.gmra.mxu0 %v3425
    %v3513 = vpop.f32.mrf.mxu0
    %v3514 = vadd.f32 0.0, %v3513
    %v3515 = vpop.f32.mrf.mxu0
    %v3516 = vpop.f32.mrf.mxu0
    %v3517 = vadd.f32 0.0, %v3516
    %v3518 = vpop.f32.mrf.mxu0
    %3519 = vmatprep.mubr.bf16.mxu0 0
    %3520 = vmatmul.mubr.bf16.gmra.mxu0 %v3426
    %v3521 = vpop.f32.mrf.mxu0
    %v3522 = vadd.f32 0.0, %v3521
    %v3523 = vpop.f32.mrf.mxu0
    %v3524 = vpop.f32.mrf.mxu0
    %v3525 = vadd.f32 0.0, %v3524
    %v3526 = vpop.f32.mrf.mxu0
    %3527 = vmatprep.mubr.bf16.mxu0 0
    %3528 = vmatmul.mubr.bf16.gmra.mxu0 %v3427
    %v3529 = vpop.f32.mrf.mxu0
    %v3530 = vadd.f32 0.0, %v3529
    %v3531 = vpop.f32.mrf.mxu0
    %v3532 = vpop.f32.mrf.mxu0
    %v3533 = vadd.f32 0.0, %v3532
    %v3534 = vpop.f32.mrf.mxu0
    %3535 = vmatprep.mubr.bf16.mxu0 0
    %3536 = vmatmul.mubr.bf16.gmra.mxu0 %v3428
    %v3537 = vpop.f32.mrf.mxu0
    %v3538 = vadd.f32 0.0, %v3537
    %v3539 = vpop.f32.mrf.mxu0
    %v3540 = vpop.f32.mrf.mxu0
    %v3541 = vadd.f32 0.0, %v3540
    %v3542 = vpop.f32.mrf.mxu0
    %3543 = vmatprep.mubr.bf16.mxu0 0
    %3544 = vmatmul.mubr.bf16.gmra.mxu0 %v3429
    %v3545 = vpop.f32.mrf.mxu0
    %v3546 = vadd.f32 0.0, %v3545
    %v3547 = vpop.f32.mrf.mxu0
    %v3548 = vpop.f32.mrf.mxu0
    %v3549 = vadd.f32 0.0, %v3548
    %v3550 = vpop.f32.mrf.mxu0
    %3551 = vmatprep.mubr.bf16.mxu0 0
    %3552 = vmatmul.mubr.bf16.gmra.mxu0 %v3430
    %v3553 = vpop.f32.mrf.mxu0
    %v3554 = vadd.f32 0.0, %v3553
    %v3555 = vpop.f32.mrf.mxu0
    %v3556 = vpop.f32.mrf.mxu0
    %v3557 = vadd.f32 0.0, %v3556
    %v3558 = vpop.f32.mrf.mxu0
    %3559 = vdwg.mxu0
    %3560 = vrot.lane.b32.xlu0 %v650, 64
    %v3561 = vpop.permute.xlu0 %3560
    %3562 = vrot.lane.b32.xlu0 %v651, 64
    %v3563 = vpop.permute.xlu0 %3562
    %3564 = vrot.lane.b32.xlu0 %v652, 64
    %v3565 = vpop.permute.xlu0 %3564
    %3566 = vrot.lane.b32.xlu0 %v653, 64
    %v3567 = vpop.permute.xlu0 %3566
    %3568 = vrot.lane.b32.xlu0 %v654, 64
    %v3569 = vpop.permute.xlu0 %3568
    %3570 = vrot.lane.b32.xlu0 %v655, 64
    %v3571 = vpop.permute.xlu0 %3570
    %3572 = vrot.lane.b32.xlu0 %v656, 64
    %v3573 = vpop.permute.xlu0 %3572
    %3574 = vrot.lane.b32.xlu0 %v657, 64
    %v3575 = vpop.permute.xlu0 %3574
    %3584 = vmatprep.subr.bf16.mxu0 0
    %3585 = vmatpush1.bf16.msra.mxu0 %v3575
    %3586 = vmatprep.subr.bf16.mxu0 0
    %3587 = vmatpush1.bf16.msra.mxu0 %v3573
    %3588 = vmatprep.subr.bf16.mxu0 0
    %3589 = vmatpush1.bf16.msra.mxu0 %v3571
    %3590 = vmatprep.subr.bf16.mxu0 0
    %3591 = vmatpush1.bf16.msra.mxu0 %v3569
    %3592 = vmatprep.subr.bf16.mxu0 0
    %3593 = vmatpush1.bf16.msra.mxu0 %v3567
    %3594 = vmatprep.subr.bf16.mxu0 0
    %3595 = vmatpush1.bf16.msra.mxu0 %v3565
    %3596 = vmatprep.subr.bf16.mxu0 0
    %3597 = vmatpush1.bf16.msra.mxu0 %v3563
    %3598 = vmatprep.subr.bf16.mxu0 0
    %3599 = vmatpush1.bf16.msra.mxu0 %v3561
    %3600 = vmatprep.subr.bf16.mxu0 0
    %3601 = vmatpush2.bf16.msra.mxu0 0
    %3602 = vmatprep.subr.bf16.mxu0 0
    %3603 = vmatpush2.bf16.msra.mxu0 0
    %3604 = vmatprep.subr.bf16.mxu0 0
    %3605 = vmatpush2.bf16.msra.mxu0 0
    %3606 = vmatprep.subr.bf16.mxu0 0
    %3607 = vmatpush2.bf16.msra.mxu0 0
    %3608 = vmatprep.subr.bf16.mxu0 0
    %3609 = vmatpush2.bf16.msra.mxu0 0
    %3610 = vmatprep.subr.bf16.mxu0 0
    %3611 = vmatpush2.bf16.msra.mxu0 0
    %3612 = vmatprep.subr.bf16.mxu0 0
    %3613 = vmatpush2.bf16.msra.mxu0 0
    %3614 = vmatprep.subr.bf16.mxu0 0
    %3615 = vmatpush2.bf16.msra.mxu0 0
    %3616 = vmatprep.mubr.bf16.mxu0 0
    %3617 = vmatmul.mubr.bf16.gmra.mxu0 %v3431
    %v3618 = vpop.f32.mrf.mxu0
    %v3619 = vadd.f32 0.0, %v3618
    %v3620 = vpop.f32.mrf.mxu0
    %v3621 = vpop.f32.mrf.mxu0
    %v3622 = vadd.f32 0.0, %v3621
    %v3623 = vpop.f32.mrf.mxu0
    %3624 = vmatprep.mubr.bf16.mxu0 0
    %3625 = vmatmul.mubr.bf16.gmra.mxu0 %v3432
    %v3626 = vpop.f32.mrf.mxu0
    %v3627 = vadd.f32 0.0, %v3626
    %v3628 = vpop.f32.mrf.mxu0
    %v3629 = vpop.f32.mrf.mxu0
    %v3630 = vadd.f32 0.0, %v3629
    %v3631 = vpop.f32.mrf.mxu0
    %3632 = vmatprep.mubr.bf16.mxu0 0
    %3633 = vmatmul.mubr.bf16.gmra.mxu0 %v3433
    %v3634 = vpop.f32.mrf.mxu0
    %v3635 = vadd.f32 0.0, %v3634
    %v3636 = vpop.f32.mrf.mxu0
    %v3637 = vpop.f32.mrf.mxu0
    %v3638 = vadd.f32 0.0, %v3637
    %v3639 = vpop.f32.mrf.mxu0
    %3640 = vmatprep.mubr.bf16.mxu0 0
    %3641 = vmatmul.mubr.bf16.gmra.mxu0 %v3434
    %v3642 = vpop.f32.mrf.mxu0
    %v3643 = vadd.f32 0.0, %v3642
    %v3644 = vpop.f32.mrf.mxu0
    %v3645 = vpop.f32.mrf.mxu0
    %v3646 = vadd.f32 0.0, %v3645
    %v3647 = vpop.f32.mrf.mxu0
    %3648 = vmatprep.mubr.bf16.mxu0 0
    %3649 = vmatmul.mubr.bf16.gmra.mxu0 %v3435
    %v3650 = vpop.f32.mrf.mxu0
    %v3651 = vadd.f32 0.0, %v3650
    %v3652 = vpop.f32.mrf.mxu0
    %v3653 = vpop.f32.mrf.mxu0
    %v3654 = vadd.f32 0.0, %v3653
    %v3655 = vpop.f32.mrf.mxu0
    %3656 = vmatprep.mubr.bf16.mxu0 0
    %3657 = vmatmul.mubr.bf16.gmra.mxu0 %v3436
    %v3658 = vpop.f32.mrf.mxu0
    %v3659 = vadd.f32 0.0, %v3658
    %v3660 = vpop.f32.mrf.mxu0
    %v3661 = vpop.f32.mrf.mxu0
    %v3662 = vadd.f32 0.0, %v3661
    %v3663 = vpop.f32.mrf.mxu0
    %3664 = vmatprep.mubr.bf16.mxu0 0
    %3665 = vmatmul.mubr.bf16.gmra.mxu0 %v3437
    %v3666 = vpop.f32.mrf.mxu0
    %v3667 = vadd.f32 0.0, %v3666
    %v3668 = vpop.f32.mrf.mxu0
    %v3669 = vpop.f32.mrf.mxu0
    %v3670 = vadd.f32 0.0, %v3669
    %v3671 = vpop.f32.mrf.mxu0
    %3672 = vmatprep.mubr.bf16.mxu0 0
    %3673 = vmatmul.mubr.bf16.gmra.mxu0 %v3438
    %v3674 = vpop.f32.mrf.mxu0
    %v3675 = vadd.f32 0.0, %v3674
    %v3676 = vpop.f32.mrf.mxu0
    %v3677 = vpop.f32.mrf.mxu0
    %v3678 = vadd.f32 0.0, %v3677
    %v3679 = vpop.f32.mrf.mxu0
    %3680 = vdwg.mxu0
    %v3681 = vpack.c.bf16 %v3501, %v3498
    %v3682 = vpack.c.bf16 %v3509, %v3506
    %v3683 = vpack.c.bf16 %v3517, %v3514
    %v3684 = vpack.c.bf16 %v3525, %v3522
    %v3685 = vpack.c.bf16 %v3533, %v3530
    %v3686 = vpack.c.bf16 %v3541, %v3538
    %v3687 = vpack.c.bf16 %v3549, %v3546
    %v3688 = vpack.c.bf16 %v3557, %v3554
    %v3689 = vpack.c.bf16 %v3622, %v3619
    %v3690 = vpack.c.bf16 %v3630, %v3627
    %v3691 = vpack.c.bf16 %v3638, %v3635
    %v3692 = vpack.c.bf16 %v3646, %v3643
    %v3693 = vpack.c.bf16 %v3654, %v3651
    %v3694 = vpack.c.bf16 %v3662, %v3659
    %v3695 = vpack.c.bf16 %v3670, %v3667
    %v3696 = vpack.c.bf16 %v3678, %v3675
    %v3713 = vunpack.c.l.b16 %v3681
    %v3714 = vunpack.c.h.b16 %v3681
    %v3715 = vunpack.c.l.b16 %v3682
    %v3716 = vunpack.c.h.b16 %v3682
    %v3717 = vunpack.c.l.b16 %v3683
    %v3718 = vunpack.c.h.b16 %v3683
    %v3719 = vunpack.c.l.b16 %v3684
    %v3720 = vunpack.c.h.b16 %v3684
    %v3721 = vunpack.c.l.b16 %v3685
    %v3722 = vunpack.c.h.b16 %v3685
    %v3723 = vunpack.c.l.b16 %v3686
    %v3724 = vunpack.c.h.b16 %v3686
    %v3725 = vunpack.c.l.b16 %v3687
    %v3726 = vunpack.c.h.b16 %v3687
    %v3727 = vunpack.c.l.b16 %v3688
    %v3728 = vunpack.c.h.b16 %v3688
    %v3729 = vunpack.c.l.b16 %v3689
    %v3730 = vunpack.c.h.b16 %v3689
    %v3731 = vunpack.c.l.b16 %v3690
    %v3732 = vunpack.c.h.b16 %v3690
    %v3733 = vunpack.c.l.b16 %v3691
    %v3734 = vunpack.c.h.b16 %v3691
    %v3735 = vunpack.c.l.b16 %v3692
    %v3736 = vunpack.c.h.b16 %v3692
    %v3737 = vunpack.c.l.b16 %v3693
    %v3738 = vunpack.c.h.b16 %v3693
    %v3739 = vunpack.c.l.b16 %v3694
    %v3740 = vunpack.c.h.b16 %v3694
    %v3741 = vunpack.c.l.b16 %v3695
    %v3742 = vunpack.c.h.b16 %v3695
    %v3743 = vunpack.c.l.b16 %v3696
    %v3744 = vunpack.c.h.b16 %v3696
    %v3745 = vpack.c.b16 %v3713, %v3713
    %v3746 = vpack.c.b16 %v3714, %v3714
    %v3747 = vpack.c.b16 %v3715, %v3715
    %v3748 = vpack.c.b16 %v3716, %v3716
    %v3749 = vpack.c.b16 %v3717, %v3717
    %v3750 = vpack.c.b16 %v3718, %v3718
    %v3751 = vpack.c.b16 %v3719, %v3719
    %v3752 = vpack.c.b16 %v3720, %v3720
    %v3753 = vpack.c.b16 %v3721, %v3721
    %v3754 = vpack.c.b16 %v3722, %v3722
    %v3755 = vpack.c.b16 %v3723, %v3723
    %v3756 = vpack.c.b16 %v3724, %v3724
    %v3757 = vpack.c.b16 %v3725, %v3725
    %v3758 = vpack.c.b16 %v3726, %v3726
    %v3759 = vpack.c.b16 %v3727, %v3727
    %v3760 = vpack.c.b16 %v3728, %v3728
    %v3761 = vpack.c.b16 %v3729, %v3729
    %v3762 = vpack.c.b16 %v3730, %v3730
    %v3763 = vpack.c.b16 %v3731, %v3731
    %v3764 = vpack.c.b16 %v3732, %v3732
    %v3765 = vpack.c.b16 %v3733, %v3733
    %v3766 = vpack.c.b16 %v3734, %v3734
    %v3767 = vpack.c.b16 %v3735, %v3735
    %v3768 = vpack.c.b16 %v3736, %v3736
    %v3769 = vpack.c.b16 %v3737, %v3737
    %v3770 = vpack.c.b16 %v3738, %v3738
    %v3771 = vpack.c.b16 %v3739, %v3739
    %v3772 = vpack.c.b16 %v3740, %v3740
    %v3773 = vpack.c.b16 %v3741, %v3741
    %v3774 = vpack.c.b16 %v3742, %v3742
    %v3775 = vpack.c.b16 %v3743, %v3743
    %v3776 = vpack.c.b16 %v3744, %v3744
    %3777 = vrot.lane.b32.xlu0 %v3745, 64
    %v3778 = vpop.permute.xlu0 %3777
    %3779 = vrot.lane.b32.xlu0 %v3746, 64
    %v3780 = vpop.permute.xlu0 %3779
    %3781 = vrot.lane.b32.xlu0 %v3747, 64
    %v3782 = vpop.permute.xlu0 %3781
    %3783 = vrot.lane.b32.xlu0 %v3748, 64
    %v3784 = vpop.permute.xlu0 %3783
    %3785 = vrot.lane.b32.xlu0 %v3749, 64
    %v3786 = vpop.permute.xlu0 %3785
    %3787 = vrot.lane.b32.xlu0 %v3750, 64
    %v3788 = vpop.permute.xlu0 %3787
    %3789 = vrot.lane.b32.xlu0 %v3751, 64
    %v3790 = vpop.permute.xlu0 %3789
    %3791 = vrot.lane.b32.xlu0 %v3752, 64
    %v3792 = vpop.permute.xlu0 %3791
    %3793 = vrot.lane.b32.xlu0 %v3753, 64
    %v3794 = vpop.permute.xlu0 %3793
    %3795 = vrot.lane.b32.xlu0 %v3754, 64
    %v3796 = vpop.permute.xlu0 %3795
    %3797 = vrot.lane.b32.xlu0 %v3755, 64
    %v3798 = vpop.permute.xlu0 %3797
    %3799 = vrot.lane.b32.xlu0 %v3756, 64
    %v3800 = vpop.permute.xlu0 %3799
    %3801 = vrot.lane.b32.xlu0 %v3757, 64
    %v3802 = vpop.permute.xlu0 %3801
    %3803 = vrot.lane.b32.xlu0 %v3758, 64
    %v3804 = vpop.permute.xlu0 %3803
    %3805 = vrot.lane.b32.xlu0 %v3759, 64
    %v3806 = vpop.permute.xlu0 %3805
    %3807 = vrot.lane.b32.xlu0 %v3760, 64
    %v3808 = vpop.permute.xlu0 %3807
    %3809 = vrot.lane.b32.xlu0 %v3761, 64
    %v3810 = vpop.permute.xlu0 %3809
    %3811 = vrot.lane.b32.xlu0 %v3762, 64
    %v3812 = vpop.permute.xlu0 %3811
    %3813 = vrot.lane.b32.xlu0 %v3763, 64
    %v3814 = vpop.permute.xlu0 %3813
    %3815 = vrot.lane.b32.xlu0 %v3764, 64
    %v3816 = vpop.permute.xlu0 %3815
    %3817 = vrot.lane.b32.xlu0 %v3765, 64
    %v3818 = vpop.permute.xlu0 %3817
    %3819 = vrot.lane.b32.xlu0 %v3766, 64
    %v3820 = vpop.permute.xlu0 %3819
    %3821 = vrot.lane.b32.xlu0 %v3767, 64
    %v3822 = vpop.permute.xlu0 %3821
    %3823 = vrot.lane.b32.xlu0 %v3768, 64
    %v3824 = vpop.permute.xlu0 %3823
    %3825 = vrot.lane.b32.xlu0 %v3769, 64
    %v3826 = vpop.permute.xlu0 %3825
    %3827 = vrot.lane.b32.xlu0 %v3770, 64
    %v3828 = vpop.permute.xlu0 %3827
    %3829 = vrot.lane.b32.xlu0 %v3771, 64
    %v3830 = vpop.permute.xlu0 %3829
    %3831 = vrot.lane.b32.xlu0 %v3772, 64
    %v3832 = vpop.permute.xlu0 %3831
    %3833 = vrot.lane.b32.xlu0 %v3773, 64
    %v3834 = vpop.permute.xlu0 %3833
    %3835 = vrot.lane.b32.xlu0 %v3774, 64
    %v3836 = vpop.permute.xlu0 %3835
    %3837 = vrot.lane.b32.xlu0 %v3775, 64
    %v3838 = vpop.permute.xlu0 %3837
    %3839 = vrot.lane.b32.xlu0 %v3776, 64
    %v3840 = vpop.permute.xlu0 %3839
    %vm3873 = vcmask 781824
    %3874 = vst.msk [vmem:[#allocation2] sm:$0xf] %vm3873, %v3778
    %3875 = vst.msk [vmem:[#allocation2 + $0x4] sm:$0xf] %vm3873, %v3780
    %3876 = vst.msk [vmem:[#allocation2 + $0x8] sm:$0xf] %vm3873, %v3782
    %3877 = vst.msk [vmem:[#allocation2 + $0xc] sm:$0xf] %vm3873, %v3784
    %3878 = vst.msk [vmem:[#allocation2 + $0x10] sm:$0xf] %vm3873, %v3786
    %3879 = vst.msk [vmem:[#allocation2 + $0x14] sm:$0xf] %vm3873, %v3788
    %3880 = vst.msk [vmem:[#allocation2 + $0x18] sm:$0xf] %vm3873, %v3790
    %3881 = vst.msk [vmem:[#allocation2 + $0x1c] sm:$0xf] %vm3873, %v3792
    %3882 = vst.msk [vmem:[#allocation2 + $0x20] sm:$0xf] %vm3873, %v3794
    %3883 = vst.msk [vmem:[#allocation2 + $0x24] sm:$0xf] %vm3873, %v3796
    %3884 = vst.msk [vmem:[#allocation2 + $0x28] sm:$0xf] %vm3873, %v3798
    %3885 = vst.msk [vmem:[#allocation2 + $0x2c] sm:$0xf] %vm3873, %v3800
    %3886 = vst.msk [vmem:[#allocation2 + $0x30] sm:$0xf] %vm3873, %v3802
    %3887 = vst.msk [vmem:[#allocation2 + $0x34] sm:$0xf] %vm3873, %v3804
    %3888 = vst.msk [vmem:[#allocation2 + $0x38] sm:$0xf] %vm3873, %v3806
    %3889 = vst.msk [vmem:[#allocation2 + $0x3c] sm:$0xf] %vm3873, %v3808
    %3890 = vst.msk [vmem:[#allocation2 + $0x40] sm:$0xf] %vm3873, %v3810
    %3891 = vst.msk [vmem:[#allocation2 + $0x44] sm:$0xf] %vm3873, %v3812
    %3892 = vst.msk [vmem:[#allocation2 + $0x48] sm:$0xf] %vm3873, %v3814
    %3893 = vst.msk [vmem:[#allocation2 + $0x4c] sm:$0xf] %vm3873, %v3816
    %3894 = vst.msk [vmem:[#allocation2 + $0x50] sm:$0xf] %vm3873, %v3818
    %3895 = vst.msk [vmem:[#allocation2 + $0x54] sm:$0xf] %vm3873, %v3820
    %3896 = vst.msk [vmem:[#allocation2 + $0x58] sm:$0xf] %vm3873, %v3822
    %3897 = vst.msk [vmem:[#allocation2 + $0x5c] sm:$0xf] %vm3873, %v3824
    %3898 = vst.msk [vmem:[#allocation2 + $0x60] sm:$0xf] %vm3873, %v3826
    %3899 = vst.msk [vmem:[#allocation2 + $0x64] sm:$0xf] %vm3873, %v3828
    %3900 = vst.msk [vmem:[#allocation2 + $0x68] sm:$0xf] %vm3873, %v3830
    %3901 = vst.msk [vmem:[#allocation2 + $0x6c] sm:$0xf] %vm3873, %v3832
    %3902 = vst.msk [vmem:[#allocation2 + $0x70] sm:$0xf] %vm3873, %v3834
    %3903 = vst.msk [vmem:[#allocation2 + $0x74] sm:$0xf] %vm3873, %v3836
    %3904 = vst.msk [vmem:[#allocation2 + $0x78] sm:$0xf] %vm3873, %v3838
    %3905 = vst.msk [vmem:[#allocation2 + $0x7c] sm:$0xf] %vm3873, %v3840
    %3906 = vrot.lane.b32.xlu0 %v610, 32
    %v3907 = vpop.permute.xlu0 %3906
    %3908 = vrot.lane.b32.xlu0 %v611, 32
    %v3909 = vpop.permute.xlu0 %3908
    %3910 = vrot.lane.b32.xlu0 %v612, 32
    %v3911 = vpop.permute.xlu0 %3910
    %3912 = vrot.lane.b32.xlu0 %v613, 32
    %v3913 = vpop.permute.xlu0 %3912
    %3914 = vrot.lane.b32.xlu0 %v614, 32
    %v3915 = vpop.permute.xlu0 %3914
    %3916 = vrot.lane.b32.xlu0 %v615, 32
    %v3917 = vpop.permute.xlu0 %3916
    %3918 = vrot.lane.b32.xlu0 %v616, 32
    %v3919 = vpop.permute.xlu0 %3918
    %3920 = vrot.lane.b32.xlu0 %v617, 32
    %v3921 = vpop.permute.xlu0 %3920
    %3922 = vrot.lane.b32.xlu0 %v626, 32
    %v3923 = vpop.permute.xlu0 %3922
    %3924 = vrot.lane.b32.xlu0 %v627, 32
    %v3925 = vpop.permute.xlu0 %3924
    %3926 = vrot.lane.b32.xlu0 %v628, 32
    %v3927 = vpop.permute.xlu0 %3926
    %3928 = vrot.lane.b32.xlu0 %v629, 32
    %v3929 = vpop.permute.xlu0 %3928
    %3930 = vrot.lane.b32.xlu0 %v630, 32
    %v3931 = vpop.permute.xlu0 %3930
    %3932 = vrot.lane.b32.xlu0 %v631, 32
    %v3933 = vpop.permute.xlu0 %3932
    %3934 = vrot.lane.b32.xlu0 %v632, 32
    %v3935 = vpop.permute.xlu0 %3934
    %3936 = vrot.lane.b32.xlu0 %v633, 32
    %v3937 = vpop.permute.xlu0 %3936
    %v3939 = vsel %vm658, %v3907, 0
    %v3942 = vsel %vm658, %v3909, 0
    %v3945 = vsel %vm658, %v3911, 0
    %v3948 = vsel %vm658, %v3913, 0
    %v3951 = vsel %vm658, %v3915, 0
    %v3954 = vsel %vm658, %v3917, 0
    %v3957 = vsel %vm658, %v3919, 0
    %v3960 = vsel %vm658, %v3921, 0
    %v3963 = vsel %vm658, %v3923, 0
    %v3966 = vsel %vm658, %v3925, 0
    %v3969 = vsel %vm658, %v3927, 0
    %v3972 = vsel %vm658, %v3929, 0
    %v3975 = vsel %vm658, %v3931, 0
    %v3978 = vsel %vm658, %v3933, 0
    %v3981 = vsel %vm658, %v3935, 0
    %v3984 = vsel %vm658, %v3937, 0
    %3986 = vmatprep.subr.bf16.mxu0 0
    %3987 = vmatpush1.bf16.xpose.msra.mxu0 %v3984
    %3988 = vmatprep.subr.bf16.mxu0 0
    %3989 = vmatpush1.bf16.xpose.msra.mxu0 %v3981
    %3990 = vmatprep.subr.bf16.mxu0 0
    %3991 = vmatpush1.bf16.xpose.msra.mxu0 %v3978
    %3992 = vmatprep.subr.bf16.mxu0 0
    %3993 = vmatpush1.bf16.xpose.msra.mxu0 %v3975
    %3994 = vmatprep.subr.bf16.mxu0 0
    %3995 = vmatpush1.bf16.xpose.msra.mxu0 %v3972
    %3996 = vmatprep.subr.bf16.mxu0 0
    %3997 = vmatpush1.bf16.xpose.msra.mxu0 %v3969
    %3998 = vmatprep.subr.bf16.mxu0 0
    %3999 = vmatpush1.bf16.xpose.msra.mxu0 %v3966
    %4000 = vmatprep.subr.bf16.mxu0 0
    %4001 = vmatpush1.bf16.xpose.msra.mxu0 %v3963
    %4002 = vmatprep.subr.bf16.mxu0 0
    %4003 = vmatpush2.bf16.xpose.msra.mxu0 0
    %4004 = vmatprep.subr.bf16.mxu0 0
    %4005 = vmatpush2.bf16.xpose.msra.mxu0 0
    %4006 = vmatprep.subr.bf16.mxu0 0
    %4007 = vmatpush2.bf16.xpose.msra.mxu0 0
    %4008 = vmatprep.subr.bf16.mxu0 0
    %4009 = vmatpush2.bf16.xpose.msra.mxu0 0
    %4010 = vmatprep.subr.bf16.mxu0 0
    %4011 = vmatpush2.bf16.xpose.msra.mxu0 0
    %4012 = vmatprep.subr.bf16.mxu0 0
    %4013 = vmatpush2.bf16.xpose.msra.mxu0 0
    %4014 = vmatprep.subr.bf16.mxu0 0
    %4015 = vmatpush2.bf16.xpose.msra.mxu0 0
    %4016 = vmatprep.subr.bf16.mxu0 0
    %4017 = vmatpush2.bf16.xpose.msra.mxu0 0
    %4018 = vmatprep.mubr.bf16.mxu0 0
    %4019 = vmatmul.mubr.bf16.gmra.mxu0 %v3939
    %v4020 = vpop.f32.mrf.mxu0
    %v4021 = vadd.f32 0.0, %v4020
    %v4022 = vpop.f32.mrf.mxu0
    %v4023 = vpop.f32.mrf.mxu0
    %v4024 = vadd.f32 0.0, %v4023
    %v4025 = vpop.f32.mrf.mxu0
    %4026 = vmatprep.mubr.bf16.mxu0 0
    %4027 = vmatmul.mubr.bf16.gmra.mxu0 %v3942
    %v4028 = vpop.f32.mrf.mxu0
    %v4029 = vadd.f32 0.0, %v4028
    %v4030 = vpop.f32.mrf.mxu0
    %v4031 = vpop.f32.mrf.mxu0
    %v4032 = vadd.f32 0.0, %v4031
    %v4033 = vpop.f32.mrf.mxu0
    %4034 = vmatprep.mubr.bf16.mxu0 0
    %4035 = vmatmul.mubr.bf16.gmra.mxu0 %v3945
    %v4036 = vpop.f32.mrf.mxu0
    %v4037 = vadd.f32 0.0, %v4036
    %v4038 = vpop.f32.mrf.mxu0
    %v4039 = vpop.f32.mrf.mxu0
    %v4040 = vadd.f32 0.0, %v4039
    %v4041 = vpop.f32.mrf.mxu0
    %4042 = vmatprep.mubr.bf16.mxu0 0
    %4043 = vmatmul.mubr.bf16.gmra.mxu0 %v3948
    %v4044 = vpop.f32.mrf.mxu0
    %v4045 = vadd.f32 0.0, %v4044
    %v4046 = vpop.f32.mrf.mxu0
    %v4047 = vpop.f32.mrf.mxu0
    %v4048 = vadd.f32 0.0, %v4047
    %v4049 = vpop.f32.mrf.mxu0
    %4050 = vmatprep.mubr.bf16.mxu0 0
    %4051 = vmatmul.mubr.bf16.gmra.mxu0 %v3951
    %v4052 = vpop.f32.mrf.mxu0
    %v4053 = vadd.f32 0.0, %v4052
    %v4054 = vpop.f32.mrf.mxu0
    %v4055 = vpop.f32.mrf.mxu0
    %v4056 = vadd.f32 0.0, %v4055
    %v4057 = vpop.f32.mrf.mxu0
    %4058 = vmatprep.mubr.bf16.mxu0 0
    %4059 = vmatmul.mubr.bf16.gmra.mxu0 %v3954
    %v4060 = vpop.f32.mrf.mxu0
    %v4061 = vadd.f32 0.0, %v4060
    %v4062 = vpop.f32.mrf.mxu0
    %v4063 = vpop.f32.mrf.mxu0
    %v4064 = vadd.f32 0.0, %v4063
    %v4065 = vpop.f32.mrf.mxu0
    %4066 = vmatprep.mubr.bf16.mxu0 0
    %4067 = vmatmul.mubr.bf16.gmra.mxu0 %v3957
    %v4068 = vpop.f32.mrf.mxu0
    %v4069 = vadd.f32 0.0, %v4068
    %v4070 = vpop.f32.mrf.mxu0
    %v4071 = vpop.f32.mrf.mxu0
    %v4072 = vadd.f32 0.0, %v4071
    %v4073 = vpop.f32.mrf.mxu0
    %4074 = vmatprep.mubr.bf16.mxu0 0
    %4075 = vmatmul.mubr.bf16.gmra.mxu0 %v3960
    %v4076 = vpop.f32.mrf.mxu0
    %v4077 = vadd.f32 0.0, %v4076
    %v4078 = vpop.f32.mrf.mxu0
    %v4079 = vpop.f32.mrf.mxu0
    %v4080 = vadd.f32 0.0, %v4079
    %v4081 = vpop.f32.mrf.mxu0
    %4082 = vdwg.mxu0
    %4083 = vrot.lane.b32.xlu0 %v618, 32
    %v4084 = vpop.permute.xlu0 %4083
    %4085 = vrot.lane.b32.xlu0 %v619, 32
    %v4086 = vpop.permute.xlu0 %4085
    %4087 = vrot.lane.b32.xlu0 %v620, 32
    %v4088 = vpop.permute.xlu0 %4087
    %4089 = vrot.lane.b32.xlu0 %v621, 32
    %v4090 = vpop.permute.xlu0 %4089
    %4091 = vrot.lane.b32.xlu0 %v622, 32
    %v4092 = vpop.permute.xlu0 %4091
    %4093 = vrot.lane.b32.xlu0 %v623, 32
    %v4094 = vpop.permute.xlu0 %4093
    %4095 = vrot.lane.b32.xlu0 %v624, 32
    %v4096 = vpop.permute.xlu0 %4095
    %4097 = vrot.lane.b32.xlu0 %v625, 32
    %v4098 = vpop.permute.xlu0 %4097
    %4099 = vrot.lane.b32.xlu0 %v634, 32
    %v4100 = vpop.permute.xlu0 %4099
    %4101 = vrot.lane.b32.xlu0 %v635, 32
    %v4102 = vpop.permute.xlu0 %4101
    %4103 = vrot.lane.b32.xlu0 %v636, 32
    %v4104 = vpop.permute.xlu0 %4103
    %4105 = vrot.lane.b32.xlu0 %v637, 32
    %v4106 = vpop.permute.xlu0 %4105
    %4107 = vrot.lane.b32.xlu0 %v638, 32
    %v4108 = vpop.permute.xlu0 %4107
    %4109 = vrot.lane.b32.xlu0 %v639, 32
    %v4110 = vpop.permute.xlu0 %4109
    %4111 = vrot.lane.b32.xlu0 %v640, 32
    %v4112 = vpop.permute.xlu0 %4111
    %4113 = vrot.lane.b32.xlu0 %v641, 32
    %v4114 = vpop.permute.xlu0 %4113
    %v4116 = vsel %vm658, %v4084, 0
    %v4119 = vsel %vm658, %v4086, 0
    %v4122 = vsel %vm658, %v4088, 0
    %v4125 = vsel %vm658, %v4090, 0
    %v4128 = vsel %vm658, %v4092, 0
    %v4131 = vsel %vm658, %v4094, 0
    %v4134 = vsel %vm658, %v4096, 0
    %v4137 = vsel %vm658, %v4098, 0
    %v4140 = vsel %vm658, %v4100, 0
    %v4143 = vsel %vm658, %v4102, 0
    %v4146 = vsel %vm658, %v4104, 0
    %v4149 = vsel %vm658, %v4106, 0
    %v4152 = vsel %vm658, %v4108, 0
    %v4155 = vsel %vm658, %v4110, 0
    %v4158 = vsel %vm658, %v4112, 0
    %v4161 = vsel %vm658, %v4114, 0
    %4163 = vmatprep.subr.bf16.mxu0 0
    %4164 = vmatpush1.bf16.xpose.msra.mxu0 %v4161
    %4165 = vmatprep.subr.bf16.mxu0 0
    %4166 = vmatpush1.bf16.xpose.msra.mxu0 %v4158
    %4167 = vmatprep.subr.bf16.mxu0 0
    %4168 = vmatpush1.bf16.xpose.msra.mxu0 %v4155
    %4169 = vmatprep.subr.bf16.mxu0 0
    %4170 = vmatpush1.bf16.xpose.msra.mxu0 %v4152
    %4171 = vmatprep.subr.bf16.mxu0 0
    %4172 = vmatpush1.bf16.xpose.msra.mxu0 %v4149
    %4173 = vmatprep.subr.bf16.mxu0 0
    %4174 = vmatpush1.bf16.xpose.msra.mxu0 %v4146
    %4175 = vmatprep.subr.bf16.mxu0 0
    %4176 = vmatpush1.bf16.xpose.msra.mxu0 %v4143
    %4177 = vmatprep.subr.bf16.mxu0 0
    %4178 = vmatpush1.bf16.xpose.msra.mxu0 %v4140
    %4179 = vmatprep.subr.bf16.mxu0 0
    %4180 = vmatpush2.bf16.xpose.msra.mxu0 0
    %4181 = vmatprep.subr.bf16.mxu0 0
    %4182 = vmatpush2.bf16.xpose.msra.mxu0 0
    %4183 = vmatprep.subr.bf16.mxu0 0
    %4184 = vmatpush2.bf16.xpose.msra.mxu0 0
    %4185 = vmatprep.subr.bf16.mxu0 0
    %4186 = vmatpush2.bf16.xpose.msra.mxu0 0
    %4187 = vmatprep.subr.bf16.mxu0 0
    %4188 = vmatpush2.bf16.xpose.msra.mxu0 0
    %4189 = vmatprep.subr.bf16.mxu0 0
    %4190 = vmatpush2.bf16.xpose.msra.mxu0 0
    %4191 = vmatprep.subr.bf16.mxu0 0
    %4192 = vmatpush2.bf16.xpose.msra.mxu0 0
    %4193 = vmatprep.subr.bf16.mxu0 0
    %4194 = vmatpush2.bf16.xpose.msra.mxu0 0
    %4195 = vmatprep.mubr.bf16.mxu0 0
    %4196 = vmatmul.mubr.bf16.gmra.mxu0 %v4116
    %v4197 = vpop.f32.mrf.mxu0
    %v4198 = vadd.f32 0.0, %v4197
    %v4199 = vpop.f32.mrf.mxu0
    %v4200 = vpop.f32.mrf.mxu0
    %v4201 = vadd.f32 0.0, %v4200
    %v4202 = vpop.f32.mrf.mxu0
    %4203 = vmatprep.mubr.bf16.mxu0 0
    %4204 = vmatmul.mubr.bf16.gmra.mxu0 %v4119
    %v4205 = vpop.f32.mrf.mxu0
    %v4206 = vadd.f32 0.0, %v4205
    %v4207 = vpop.f32.mrf.mxu0
    %v4208 = vpop.f32.mrf.mxu0
    %v4209 = vadd.f32 0.0, %v4208
    %v4210 = vpop.f32.mrf.mxu0
    %4211 = vmatprep.mubr.bf16.mxu0 0
    %4212 = vmatmul.mubr.bf16.gmra.mxu0 %v4122
    %v4213 = vpop.f32.mrf.mxu0
    %v4214 = vadd.f32 0.0, %v4213
    %v4215 = vpop.f32.mrf.mxu0
    %v4216 = vpop.f32.mrf.mxu0
    %v4217 = vadd.f32 0.0, %v4216
    %v4218 = vpop.f32.mrf.mxu0
    %4219 = vmatprep.mubr.bf16.mxu0 0
    %4220 = vmatmul.mubr.bf16.gmra.mxu0 %v4125
    %v4221 = vpop.f32.mrf.mxu0
    %v4222 = vadd.f32 0.0, %v4221
    %v4223 = vpop.f32.mrf.mxu0
    %v4224 = vpop.f32.mrf.mxu0
    %v4225 = vadd.f32 0.0, %v4224
    %v4226 = vpop.f32.mrf.mxu0
    %4227 = vmatprep.mubr.bf16.mxu0 0
    %4228 = vmatmul.mubr.bf16.gmra.mxu0 %v4128
    %v4229 = vpop.f32.mrf.mxu0
    %v4230 = vadd.f32 0.0, %v4229
    %v4231 = vpop.f32.mrf.mxu0
    %v4232 = vpop.f32.mrf.mxu0
    %v4233 = vadd.f32 0.0, %v4232
    %v4234 = vpop.f32.mrf.mxu0
    %4235 = vmatprep.mubr.bf16.mxu0 0
    %4236 = vmatmul.mubr.bf16.gmra.mxu0 %v4131
    %v4237 = vpop.f32.mrf.mxu0
    %v4238 = vadd.f32 0.0, %v4237
    %v4239 = vpop.f32.mrf.mxu0
    %v4240 = vpop.f32.mrf.mxu0
    %v4241 = vadd.f32 0.0, %v4240
    %v4242 = vpop.f32.mrf.mxu0
    %4243 = vmatprep.mubr.bf16.mxu0 0
    %4244 = vmatmul.mubr.bf16.gmra.mxu0 %v4134
    %v4245 = vpop.f32.mrf.mxu0
    %v4246 = vadd.f32 0.0, %v4245
    %v4247 = vpop.f32.mrf.mxu0
    %v4248 = vpop.f32.mrf.mxu0
    %v4249 = vadd.f32 0.0, %v4248
    %v4250 = vpop.f32.mrf.mxu0
    %4251 = vmatprep.mubr.bf16.mxu0 0
    %4252 = vmatmul.mubr.bf16.gmra.mxu0 %v4137
    %v4253 = vpop.f32.mrf.mxu0
    %v4254 = vadd.f32 0.0, %v4253
    %v4255 = vpop.f32.mrf.mxu0
    %v4256 = vpop.f32.mrf.mxu0
    %v4257 = vadd.f32 0.0, %v4256
    %v4258 = vpop.f32.mrf.mxu0
    %4259 = vdwg.mxu0
    %4260 = vmax.xlane.f32.xlu0 %v4021
    %v4261 = vpop.xlane.xlu0 %4260
    %4262 = vmax.xlane.f32.xlu0 %v4024
    %v4263 = vpop.xlane.xlu0 %4262
    %4264 = vmax.xlane.f32.xlu0 %v4029
    %v4265 = vpop.xlane.xlu0 %4264
    %4266 = vmax.xlane.f32.xlu0 %v4032
    %v4267 = vpop.xlane.xlu0 %4266
    %4268 = vmax.xlane.f32.xlu0 %v4037
    %v4269 = vpop.xlane.xlu0 %4268
    %4270 = vmax.xlane.f32.xlu0 %v4040
    %v4271 = vpop.xlane.xlu0 %4270
    %4272 = vmax.xlane.f32.xlu0 %v4045
    %v4273 = vpop.xlane.xlu0 %4272
    %4274 = vmax.xlane.f32.xlu0 %v4048
    %v4275 = vpop.xlane.xlu0 %4274
    %4276 = vmax.xlane.f32.xlu0 %v4053
    %v4277 = vpop.xlane.xlu0 %4276
    %4278 = vmax.xlane.f32.xlu0 %v4056
    %v4279 = vpop.xlane.xlu0 %4278
    %4280 = vmax.xlane.f32.xlu0 %v4061
    %v4281 = vpop.xlane.xlu0 %4280
    %4282 = vmax.xlane.f32.xlu0 %v4064
    %v4283 = vpop.xlane.xlu0 %4282
    %4284 = vmax.xlane.f32.xlu0 %v4069
    %v4285 = vpop.xlane.xlu0 %4284
    %4286 = vmax.xlane.f32.xlu0 %v4072
    %v4287 = vpop.xlane.xlu0 %4286
    %4288 = vmax.xlane.f32.xlu0 %v4077
    %v4289 = vpop.xlane.xlu0 %4288
    %4290 = vmax.xlane.f32.xlu0 %v4080
    %v4291 = vpop.xlane.xlu0 %4290
    %4292 = vmax.xlane.f32.xlu0 %v4198
    %v4293 = vpop.xlane.xlu0 %4292
    %4294 = vmax.xlane.f32.xlu0 %v4201
    %v4295 = vpop.xlane.xlu0 %4294
    %4296 = vmax.xlane.f32.xlu0 %v4206
    %v4297 = vpop.xlane.xlu0 %4296
    %4298 = vmax.xlane.f32.xlu0 %v4209
    %v4299 = vpop.xlane.xlu0 %4298
    %4300 = vmax.xlane.f32.xlu0 %v4214
    %v4301 = vpop.xlane.xlu0 %4300
    %4302 = vmax.xlane.f32.xlu0 %v4217
    %v4303 = vpop.xlane.xlu0 %4302
    %4304 = vmax.xlane.f32.xlu0 %v4222
    %v4305 = vpop.xlane.xlu0 %4304
    %4306 = vmax.xlane.f32.xlu0 %v4225
    %v4307 = vpop.xlane.xlu0 %4306
    %4308 = vmax.xlane.f32.xlu0 %v4230
    %v4309 = vpop.xlane.xlu0 %4308
    %4310 = vmax.xlane.f32.xlu0 %v4233
    %v4311 = vpop.xlane.xlu0 %4310
    %4312 = vmax.xlane.f32.xlu0 %v4238
    %v4313 = vpop.xlane.xlu0 %4312
    %4314 = vmax.xlane.f32.xlu0 %v4241
    %v4315 = vpop.xlane.xlu0 %4314
    %4316 = vmax.xlane.f32.xlu0 %v4246
    %v4317 = vpop.xlane.xlu0 %4316
    %4318 = vmax.xlane.f32.xlu0 %v4249
    %v4319 = vpop.xlane.xlu0 %4318
    %4320 = vmax.xlane.f32.xlu0 %v4254
    %v4321 = vpop.xlane.xlu0 %4320
    %4322 = vmax.xlane.f32.xlu0 %v4257
    %v4323 = vpop.xlane.xlu0 %4322
    %v4324 = vsub.f32 %v4021, %v4261
    %v4325 = vsub.f32 %v4024, %v4263
    %v4326 = vsub.f32 %v4029, %v4265
    %v4327 = vsub.f32 %v4032, %v4267
    %v4328 = vsub.f32 %v4037, %v4269
    %v4329 = vsub.f32 %v4040, %v4271
    %v4330 = vsub.f32 %v4045, %v4273
    %v4331 = vsub.f32 %v4048, %v4275
    %v4332 = vsub.f32 %v4053, %v4277
    %v4333 = vsub.f32 %v4056, %v4279
    %v4334 = vsub.f32 %v4061, %v4281
    %v4335 = vsub.f32 %v4064, %v4283
    %v4336 = vsub.f32 %v4069, %v4285
    %v4337 = vsub.f32 %v4072, %v4287
    %v4338 = vsub.f32 %v4077, %v4289
    %v4339 = vsub.f32 %v4080, %v4291
    %v4340 = vsub.f32 %v4198, %v4293
    %v4341 = vsub.f32 %v4201, %v4295
    %v4342 = vsub.f32 %v4206, %v4297
    %v4343 = vsub.f32 %v4209, %v4299
    %v4344 = vsub.f32 %v4214, %v4301
    %v4345 = vsub.f32 %v4217, %v4303
    %v4346 = vsub.f32 %v4222, %v4305
    %v4347 = vsub.f32 %v4225, %v4307
    %v4348 = vsub.f32 %v4230, %v4309
    %v4349 = vsub.f32 %v4233, %v4311
    %v4350 = vsub.f32 %v4238, %v4313
    %v4351 = vsub.f32 %v4241, %v4315
    %v4352 = vsub.f32 %v4246, %v4317
    %v4353 = vsub.f32 %v4249, %v4319
    %v4354 = vsub.f32 %v4254, %v4321
    %v4355 = vsub.f32 %v4257, %v4323
    %v4356 = vmul.f32 %v4324, 1.442695
    %v4357 = vpow.pop %v4356
    %v4358 = vmul.f32 %v4325, 1.442695
    %v4359 = vpow.pop %v4358
    %v4360 = vmul.f32 %v4326, 1.442695
    %v4361 = vpow.pop %v4360
    %v4362 = vmul.f32 %v4327, 1.442695
    %v4363 = vpow.pop %v4362
    %v4364 = vmul.f32 %v4328, 1.442695
    %v4365 = vpow.pop %v4364
    %v4366 = vmul.f32 %v4329, 1.442695
    %v4367 = vpow.pop %v4366
    %v4368 = vmul.f32 %v4330, 1.442695
    %v4369 = vpow.pop %v4368
    %v4370 = vmul.f32 %v4331, 1.442695
    %v4371 = vpow.pop %v4370
    %v4372 = vmul.f32 %v4332, 1.442695
    %v4373 = vpow.pop %v4372
    %v4374 = vmul.f32 %v4333, 1.442695
    %v4375 = vpow.pop %v4374
    %v4376 = vmul.f32 %v4334, 1.442695
    %v4377 = vpow.pop %v4376
    %v4378 = vmul.f32 %v4335, 1.442695
    %v4379 = vpow.pop %v4378
    %v4380 = vmul.f32 %v4336, 1.442695
    %v4381 = vpow.pop %v4380
    %v4382 = vmul.f32 %v4337, 1.442695
    %v4383 = vpow.pop %v4382
    %v4384 = vmul.f32 %v4338, 1.442695
    %v4385 = vpow.pop %v4384
    %v4386 = vmul.f32 %v4339, 1.442695
    %v4387 = vpow.pop %v4386
    %v4388 = vmul.f32 %v4340, 1.442695
    %v4389 = vpow.pop %v4388
    %v4390 = vmul.f32 %v4341, 1.442695
    %v4391 = vpow.pop %v4390
    %v4392 = vmul.f32 %v4342, 1.442695
    %v4393 = vpow.pop %v4392
    %v4394 = vmul.f32 %v4343, 1.442695
    %v4395 = vpow.pop %v4394
    %v4396 = vmul.f32 %v4344, 1.442695
    %v4397 = vpow.pop %v4396
    %v4398 = vmul.f32 %v4345, 1.442695
    %v4399 = vpow.pop %v4398
    %v4400 = vmul.f32 %v4346, 1.442695
    %v4401 = vpow.pop %v4400
    %v4402 = vmul.f32 %v4347, 1.442695
    %v4403 = vpow.pop %v4402
    %v4404 = vmul.f32 %v4348, 1.442695
    %v4405 = vpow.pop %v4404
    %v4406 = vmul.f32 %v4349, 1.442695
    %v4407 = vpow.pop %v4406
    %v4408 = vmul.f32 %v4350, 1.442695
    %v4409 = vpow.pop %v4408
    %v4410 = vmul.f32 %v4351, 1.442695
    %v4411 = vpow.pop %v4410
    %v4412 = vmul.f32 %v4352, 1.442695
    %v4413 = vpow.pop %v4412
    %v4414 = vmul.f32 %v4353, 1.442695
    %v4415 = vpow.pop %v4414
    %v4416 = vmul.f32 %v4354, 1.442695
    %v4417 = vpow.pop %v4416
    %v4418 = vmul.f32 %v4355, 1.442695
    %v4419 = vpow.pop %v4418
    %4420 = vadd.xlane.f32.xlu0 %v4357
    %v4421 = vpop.xlane.xlu0 %4420
    %4422 = vadd.xlane.f32.xlu0 %v4359
    %v4423 = vpop.xlane.xlu0 %4422
    %4424 = vadd.xlane.f32.xlu0 %v4361
    %v4425 = vpop.xlane.xlu0 %4424
    %4426 = vadd.xlane.f32.xlu0 %v4363
    %v4427 = vpop.xlane.xlu0 %4426
    %4428 = vadd.xlane.f32.xlu0 %v4365
    %v4429 = vpop.xlane.xlu0 %4428
    %4430 = vadd.xlane.f32.xlu0 %v4367
    %v4431 = vpop.xlane.xlu0 %4430
    %4432 = vadd.xlane.f32.xlu0 %v4369
    %v4433 = vpop.xlane.xlu0 %4432
    %4434 = vadd.xlane.f32.xlu0 %v4371
    %v4435 = vpop.xlane.xlu0 %4434
    %4436 = vadd.xlane.f32.xlu0 %v4373
    %v4437 = vpop.xlane.xlu0 %4436
    %4438 = vadd.xlane.f32.xlu0 %v4375
    %v4439 = vpop.xlane.xlu0 %4438
    %4440 = vadd.xlane.f32.xlu0 %v4377
    %v4441 = vpop.xlane.xlu0 %4440
    %4442 = vadd.xlane.f32.xlu0 %v4379
    %v4443 = vpop.xlane.xlu0 %4442
    %4444 = vadd.xlane.f32.xlu0 %v4381
    %v4445 = vpop.xlane.xlu0 %4444
    %4446 = vadd.xlane.f32.xlu0 %v4383
    %v4447 = vpop.xlane.xlu0 %4446
    %4448 = vadd.xlane.f32.xlu0 %v4385
    %v4449 = vpop.xlane.xlu0 %4448
    %4450 = vadd.xlane.f32.xlu0 %v4387
    %v4451 = vpop.xlane.xlu0 %4450
    %4452 = vadd.xlane.f32.xlu0 %v4389
    %v4453 = vpop.xlane.xlu0 %4452
    %4454 = vadd.xlane.f32.xlu0 %v4391
    %v4455 = vpop.xlane.xlu0 %4454
    %4456 = vadd.xlane.f32.xlu0 %v4393
    %v4457 = vpop.xlane.xlu0 %4456
    %4458 = vadd.xlane.f32.xlu0 %v4395
    %v4459 = vpop.xlane.xlu0 %4458
    %4460 = vadd.xlane.f32.xlu0 %v4397
    %v4461 = vpop.xlane.xlu0 %4460
    %4462 = vadd.xlane.f32.xlu0 %v4399
    %v4463 = vpop.xlane.xlu0 %4462
    %4464 = vadd.xlane.f32.xlu0 %v4401
    %v4465 = vpop.xlane.xlu0 %4464
    %4466 = vadd.xlane.f32.xlu0 %v4403
    %v4467 = vpop.xlane.xlu0 %4466
    %4468 = vadd.xlane.f32.xlu0 %v4405
    %v4469 = vpop.xlane.xlu0 %4468
    %4470 = vadd.xlane.f32.xlu0 %v4407
    %v4471 = vpop.xlane.xlu0 %4470
    %4472 = vadd.xlane.f32.xlu0 %v4409
    %v4473 = vpop.xlane.xlu0 %4472
    %4474 = vadd.xlane.f32.xlu0 %v4411
    %v4475 = vpop.xlane.xlu0 %4474
    %4476 = vadd.xlane.f32.xlu0 %v4413
    %v4477 = vpop.xlane.xlu0 %4476
    %4478 = vadd.xlane.f32.xlu0 %v4415
    %v4479 = vpop.xlane.xlu0 %4478
    %4480 = vadd.xlane.f32.xlu0 %v4417
    %v4481 = vpop.xlane.xlu0 %4480
    %4482 = vadd.xlane.f32.xlu0 %v4419
    %v4483 = vpop.xlane.xlu0 %4482
    %v4484 = vrcp.pop %v4421
    %v4485 = vrcp.pop %v4423
    %v4486 = vrcp.pop %v4425
    %v4487 = vrcp.pop %v4427
    %v4488 = vrcp.pop %v4429
    %v4489 = vrcp.pop %v4431
    %v4490 = vrcp.pop %v4433
    %v4491 = vrcp.pop %v4435
    %v4492 = vrcp.pop %v4437
    %v4493 = vrcp.pop %v4439
    %v4494 = vrcp.pop %v4441
    %v4495 = vrcp.pop %v4443
    %v4496 = vrcp.pop %v4445
    %v4497 = vrcp.pop %v4447
    %v4498 = vrcp.pop %v4449
    %v4499 = vrcp.pop %v4451
    %v4500 = vrcp.pop %v4453
    %v4501 = vrcp.pop %v4455
    %v4502 = vrcp.pop %v4457
    %v4503 = vrcp.pop %v4459
    %v4504 = vrcp.pop %v4461
    %v4505 = vrcp.pop %v4463
    %v4506 = vrcp.pop %v4465
    %v4507 = vrcp.pop %v4467
    %v4508 = vrcp.pop %v4469
    %v4509 = vrcp.pop %v4471
    %v4510 = vrcp.pop %v4473
    %v4511 = vrcp.pop %v4475
    %v4512 = vrcp.pop %v4477
    %v4513 = vrcp.pop %v4479
    %v4514 = vrcp.pop %v4481
    %v4515 = vrcp.pop %v4483
    %v4516 = vmul.f32 %v4357, %v4484
    %v4517 = vmul.f32 %v4359, %v4485
    %v4518 = vmul.f32 %v4361, %v4486
    %v4519 = vmul.f32 %v4363, %v4487
    %v4520 = vmul.f32 %v4365, %v4488
    %v4521 = vmul.f32 %v4367, %v4489
    %v4522 = vmul.f32 %v4369, %v4490
    %v4523 = vmul.f32 %v4371, %v4491
    %v4524 = vmul.f32 %v4373, %v4492
    %v4525 = vmul.f32 %v4375, %v4493
    %v4526 = vmul.f32 %v4377, %v4494
    %v4527 = vmul.f32 %v4379, %v4495
    %v4528 = vmul.f32 %v4381, %v4496
    %v4529 = vmul.f32 %v4383, %v4497
    %v4530 = vmul.f32 %v4385, %v4498
    %v4531 = vmul.f32 %v4387, %v4499
    %v4532 = vmul.f32 %v4389, %v4500
    %v4533 = vmul.f32 %v4391, %v4501
    %v4534 = vmul.f32 %v4393, %v4502
    %v4535 = vmul.f32 %v4395, %v4503
    %v4536 = vmul.f32 %v4397, %v4504
    %v4537 = vmul.f32 %v4399, %v4505
    %v4538 = vmul.f32 %v4401, %v4506
    %v4539 = vmul.f32 %v4403, %v4507
    %v4540 = vmul.f32 %v4405, %v4508
    %v4541 = vmul.f32 %v4407, %v4509
    %v4542 = vmul.f32 %v4409, %v4510
    %v4543 = vmul.f32 %v4411, %v4511
    %v4544 = vmul.f32 %v4413, %v4512
    %v4545 = vmul.f32 %v4415, %v4513
    %v4546 = vmul.f32 %v4417, %v4514
    %v4547 = vmul.f32 %v4419, %v4515
    %v4548 = vpack.c.bf16 %v4517, %v4516
    %v4549 = vpack.c.bf16 %v4519, %v4518
    %v4550 = vpack.c.bf16 %v4521, %v4520
    %v4551 = vpack.c.bf16 %v4523, %v4522
    %v4552 = vpack.c.bf16 %v4525, %v4524
    %v4553 = vpack.c.bf16 %v4527, %v4526
    %v4554 = vpack.c.bf16 %v4529, %v4528
    %v4555 = vpack.c.bf16 %v4531, %v4530
    %v4556 = vpack.c.bf16 %v4533, %v4532
    %v4557 = vpack.c.bf16 %v4535, %v4534
    %v4558 = vpack.c.bf16 %v4537, %v4536
    %v4559 = vpack.c.bf16 %v4539, %v4538
    %v4560 = vpack.c.bf16 %v4541, %v4540
    %v4561 = vpack.c.bf16 %v4543, %v4542
    %v4562 = vpack.c.bf16 %v4545, %v4544
    %v4563 = vpack.c.bf16 %v4547, %v4546
    %4564 = vrot.lane.b32.xlu0 %v642, 32
    %v4565 = vpop.permute.xlu0 %4564
    %4566 = vrot.lane.b32.xlu0 %v643, 32
    %v4567 = vpop.permute.xlu0 %4566
    %4568 = vrot.lane.b32.xlu0 %v644, 32
    %v4569 = vpop.permute.xlu0 %4568
    %4570 = vrot.lane.b32.xlu0 %v645, 32
    %v4571 = vpop.permute.xlu0 %4570
    %4572 = vrot.lane.b32.xlu0 %v646, 32
    %v4573 = vpop.permute.xlu0 %4572
    %4574 = vrot.lane.b32.xlu0 %v647, 32
    %v4575 = vpop.permute.xlu0 %4574
    %4576 = vrot.lane.b32.xlu0 %v648, 32
    %v4577 = vpop.permute.xlu0 %4576
    %4578 = vrot.lane.b32.xlu0 %v649, 32
    %v4579 = vpop.permute.xlu0 %4578
    %4588 = vmatprep.subr.bf16.mxu0 0
    %4589 = vmatpush1.bf16.msra.mxu0 %v4579
    %4590 = vmatprep.subr.bf16.mxu0 0
    %4591 = vmatpush1.bf16.msra.mxu0 %v4577
    %4592 = vmatprep.subr.bf16.mxu0 0
    %4593 = vmatpush1.bf16.msra.mxu0 %v4575
    %4594 = vmatprep.subr.bf16.mxu0 0
    %4595 = vmatpush1.bf16.msra.mxu0 %v4573
    %4596 = vmatprep.subr.bf16.mxu0 0
    %4597 = vmatpush1.bf16.msra.mxu0 %v4571
    %4598 = vmatprep.subr.bf16.mxu0 0
    %4599 = vmatpush1.bf16.msra.mxu0 %v4569
    %4600 = vmatprep.subr.bf16.mxu0 0
    %4601 = vmatpush1.bf16.msra.mxu0 %v4567
    %4602 = vmatprep.subr.bf16.mxu0 0
    %4603 = vmatpush1.bf16.msra.mxu0 %v4565
    %4604 = vmatprep.subr.bf16.mxu0 0
    %4605 = vmatpush2.bf16.msra.mxu0 0
    %4606 = vmatprep.subr.bf16.mxu0 0
    %4607 = vmatpush2.bf16.msra.mxu0 0
    %4608 = vmatprep.subr.bf16.mxu0 0
    %4609 = vmatpush2.bf16.msra.mxu0 0
    %4610 = vmatprep.subr.bf16.mxu0 0
    %4611 = vmatpush2.bf16.msra.mxu0 0
    %4612 = vmatprep.subr.bf16.mxu0 0
    %4613 = vmatpush2.bf16.msra.mxu0 0
    %4614 = vmatprep.subr.bf16.mxu0 0
    %4615 = vmatpush2.bf16.msra.mxu0 0
    %4616 = vmatprep.subr.bf16.mxu0 0
    %4617 = vmatpush2.bf16.msra.mxu0 0
    %4618 = vmatprep.subr.bf16.mxu0 0
    %4619 = vmatpush2.bf16.msra.mxu0 0
    %4620 = vmatprep.mubr.bf16.mxu0 0
    %4621 = vmatmul.mubr.bf16.gmra.mxu0 %v4548
    %v4622 = vpop.f32.mrf.mxu0
    %v4623 = vadd.f32 0.0, %v4622
    %v4624 = vpop.f32.mrf.mxu0
    %v4625 = vpop.f32.mrf.mxu0
    %v4626 = vadd.f32 0.0, %v4625
    %v4627 = vpop.f32.mrf.mxu0
    %4628 = vmatprep.mubr.bf16.mxu0 0
    %4629 = vmatmul.mubr.bf16.gmra.mxu0 %v4549
    %v4630 = vpop.f32.mrf.mxu0
    %v4631 = vadd.f32 0.0, %v4630
    %v4632 = vpop.f32.mrf.mxu0
    %v4633 = vpop.f32.mrf.mxu0
    %v4634 = vadd.f32 0.0, %v4633
    %v4635 = vpop.f32.mrf.mxu0
    %4636 = vmatprep.mubr.bf16.mxu0 0
    %4637 = vmatmul.mubr.bf16.gmra.mxu0 %v4550
    %v4638 = vpop.f32.mrf.mxu0
    %v4639 = vadd.f32 0.0, %v4638
    %v4640 = vpop.f32.mrf.mxu0
    %v4641 = vpop.f32.mrf.mxu0
    %v4642 = vadd.f32 0.0, %v4641
    %v4643 = vpop.f32.mrf.mxu0
    %4644 = vmatprep.mubr.bf16.mxu0 0
    %4645 = vmatmul.mubr.bf16.gmra.mxu0 %v4551
    %v4646 = vpop.f32.mrf.mxu0
    %v4647 = vadd.f32 0.0, %v4646
    %v4648 = vpop.f32.mrf.mxu0
    %v4649 = vpop.f32.mrf.mxu0
    %v4650 = vadd.f32 0.0, %v4649
    %v4651 = vpop.f32.mrf.mxu0
    %4652 = vmatprep.mubr.bf16.mxu0 0
    %4653 = vmatmul.mubr.bf16.gmra.mxu0 %v4552
    %v4654 = vpop.f32.mrf.mxu0
    %v4655 = vadd.f32 0.0, %v4654
    %v4656 = vpop.f32.mrf.mxu0
    %v4657 = vpop.f32.mrf.mxu0
    %v4658 = vadd.f32 0.0, %v4657
    %v4659 = vpop.f32.mrf.mxu0
    %4660 = vmatprep.mubr.bf16.mxu0 0
    %4661 = vmatmul.mubr.bf16.gmra.mxu0 %v4553
    %v4662 = vpop.f32.mrf.mxu0
    %v4663 = vadd.f32 0.0, %v4662
    %v4664 = vpop.f32.mrf.mxu0
    %v4665 = vpop.f32.mrf.mxu0
    %v4666 = vadd.f32 0.0, %v4665
    %v4667 = vpop.f32.mrf.mxu0
    %4668 = vmatprep.mubr.bf16.mxu0 0
    %4669 = vmatmul.mubr.bf16.gmra.mxu0 %v4554
    %v4670 = vpop.f32.mrf.mxu0
    %v4671 = vadd.f32 0.0, %v4670
    %v4672 = vpop.f32.mrf.mxu0
    %v4673 = vpop.f32.mrf.mxu0
    %v4674 = vadd.f32 0.0, %v4673
    %v4675 = vpop.f32.mrf.mxu0
    %4676 = vmatprep.mubr.bf16.mxu0 0
    %4677 = vmatmul.mubr.bf16.gmra.mxu0 %v4555
    %v4678 = vpop.f32.mrf.mxu0
    %v4679 = vadd.f32 0.0, %v4678
    %v4680 = vpop.f32.mrf.mxu0
    %v4681 = vpop.f32.mrf.mxu0
    %v4682 = vadd.f32 0.0, %v4681
    %v4683 = vpop.f32.mrf.mxu0
    %4684 = vdwg.mxu0
    %4685 = vrot.lane.b32.xlu0 %v650, 32
    %v4686 = vpop.permute.xlu0 %4685
    %4687 = vrot.lane.b32.xlu0 %v651, 32
    %v4688 = vpop.permute.xlu0 %4687
    %4689 = vrot.lane.b32.xlu0 %v652, 32
    %v4690 = vpop.permute.xlu0 %4689
    %4691 = vrot.lane.b32.xlu0 %v653, 32
    %v4692 = vpop.permute.xlu0 %4691
    %4693 = vrot.lane.b32.xlu0 %v654, 32
    %v4694 = vpop.permute.xlu0 %4693
    %4695 = vrot.lane.b32.xlu0 %v655, 32
    %v4696 = vpop.permute.xlu0 %4695
    %4697 = vrot.lane.b32.xlu0 %v656, 32
    %v4698 = vpop.permute.xlu0 %4697
    %4699 = vrot.lane.b32.xlu0 %v657, 32
    %v4700 = vpop.permute.xlu0 %4699
    %4709 = vmatprep.subr.bf16.mxu0 0
    %4710 = vmatpush1.bf16.msra.mxu0 %v4700
    %4711 = vmatprep.subr.bf16.mxu0 0
    %4712 = vmatpush1.bf16.msra.mxu0 %v4698
    %4713 = vmatprep.subr.bf16.mxu0 0
    %4714 = vmatpush1.bf16.msra.mxu0 %v4696
    %4715 = vmatprep.subr.bf16.mxu0 0
    %4716 = vmatpush1.bf16.msra.mxu0 %v4694
    %4717 = vmatprep.subr.bf16.mxu0 0
    %4718 = vmatpush1.bf16.msra.mxu0 %v4692
    %4719 = vmatprep.subr.bf16.mxu0 0
    %4720 = vmatpush1.bf16.msra.mxu0 %v4690
    %4721 = vmatprep.subr.bf16.mxu0 0
    %4722 = vmatpush1.bf16.msra.mxu0 %v4688
    %4723 = vmatprep.subr.bf16.mxu0 0
    %4724 = vmatpush1.bf16.msra.mxu0 %v4686
    %4725 = vmatprep.subr.bf16.mxu0 0
    %4726 = vmatpush2.bf16.msra.mxu0 0
    %4727 = vmatprep.subr.bf16.mxu0 0
    %4728 = vmatpush2.bf16.msra.mxu0 0
    %4729 = vmatprep.subr.bf16.mxu0 0
    %4730 = vmatpush2.bf16.msra.mxu0 0
    %4731 = vmatprep.subr.bf16.mxu0 0
    %4732 = vmatpush2.bf16.msra.mxu0 0
    %4733 = vmatprep.subr.bf16.mxu0 0
    %4734 = vmatpush2.bf16.msra.mxu0 0
    %4735 = vmatprep.subr.bf16.mxu0 0
    %4736 = vmatpush2.bf16.msra.mxu0 0
    %4737 = vmatprep.subr.bf16.mxu0 0
    %4738 = vmatpush2.bf16.msra.mxu0 0
    %4739 = vmatprep.subr.bf16.mxu0 0
    %4740 = vmatpush2.bf16.msra.mxu0 0
    %4741 = vmatprep.mubr.bf16.mxu0 0
    %4742 = vmatmul.mubr.bf16.gmra.mxu0 %v4556
    %v4743 = vpop.f32.mrf.mxu0
    %v4744 = vadd.f32 0.0, %v4743
    %v4745 = vpop.f32.mrf.mxu0
    %v4746 = vpop.f32.mrf.mxu0
    %v4747 = vadd.f32 0.0, %v4746
    %v4748 = vpop.f32.mrf.mxu0
    %4749 = vmatprep.mubr.bf16.mxu0 0
    %4750 = vmatmul.mubr.bf16.gmra.mxu0 %v4557
    %v4751 = vpop.f32.mrf.mxu0
    %v4752 = vadd.f32 0.0, %v4751
    %v4753 = vpop.f32.mrf.mxu0
    %v4754 = vpop.f32.mrf.mxu0
    %v4755 = vadd.f32 0.0, %v4754
    %v4756 = vpop.f32.mrf.mxu0
    %4757 = vmatprep.mubr.bf16.mxu0 0
    %4758 = vmatmul.mubr.bf16.gmra.mxu0 %v4558
    %v4759 = vpop.f32.mrf.mxu0
    %v4760 = vadd.f32 0.0, %v4759
    %v4761 = vpop.f32.mrf.mxu0
    %v4762 = vpop.f32.mrf.mxu0
    %v4763 = vadd.f32 0.0, %v4762
    %v4764 = vpop.f32.mrf.mxu0
    %4765 = vmatprep.mubr.bf16.mxu0 0
    %4766 = vmatmul.mubr.bf16.gmra.mxu0 %v4559
    %v4767 = vpop.f32.mrf.mxu0
    %v4768 = vadd.f32 0.0, %v4767
    %v4769 = vpop.f32.mrf.mxu0
    %v4770 = vpop.f32.mrf.mxu0
    %v4771 = vadd.f32 0.0, %v4770
    %v4772 = vpop.f32.mrf.mxu0
    %4773 = vmatprep.mubr.bf16.mxu0 0
    %4774 = vmatmul.mubr.bf16.gmra.mxu0 %v4560
    %v4775 = vpop.f32.mrf.mxu0
    %v4776 = vadd.f32 0.0, %v4775
    %v4777 = vpop.f32.mrf.mxu0
    %v4778 = vpop.f32.mrf.mxu0
    %v4779 = vadd.f32 0.0, %v4778
    %v4780 = vpop.f32.mrf.mxu0
    %4781 = vmatprep.mubr.bf16.mxu0 0
    %4782 = vmatmul.mubr.bf16.gmra.mxu0 %v4561
    %v4783 = vpop.f32.mrf.mxu0
    %v4784 = vadd.f32 0.0, %v4783
    %v4785 = vpop.f32.mrf.mxu0
    %v4786 = vpop.f32.mrf.mxu0
    %v4787 = vadd.f32 0.0, %v4786
    %v4788 = vpop.f32.mrf.mxu0
    %4789 = vmatprep.mubr.bf16.mxu0 0
    %4790 = vmatmul.mubr.bf16.gmra.mxu0 %v4562
    %v4791 = vpop.f32.mrf.mxu0
    %v4792 = vadd.f32 0.0, %v4791
    %v4793 = vpop.f32.mrf.mxu0
    %v4794 = vpop.f32.mrf.mxu0
    %v4795 = vadd.f32 0.0, %v4794
    %v4796 = vpop.f32.mrf.mxu0
    %4797 = vmatprep.mubr.bf16.mxu0 0
    %4798 = vmatmul.mubr.bf16.gmra.mxu0 %v4563
    %v4799 = vpop.f32.mrf.mxu0
    %v4800 = vadd.f32 0.0, %v4799
    %v4801 = vpop.f32.mrf.mxu0
    %v4802 = vpop.f32.mrf.mxu0
    %v4803 = vadd.f32 0.0, %v4802
    %v4804 = vpop.f32.mrf.mxu0
    %4805 = vdwg.mxu0
    %v4806 = vpack.c.bf16 %v4626, %v4623
    %v4807 = vpack.c.bf16 %v4634, %v4631
    %v4808 = vpack.c.bf16 %v4642, %v4639
    %v4809 = vpack.c.bf16 %v4650, %v4647
    %v4810 = vpack.c.bf16 %v4658, %v4655
    %v4811 = vpack.c.bf16 %v4666, %v4663
    %v4812 = vpack.c.bf16 %v4674, %v4671
    %v4813 = vpack.c.bf16 %v4682, %v4679
    %v4814 = vpack.c.bf16 %v4747, %v4744
    %v4815 = vpack.c.bf16 %v4755, %v4752
    %v4816 = vpack.c.bf16 %v4763, %v4760
    %v4817 = vpack.c.bf16 %v4771, %v4768
    %v4818 = vpack.c.bf16 %v4779, %v4776
    %v4819 = vpack.c.bf16 %v4787, %v4784
    %v4820 = vpack.c.bf16 %v4795, %v4792
    %v4821 = vpack.c.bf16 %v4803, %v4800
    %v4838 = vunpack.c.l.b16 %v4806
    %v4839 = vunpack.c.h.b16 %v4806
    %v4840 = vunpack.c.l.b16 %v4807
    %v4841 = vunpack.c.h.b16 %v4807
    %v4842 = vunpack.c.l.b16 %v4808
    %v4843 = vunpack.c.h.b16 %v4808
    %v4844 = vunpack.c.l.b16 %v4809
    %v4845 = vunpack.c.h.b16 %v4809
    %v4846 = vunpack.c.l.b16 %v4810
    %v4847 = vunpack.c.h.b16 %v4810
    %v4848 = vunpack.c.l.b16 %v4811
    %v4849 = vunpack.c.h.b16 %v4811
    %v4850 = vunpack.c.l.b16 %v4812
    %v4851 = vunpack.c.h.b16 %v4812
    %v4852 = vunpack.c.l.b16 %v4813
    %v4853 = vunpack.c.h.b16 %v4813
    %v4854 = vunpack.c.l.b16 %v4814
    %v4855 = vunpack.c.h.b16 %v4814
    %v4856 = vunpack.c.l.b16 %v4815
    %v4857 = vunpack.c.h.b16 %v4815
    %v4858 = vunpack.c.l.b16 %v4816
    %v4859 = vunpack.c.h.b16 %v4816
    %v4860 = vunpack.c.l.b16 %v4817
    %v4861 = vunpack.c.h.b16 %v4817
    %v4862 = vunpack.c.l.b16 %v4818
    %v4863 = vunpack.c.h.b16 %v4818
    %v4864 = vunpack.c.l.b16 %v4819
    %v4865 = vunpack.c.h.b16 %v4819
    %v4866 = vunpack.c.l.b16 %v4820
    %v4867 = vunpack.c.h.b16 %v4820
    %v4868 = vunpack.c.l.b16 %v4821
    %v4869 = vunpack.c.h.b16 %v4821
    %v4870 = vpack.c.b16 %v4838, %v4838
    %v4871 = vpack.c.b16 %v4839, %v4839
    %v4872 = vpack.c.b16 %v4840, %v4840
    %v4873 = vpack.c.b16 %v4841, %v4841
    %v4874 = vpack.c.b16 %v4842, %v4842
    %v4875 = vpack.c.b16 %v4843, %v4843
    %v4876 = vpack.c.b16 %v4844, %v4844
    %v4877 = vpack.c.b16 %v4845, %v4845
    %v4878 = vpack.c.b16 %v4846, %v4846
    %v4879 = vpack.c.b16 %v4847, %v4847
    %v4880 = vpack.c.b16 %v4848, %v4848
    %v4881 = vpack.c.b16 %v4849, %v4849
    %v4882 = vpack.c.b16 %v4850, %v4850
    %v4883 = vpack.c.b16 %v4851, %v4851
    %v4884 = vpack.c.b16 %v4852, %v4852
    %v4885 = vpack.c.b16 %v4853, %v4853
    %v4886 = vpack.c.b16 %v4854, %v4854
    %v4887 = vpack.c.b16 %v4855, %v4855
    %v4888 = vpack.c.b16 %v4856, %v4856
    %v4889 = vpack.c.b16 %v4857, %v4857
    %v4890 = vpack.c.b16 %v4858, %v4858
    %v4891 = vpack.c.b16 %v4859, %v4859
    %v4892 = vpack.c.b16 %v4860, %v4860
    %v4893 = vpack.c.b16 %v4861, %v4861
    %v4894 = vpack.c.b16 %v4862, %v4862
    %v4895 = vpack.c.b16 %v4863, %v4863
    %v4896 = vpack.c.b16 %v4864, %v4864
    %v4897 = vpack.c.b16 %v4865, %v4865
    %v4898 = vpack.c.b16 %v4866, %v4866
    %v4899 = vpack.c.b16 %v4867, %v4867
    %v4900 = vpack.c.b16 %v4868, %v4868
    %v4901 = vpack.c.b16 %v4869, %v4869
    %4902 = vrot.lane.b32.xlu0 %v4870, 96
    %v4903 = vpop.permute.xlu0 %4902
    %4904 = vrot.lane.b32.xlu0 %v4871, 96
    %v4905 = vpop.permute.xlu0 %4904
    %4906 = vrot.lane.b32.xlu0 %v4872, 96
    %v4907 = vpop.permute.xlu0 %4906
    %4908 = vrot.lane.b32.xlu0 %v4873, 96
    %v4909 = vpop.permute.xlu0 %4908
    %4910 = vrot.lane.b32.xlu0 %v4874, 96
    %v4911 = vpop.permute.xlu0 %4910
    %4912 = vrot.lane.b32.xlu0 %v4875, 96
    %v4913 = vpop.permute.xlu0 %4912
    %4914 = vrot.lane.b32.xlu0 %v4876, 96
    %v4915 = vpop.permute.xlu0 %4914
    %4916 = vrot.lane.b32.xlu0 %v4877, 96
    %v4917 = vpop.permute.xlu0 %4916
    %4918 = vrot.lane.b32.xlu0 %v4878, 96
    %v4919 = vpop.permute.xlu0 %4918
    %4920 = vrot.lane.b32.xlu0 %v4879, 96
    %v4921 = vpop.permute.xlu0 %4920
    %4922 = vrot.lane.b32.xlu0 %v4880, 96
    %v4923 = vpop.permute.xlu0 %4922
    %4924 = vrot.lane.b32.xlu0 %v4881, 96
    %v4925 = vpop.permute.xlu0 %4924
    %4926 = vrot.lane.b32.xlu0 %v4882, 96
    %v4927 = vpop.permute.xlu0 %4926
    %4928 = vrot.lane.b32.xlu0 %v4883, 96
    %v4929 = vpop.permute.xlu0 %4928
    %4930 = vrot.lane.b32.xlu0 %v4884, 96
    %v4931 = vpop.permute.xlu0 %4930
    %4932 = vrot.lane.b32.xlu0 %v4885, 96
    %v4933 = vpop.permute.xlu0 %4932
    %4934 = vrot.lane.b32.xlu0 %v4886, 96
    %v4935 = vpop.permute.xlu0 %4934
    %4936 = vrot.lane.b32.xlu0 %v4887, 96
    %v4937 = vpop.permute.xlu0 %4936
    %4938 = vrot.lane.b32.xlu0 %v4888, 96
    %v4939 = vpop.permute.xlu0 %4938
    %4940 = vrot.lane.b32.xlu0 %v4889, 96
    %v4941 = vpop.permute.xlu0 %4940
    %4942 = vrot.lane.b32.xlu0 %v4890, 96
    %v4943 = vpop.permute.xlu0 %4942
    %4944 = vrot.lane.b32.xlu0 %v4891, 96
    %v4945 = vpop.permute.xlu0 %4944
    %4946 = vrot.lane.b32.xlu0 %v4892, 96
    %v4947 = vpop.permute.xlu0 %4946
    %4948 = vrot.lane.b32.xlu0 %v4893, 96
    %v4949 = vpop.permute.xlu0 %4948
    %4950 = vrot.lane.b32.xlu0 %v4894, 96
    %v4951 = vpop.permute.xlu0 %4950
    %4952 = vrot.lane.b32.xlu0 %v4895, 96
    %v4953 = vpop.permute.xlu0 %4952
    %4954 = vrot.lane.b32.xlu0 %v4896, 96
    %v4955 = vpop.permute.xlu0 %4954
    %4956 = vrot.lane.b32.xlu0 %v4897, 96
    %v4957 = vpop.permute.xlu0 %4956
    %4958 = vrot.lane.b32.xlu0 %v4898, 96
    %v4959 = vpop.permute.xlu0 %4958
    %4960 = vrot.lane.b32.xlu0 %v4899, 96
    %v4961 = vpop.permute.xlu0 %4960
    %4962 = vrot.lane.b32.xlu0 %v4900, 96
    %v4963 = vpop.permute.xlu0 %4962
    %4964 = vrot.lane.b32.xlu0 %v4901, 96
    %v4965 = vpop.permute.xlu0 %4964
    %vm4998 = vcmask 1044224
    %4999 = vst.msk [vmem:[#allocation2] sm:$0xf] %vm4998, %v4903
    %5000 = vst.msk [vmem:[#allocation2 + $0x4] sm:$0xf] %vm4998, %v4905
    %5001 = vst.msk [vmem:[#allocation2 + $0x8] sm:$0xf] %vm4998, %v4907
    %5002 = vst.msk [vmem:[#allocation2 + $0xc] sm:$0xf] %vm4998, %v4909
    %5003 = vst.msk [vmem:[#allocation2 + $0x10] sm:$0xf] %vm4998, %v4911
    %5004 = vst.msk [vmem:[#allocation2 + $0x14] sm:$0xf] %vm4998, %v4913
    %5005 = vst.msk [vmem:[#allocation2 + $0x18] sm:$0xf] %vm4998, %v4915
    %5006 = vst.msk [vmem:[#allocation2 + $0x1c] sm:$0xf] %vm4998, %v4917
    %5007 = vst.msk [vmem:[#allocation2 + $0x20] sm:$0xf] %vm4998, %v4919
    %5008 = vst.msk [vmem:[#allocation2 + $0x24] sm:$0xf] %vm4998, %v4921
    %5009 = vst.msk [vmem:[#allocation2 + $0x28] sm:$0xf] %vm4998, %v4923
    %5010 = vst.msk [vmem:[#allocation2 + $0x2c] sm:$0xf] %vm4998, %v4925
    %5011 = vst.msk [vmem:[#allocation2 + $0x30] sm:$0xf] %vm4998, %v4927
    %5012 = vst.msk [vmem:[#allocation2 + $0x34] sm:$0xf] %vm4998, %v4929
    %5013 = vst.msk [vmem:[#allocation2 + $0x38] sm:$0xf] %vm4998, %v4931
    %5014 = vst.msk [vmem:[#allocation2 + $0x3c] sm:$0xf] %vm4998, %v4933
    %5015 = vst.msk [vmem:[#allocation2 + $0x40] sm:$0xf] %vm4998, %v4935
    %5016 = vst.msk [vmem:[#allocation2 + $0x44] sm:$0xf] %vm4998, %v4937
    %5017 = vst.msk [vmem:[#allocation2 + $0x48] sm:$0xf] %vm4998, %v4939
    %5018 = vst.msk [vmem:[#allocation2 + $0x4c] sm:$0xf] %vm4998, %v4941
    %5019 = vst.msk [vmem:[#allocation2 + $0x50] sm:$0xf] %vm4998, %v4943
    %5020 = vst.msk [vmem:[#allocation2 + $0x54] sm:$0xf] %vm4998, %v4945
    %5021 = vst.msk [vmem:[#allocation2 + $0x58] sm:$0xf] %vm4998, %v4947
    %5022 = vst.msk [vmem:[#allocation2 + $0x5c] sm:$0xf] %vm4998, %v4949
    %5023 = vst.msk [vmem:[#allocation2 + $0x60] sm:$0xf] %vm4998, %v4951
    %5024 = vst.msk [vmem:[#allocation2 + $0x64] sm:$0xf] %vm4998, %v4953
    %5025 = vst.msk [vmem:[#allocation2 + $0x68] sm:$0xf] %vm4998, %v4955
    %5026 = vst.msk [vmem:[#allocation2 + $0x6c] sm:$0xf] %vm4998, %v4957
    %5027 = vst.msk [vmem:[#allocation2 + $0x70] sm:$0xf] %vm4998, %v4959
    %5028 = vst.msk [vmem:[#allocation2 + $0x74] sm:$0xf] %vm4998, %v4961
    %5029 = vst.msk [vmem:[#allocation2 + $0x78] sm:$0xf] %vm4998, %v4963
    %5030 = vst.msk [vmem:[#allocation2 + $0x7c] sm:$0xf] %vm4998, %v4965
    %v5031 = vld [vmem:[#allocation2] sm:$0xf]
    %v5032 = vld [vmem:[#allocation2 + $0x4] sm:$0xf]
    %v5033 = vld [vmem:[#allocation2 + $0x8] sm:$0xf]
    %v5034 = vld [vmem:[#allocation2 + $0xc] sm:$0xf]
    %v5035 = vld [vmem:[#allocation2 + $0x10] sm:$0xf]
    %v5036 = vld [vmem:[#allocation2 + $0x14] sm:$0xf]
    %v5037 = vld [vmem:[#allocation2 + $0x18] sm:$0xf]
    %v5038 = vld [vmem:[#allocation2 + $0x1c] sm:$0xf]
    %v5039 = vld [vmem:[#allocation2 + $0x20] sm:$0xf]
    %v5040 = vld [vmem:[#allocation2 + $0x24] sm:$0xf]
    %v5041 = vld [vmem:[#allocation2 + $0x28] sm:$0xf]
    %v5042 = vld [vmem:[#allocation2 + $0x2c] sm:$0xf]
    %v5043 = vld [vmem:[#allocation2 + $0x30] sm:$0xf]
    %v5044 = vld [vmem:[#allocation2 + $0x34] sm:$0xf]
    %v5045 = vld [vmem:[#allocation2 + $0x38] sm:$0xf]
    %v5046 = vld [vmem:[#allocation2 + $0x3c] sm:$0xf]
    %v5047 = vld [vmem:[#allocation2 + $0x40] sm:$0xf]
    %v5048 = vld [vmem:[#allocation2 + $0x44] sm:$0xf]
    %v5049 = vld [vmem:[#allocation2 + $0x48] sm:$0xf]
    %v5050 = vld [vmem:[#allocation2 + $0x4c] sm:$0xf]
    %v5051 = vld [vmem:[#allocation2 + $0x50] sm:$0xf]
    %v5052 = vld [vmem:[#allocation2 + $0x54] sm:$0xf]
    %v5053 = vld [vmem:[#allocation2 + $0x58] sm:$0xf]
    %v5054 = vld [vmem:[#allocation2 + $0x5c] sm:$0xf]
    %v5055 = vld [vmem:[#allocation2 + $0x60] sm:$0xf]
    %v5056 = vld [vmem:[#allocation2 + $0x64] sm:$0xf]
    %v5057 = vld [vmem:[#allocation2 + $0x68] sm:$0xf]
    %v5058 = vld [vmem:[#allocation2 + $0x6c] sm:$0xf]
    %v5059 = vld [vmem:[#allocation2 + $0x70] sm:$0xf]
    %v5060 = vld [vmem:[#allocation2 + $0x74] sm:$0xf]
    %v5061 = vld [vmem:[#allocation2 + $0x78] sm:$0xf]
    %v5062 = vld [vmem:[#allocation2 + $0x7c] sm:$0xf]
    %v5063 = vld [vmem:[%s4] sm:$0x1]
    %v5065 = vlaneseq
    %v5066 = vshrl.u32 %v5065, 7
    %v5067 = vsub.s32 0, %v5066
    %v5068 = vrot.slane %v5063, %v5067
    %v5102 = vunpack.c.l.b16 %v5031
    %v5103 = vunpack.c.l.b16 %v5032
    %v5104 = vunpack.c.l.b16 %v5033
    %v5105 = vunpack.c.l.b16 %v5034
    %v5106 = vunpack.c.l.b16 %v5035
    %v5107 = vunpack.c.l.b16 %v5036
    %v5108 = vunpack.c.l.b16 %v5037
    %v5109 = vunpack.c.l.b16 %v5038
    %v5110 = vunpack.c.l.b16 %v5039
    %v5111 = vunpack.c.l.b16 %v5040
    %v5112 = vunpack.c.l.b16 %v5041
    %v5113 = vunpack.c.l.b16 %v5042
    %v5114 = vunpack.c.l.b16 %v5043
    %v5115 = vunpack.c.l.b16 %v5044
    %v5116 = vunpack.c.l.b16 %v5045
    %v5117 = vunpack.c.l.b16 %v5046
    %v5118 = vunpack.c.l.b16 %v5047
    %v5119 = vunpack.c.l.b16 %v5048
    %v5120 = vunpack.c.l.b16 %v5049
    %v5121 = vunpack.c.l.b16 %v5050
    %v5122 = vunpack.c.l.b16 %v5051
    %v5123 = vunpack.c.l.b16 %v5052
    %v5124 = vunpack.c.l.b16 %v5053
    %v5125 = vunpack.c.l.b16 %v5054
    %v5126 = vunpack.c.l.b16 %v5055
    %v5127 = vunpack.c.l.b16 %v5056
    %v5128 = vunpack.c.l.b16 %v5057
    %v5129 = vunpack.c.l.b16 %v5058
    %v5130 = vunpack.c.l.b16 %v5059
    %v5131 = vunpack.c.l.b16 %v5060
    %v5132 = vunpack.c.l.b16 %v5061
    %v5133 = vunpack.c.l.b16 %v5062
    %v5134 = vpack.c.b16 %v5103, %v5102
    %v5135 = vpack.c.b16 %v5105, %v5104
    %v5136 = vpack.c.b16 %v5107, %v5106
    %v5137 = vpack.c.b16 %v5109, %v5108
    %v5138 = vpack.c.b16 %v5111, %v5110
    %v5139 = vpack.c.b16 %v5113, %v5112
    %v5140 = vpack.c.b16 %v5115, %v5114
    %v5141 = vpack.c.b16 %v5117, %v5116
    %v5142 = vpack.c.b16 %v5119, %v5118
    %v5143 = vpack.c.b16 %v5121, %v5120
    %v5144 = vpack.c.b16 %v5123, %v5122
    %v5145 = vpack.c.b16 %v5125, %v5124
    %v5146 = vpack.c.b16 %v5127, %v5126
    %v5147 = vpack.c.b16 %v5129, %v5128
    %v5148 = vpack.c.b16 %v5131, %v5130
    %v5149 = vpack.c.b16 %v5133, %v5132
    %5166 = vmatprep.subr.bf16.mxu0 0
    %5167 = vmatpush1.bf16.msra.mxu0 %v206
    %5168 = vmatprep.subr.bf16.mxu0 0
    %5169 = vmatpush1.bf16.msra.mxu0 %v205
    %5170 = vmatprep.subr.bf16.mxu0 0
    %5171 = vmatpush1.bf16.msra.mxu0 %v204
    %5172 = vmatprep.subr.bf16.mxu0 0
    %5173 = vmatpush1.bf16.msra.mxu0 %v203
    %5174 = vmatprep.subr.bf16.mxu0 0
    %5175 = vmatpush1.bf16.msra.mxu0 %v202
    %5176 = vmatprep.subr.bf16.mxu0 0
    %5177 = vmatpush1.bf16.msra.mxu0 %v201
    %5178 = vmatprep.subr.bf16.mxu0 0
    %5179 = vmatpush1.bf16.msra.mxu0 %v200
    %5180 = vmatprep.subr.bf16.mxu0 0
    %5181 = vmatpush1.bf16.msra.mxu0 %v199
    %5182 = vmatprep.subr.bf16.mxu0 0
    %5183 = vmatpush2.bf16.msra.mxu0 0
    %5184 = vmatprep.subr.bf16.mxu0 0
    %5185 = vmatpush2.bf16.msra.mxu0 0
    %5186 = vmatprep.subr.bf16.mxu0 0
    %5187 = vmatpush2.bf16.msra.mxu0 0
    %5188 = vmatprep.subr.bf16.mxu0 0
    %5189 = vmatpush2.bf16.msra.mxu0 0
    %5190 = vmatprep.subr.bf16.mxu0 0
    %5191 = vmatpush2.bf16.msra.mxu0 0
    %5192 = vmatprep.subr.bf16.mxu0 0
    %5193 = vmatpush2.bf16.msra.mxu0 0
    %5194 = vmatprep.subr.bf16.mxu0 0
    %5195 = vmatpush2.bf16.msra.mxu0 0
    %5196 = vmatprep.subr.bf16.mxu0 0
    %5197 = vmatpush2.bf16.msra.mxu0 0
    %5198 = vmatprep.mubr.bf16.mxu0 0
    %5199 = vmatmul.mubr.bf16.gmra.mxu0 %v5134
    %v5200 = vpop.f32.mrf.mxu0
    %v5201 = vadd.f32 %v5068, %v5200
    %v5202 = vpop.f32.mrf.mxu0
    %v5203 = vpop.f32.mrf.mxu0
    %v5204 = vadd.f32 %v5068, %v5203
    %v5205 = vpop.f32.mrf.mxu0
    %5206 = vmatprep.mubr.bf16.mxu0 0
    %5207 = vmatmul.mubr.bf16.gmra.mxu0 %v5135
    %v5208 = vpop.f32.mrf.mxu0
    %v5209 = vadd.f32 %v5068, %v5208
    %v5210 = vpop.f32.mrf.mxu0
    %v5211 = vpop.f32.mrf.mxu0
    %v5212 = vadd.f32 %v5068, %v5211
    %v5213 = vpop.f32.mrf.mxu0
    %5214 = vmatprep.mubr.bf16.mxu0 0
    %5215 = vmatmul.mubr.bf16.gmra.mxu0 %v5136
    %v5216 = vpop.f32.mrf.mxu0
    %v5217 = vadd.f32 %v5068, %v5216
    %v5218 = vpop.f32.mrf.mxu0
    %v5219 = vpop.f32.mrf.mxu0
    %v5220 = vadd.f32 %v5068, %v5219
    %v5221 = vpop.f32.mrf.mxu0
    %5222 = vmatprep.mubr.bf16.mxu0 0
    %5223 = vmatmul.mubr.bf16.gmra.mxu0 %v5137
    %v5224 = vpop.f32.mrf.mxu0
    %v5225 = vadd.f32 %v5068, %v5224
    %v5226 = vpop.f32.mrf.mxu0
    %v5227 = vpop.f32.mrf.mxu0
    %v5228 = vadd.f32 %v5068, %v5227
    %v5229 = vpop.f32.mrf.mxu0
    %5230 = vmatprep.mubr.bf16.mxu0 0
    %5231 = vmatmul.mubr.bf16.gmra.mxu0 %v5138
    %v5232 = vpop.f32.mrf.mxu0
    %v5233 = vadd.f32 %v5068, %v5232
    %v5234 = vpop.f32.mrf.mxu0
    %v5235 = vpop.f32.mrf.mxu0
    %v5236 = vadd.f32 %v5068, %v5235
    %v5237 = vpop.f32.mrf.mxu0
    %5238 = vmatprep.mubr.bf16.mxu0 0
    %5239 = vmatmul.mubr.bf16.gmra.mxu0 %v5139
    %v5240 = vpop.f32.mrf.mxu0
    %v5241 = vadd.f32 %v5068, %v5240
    %v5242 = vpop.f32.mrf.mxu0
    %v5243 = vpop.f32.mrf.mxu0
    %v5244 = vadd.f32 %v5068, %v5243
    %v5245 = vpop.f32.mrf.mxu0
    %5246 = vmatprep.mubr.bf16.mxu0 0
    %5247 = vmatmul.mubr.bf16.gmra.mxu0 %v5140
    %v5248 = vpop.f32.mrf.mxu0
    %v5249 = vadd.f32 %v5068, %v5248
    %v5250 = vpop.f32.mrf.mxu0
    %v5251 = vpop.f32.mrf.mxu0
    %v5252 = vadd.f32 %v5068, %v5251
    %v5253 = vpop.f32.mrf.mxu0
    %5254 = vmatprep.mubr.bf16.mxu0 0
    %5255 = vmatmul.mubr.bf16.gmra.mxu0 %v5141
    %v5256 = vpop.f32.mrf.mxu0
    %v5257 = vadd.f32 %v5068, %v5256
    %v5258 = vpop.f32.mrf.mxu0
    %v5259 = vpop.f32.mrf.mxu0
    %v5260 = vadd.f32 %v5068, %v5259
    %v5261 = vpop.f32.mrf.mxu0
    %5262 = vmatprep.mubr.bf16.mxu0 0
    %5263 = vmatmul.mubr.bf16.gmra.mxu0 %v5142
    %v5264 = vpop.f32.mrf.mxu0
    %v5265 = vadd.f32 %v5068, %v5264
    %v5266 = vpop.f32.mrf.mxu0
    %v5267 = vpop.f32.mrf.mxu0
    %v5268 = vadd.f32 %v5068, %v5267
    %v5269 = vpop.f32.mrf.mxu0
    %5270 = vmatprep.mubr.bf16.mxu0 0
    %5271 = vmatmul.mubr.bf16.gmra.mxu0 %v5143
    %v5272 = vpop.f32.mrf.mxu0
    %v5273 = vadd.f32 %v5068, %v5272
    %v5274 = vpop.f32.mrf.mxu0
    %v5275 = vpop.f32.mrf.mxu0
    %v5276 = vadd.f32 %v5068, %v5275
    %v5277 = vpop.f32.mrf.mxu0
    %5278 = vmatprep.mubr.bf16.mxu0 0
    %5279 = vmatmul.mubr.bf16.gmra.mxu0 %v5144
    %v5280 = vpop.f32.mrf.mxu0
    %v5281 = vadd.f32 %v5068, %v5280
    %v5282 = vpop.f32.mrf.mxu0
    %v5283 = vpop.f32.mrf.mxu0
    %v5284 = vadd.f32 %v5068, %v5283
    %v5285 = vpop.f32.mrf.mxu0
    %5286 = vmatprep.mubr.bf16.mxu0 0
    %5287 = vmatmul.mubr.bf16.gmra.mxu0 %v5145
    %v5288 = vpop.f32.mrf.mxu0
    %v5289 = vadd.f32 %v5068, %v5288
    %v5290 = vpop.f32.mrf.mxu0
    %v5291 = vpop.f32.mrf.mxu0
    %v5292 = vadd.f32 %v5068, %v5291
    %v5293 = vpop.f32.mrf.mxu0
    %5294 = vmatprep.mubr.bf16.mxu0 0
    %5295 = vmatmul.mubr.bf16.gmra.mxu0 %v5146
    %v5296 = vpop.f32.mrf.mxu0
    %v5297 = vadd.f32 %v5068, %v5296
    %v5298 = vpop.f32.mrf.mxu0
    %v5299 = vpop.f32.mrf.mxu0
    %v5300 = vadd.f32 %v5068, %v5299
    %v5301 = vpop.f32.mrf.mxu0
    %5302 = vmatprep.mubr.bf16.mxu0 0
    %5303 = vmatmul.mubr.bf16.gmra.mxu0 %v5147
    %v5304 = vpop.f32.mrf.mxu0
    %v5305 = vadd.f32 %v5068, %v5304
    %v5306 = vpop.f32.mrf.mxu0
    %v5307 = vpop.f32.mrf.mxu0
    %v5308 = vadd.f32 %v5068, %v5307
    %v5309 = vpop.f32.mrf.mxu0
    %5310 = vmatprep.mubr.bf16.mxu0 0
    %5311 = vmatmul.mubr.bf16.gmra.mxu0 %v5148
    %v5312 = vpop.f32.mrf.mxu0
    %v5313 = vadd.f32 %v5068, %v5312
    %v5314 = vpop.f32.mrf.mxu0
    %v5315 = vpop.f32.mrf.mxu0
    %v5316 = vadd.f32 %v5068, %v5315
    %v5317 = vpop.f32.mrf.mxu0
    %5318 = vmatprep.mubr.bf16.mxu0 0
    %5319 = vmatmul.mubr.bf16.gmra.mxu0 %v5149
    %v5320 = vpop.f32.mrf.mxu0
    %v5321 = vadd.f32 %v5068, %v5320
    %v5322 = vpop.f32.mrf.mxu0
    %v5323 = vpop.f32.mrf.mxu0
    %v5324 = vadd.f32 %v5068, %v5323
    %v5325 = vpop.f32.mrf.mxu0
    %5326 = vdwg.mxu0
    %5327 = vst [vmem:[#allocation9] sm:$0xff] %v5201
    %5328 = vst [vmem:[#allocation9 + $0x8] sm:$0xff] %v5204
    %5329 = vst [vmem:[#allocation9 + $0x10] sm:$0xff] %v5209
    %5330 = vst [vmem:[#allocation9 + $0x18] sm:$0xff] %v5212
    %5331 = vst [vmem:[#allocation9 + $0x20] sm:$0xff] %v5217
    %5332 = vst [vmem:[#allocation9 + $0x28] sm:$0xff] %v5220
    %5333 = vst [vmem:[#allocation9 + $0x30] sm:$0xff] %v5225
    %5334 = vst [vmem:[#allocation9 + $0x38] sm:$0xff] %v5228
    %5335 = vst [vmem:[#allocation9 + $0x40] sm:$0xff] %v5233
    %5336 = vst [vmem:[#allocation9 + $0x48] sm:$0xff] %v5236
    %5337 = vst [vmem:[#allocation9 + $0x50] sm:$0xff] %v5241
    %5338 = vst [vmem:[#allocation9 + $0x58] sm:$0xff] %v5244
    %5339 = vst [vmem:[#allocation9 + $0x60] sm:$0xff] %v5249
    %5340 = vst [vmem:[#allocation9 + $0x68] sm:$0xff] %v5252
    %5341 = vst [vmem:[#allocation9 + $0x70] sm:$0xff] %v5257
    %5342 = vst [vmem:[#allocation9 + $0x78] sm:$0xff] %v5260
    %5343 = vst [vmem:[#allocation9 + $0x80] sm:$0xff] %v5265
    %5344 = vst [vmem:[#allocation9 + $0x88] sm:$0xff] %v5268
    %5345 = vst [vmem:[#allocation9 + $0x90] sm:$0xff] %v5273
    %5346 = vst [vmem:[#allocation9 + $0x98] sm:$0xff] %v5276
    %5347 = vst [vmem:[#allocation9 + $0xa0] sm:$0xff] %v5281
    %5348 = vst [vmem:[#allocation9 + $0xa8] sm:$0xff] %v5284
    %5349 = vst [vmem:[#allocation9 + $0xb0] sm:$0xff] %v5289
    %5350 = vst [vmem:[#allocation9 + $0xb8] sm:$0xff] %v5292
    %5351 = vst [vmem:[#allocation9 + $0xc0] sm:$0xff] %v5297
    %5352 = vst [vmem:[#allocation9 + $0xc8] sm:$0xff] %v5300
    %5353 = vst [vmem:[#allocation9 + $0xd0] sm:$0xff] %v5305
    %5354 = vst [vmem:[#allocation9 + $0xd8] sm:$0xff] %v5308
    %5355 = vst [vmem:[#allocation9 + $0xe0] sm:$0xff] %v5313
    %5356 = vst [vmem:[#allocation9 + $0xe8] sm:$0xff] %v5316
    %5357 = vst [vmem:[#allocation9 + $0xf0] sm:$0xff] %v5321
    %5358 = vst [vmem:[#allocation9 + $0xf8] sm:$0xff] %v5324
    // Predicated region
    $region34: #{tpu_custom_call.1} parent=1 // pred_check
      _
    $region35: #{tpu_custom_call.1} parent=1 // pred_check_branch
      %5360 = sbr.rel (0) target = $region37
    $region36: #{tpu_custom_call.1} parent=1 // pred_region
      %s5362 = ssub.s32 4096, 4096
      %5363 = vsyncadd [#allocation5], %s5362
      %s5364 = sshll.u32 [#allocation9], 4
      %s5365 = int_to_ptr.vmem [resolvable:$true] %s5364
      %5370 = dma.vmem_to_hbm [thread:$0]  %s5365, 4096, %s5, [#allocation5], 128, 128, 8
    $region37: #{tpu_custom_call.1} parent=1 // pred_fallthru
      _
    // Predicated region
    $region38: #{tpu_custom_call.1} parent=1 // pred_check
      _
    $region39: #{tpu_custom_call.1} parent=1 // pred_check_branch
      %5372 = sbr.rel (0) target = $region41
    $region40: #{tpu_custom_call.1} parent=1 // pred_region
      %5373 = dma.done [#allocation5], 4096
    $region41: #{tpu_custom_call.1} parent=1 // pred_fallthru
      _
    %5374 = vsyncpa [#allocation4], 1
    %5375 = vsyncpa [#allocation7], 1
    %5376 = vsyncpa [#allocation5], 1

</llo_original>
